<compile_context>
chip_gen: v6e
topology: v6e:2x2x1
jax: 0.10.0
libtpu: 0.0.40
codegen_flags: <defaults>
</compile_context>

<pallas_src>
import jax
import jax.numpy as jnp
from jax.experimental import pallas as pl
from jax.experimental.pallas import tpu as pltpu

# Logical dims and their lane-aligned padded versions.
IN_DIM, IN_PAD = 784, 896      # 7 * 128
H1_DIM, H1_PAD = 1000, 1024    # 8 * 128
H2_DIM, H2_PAD = 200, 256      # 2 * 128


def _vae_kernel(x_ref, w1_ref, b1_ref, w2_ref, b2_ref, w3_ref, b3_ref, o_ref):
    # Layer 1: (TB, 896) @ (896, 1024) bf16 on the MXU, f32 accumulation.
    h1 = jnp.dot(x_ref[...], w1_ref[...], preferred_element_type=jnp.float32)
    h1 = jnp.maximum(h1 + b1_ref[...], 0.0)                      # bias + ReLU (f32, VPU)

    # Layer 2: (TB, 1024) @ (1024, 256); cast activations back to bf16 for the MXU.
    h2 = jnp.dot(h1.astype(jnp.bfloat16), w2_ref[...],
                 preferred_element_type=jnp.float32)
    h2 = jnp.maximum(h2 + b2_ref[...], 0.0)

    # Layer 3 has N=1 -> skip the MXU: lane-axis multiply-reduce (VPU + XLU), f32.
    logits = jnp.sum(h2 * w3_ref[...], axis=-1, keepdims=True) + b3_ref[...]

    # Sigmoid via EUP exp (f32: saturates cleanly, no NaN).
    o_ref[...] = 1.0 / (1.0 + jnp.exp(-logits))


def _round_up(n, m):
    return (n + m - 1) // m * m


@jax.jit
def vae_forward(x_nchw, kernel_params):
    """x_nchw: (B, 1, 28, 28) float32 -> (B, 1) float32  (== torch VAE.forward)."""
    w1, b1, w2, b2, w3, b3 = kernel_params
    B = x_nchw.shape[0]

    # x.view(-1, 784) row-major, pad feature axis to 896, cast to bf16.
    x = x_nchw.reshape(B, IN_DIM)
    x = jnp.pad(x, ((0, 0), (0, IN_PAD - IN_DIM))).astype(jnp.bfloat16)

    # Batch tiling: weights VMEM-resident across tiles, x/out DMA pipelined.
    B8 = _round_up(B, 8)
    TB = min(256, B8)
    B_pad = _round_up(B, TB)
    if B_pad != B:
        x = jnp.pad(x, ((0, B_pad - B), (0, 0)))
    grid = (B_pad // TB,)

    flops = 2 * B_pad * (IN_PAD * H1_PAD + H1_PAD * H2_PAD + H2_PAD)
    bytes_accessed = (x.size * 2                       # bf16 activations in
                      + w1.size * 2 + w2.size * 2      # bf16 weights
                      + (b1.size + b2.size + w3.size + b3.size) * 4
                      + B_pad * 4)                     # f32 output

    out = pl.pallas_call(
        _vae_kernel,
        out_shape=jax.ShapeDtypeStruct((B_pad, 1), jnp.float32),
        grid=grid,
        in_specs=[
            pl.BlockSpec((TB, IN_PAD), lambda i: (i, 0)),       # x: tiled over batch
            pl.BlockSpec((IN_PAD, H1_PAD), lambda i: (0, 0)),   # w1: VMEM-resident
            pl.BlockSpec((1, H1_PAD), lambda i: (0, 0)),        # b1
            pl.BlockSpec((H1_PAD, H2_PAD), lambda i: (0, 0)),   # w2
            pl.BlockSpec((1, H2_PAD), lambda i: (0, 0)),        # b2
            pl.BlockSpec((1, H2_PAD), lambda i: (0, 0)),        # w3 as a (1, 256) row
            pl.BlockSpec((1, 1), lambda i: (0, 0)),             # b3
        ],
        out_specs=pl.BlockSpec((TB, 1), lambda i: (i, 0)),
        compiler_params=pltpu.CompilerParams(
            dimension_semantics=("parallel",),
            vmem_limit_bytes=32 * 1024 * 1024,
        ),
        cost_estimate=pl.CostEstimate(
            flops=flops, bytes_accessed=bytes_accessed, transcendentals=B_pad),
    )(x, w1, b1, w2, b2, w3, b3)

    return out[:B]


def init_params(key):
    """Unpadded f32 params mimicking PyTorch Linear default init (U[-1/sqrt(fan_in), +])."""
    ks = jax.random.split(key, 6)

    def linear(kw, kb, fan_in, fan_out):
        bound = 1.0 / (fan_in ** 0.5)
        w = jax.random.uniform(kw, (fan_in, fan_out), jnp.float32, -bound, bound)
        b = jax.random.uniform(kb, (1, fan_out), jnp.float32, -bound, bound)
        return w, b

    w1, b1 = linear(ks[0], ks[1], IN_DIM, H1_DIM)
    w2, b2 = linear(ks[2], ks[3], H1_DIM, H2_DIM)
    w3, b3 = linear(ks[4], ks[5], H2_DIM, 1)
    return (w1, b1, w2, b2, w3, b3)


def pack_params(params):
    """Zero-pad to lane-aligned shapes; weights -> bf16, biases / w3-row stay f32."""
    w1, b1, w2, b2, w3, b3 = params

    def pad2(a, r, c, dtype):
        return jnp.pad(a, ((0, r - a.shape[0]), (0, c - a.shape[1]))).astype(dtype)

    w1p = pad2(w1, IN_PAD, H1_PAD, jnp.bfloat16)
    b1p = pad2(b1, 1, H1_PAD, jnp.float32)
    w2p = pad2(w2, H1_PAD, H2_PAD, jnp.bfloat16)
    b2p = pad2(b2, 1, H2_PAD, jnp.float32)
    w3p = pad2(w3.T, 1, H2_PAD, jnp.float32)     # (200,1) -> (1,256) row for VPU reduce
    b3p = b3.reshape(1, 1).astype(jnp.float32)
    return (w1p, b1p, w2p, b2p, w3p, b3p)


def vae_reference(x_nchw, params):
    """Pure-JAX f32 reference matching the PyTorch module."""
    w1, b1, w2, b2, w3, b3 = params
    x = x_nchw.reshape(x_nchw.shape[0], IN_DIM)
    h1 = jax.nn.relu(x @ w1 + b1)
    h2 = jax.nn.relu(h1 @ w2 + b2)
    return jax.nn.sigmoid(h2 @ w3 + b3)


if __name__ == "__main__":
    key = jax.random.PRNGKey(0)
    k_x, k_p = jax.random.split(key)

    B = 8
    x = jax.random.normal(k_x, (B, 1, 28, 28), jnp.float32)   # NCHW, like MNIST
    params = init_params(k_p)
    kernel_params = pack_params(params)

    y = vae_forward(x, kernel_params)
    y = jax.block_until_ready(y)

    y_ref = vae_reference(x, params)
    assert y.shape == (B, 1), y.shape
    # Tolerance loosened because x / w1 / w2 are bf16 in the kernel (f32 accumulation).
    max_err = float(jnp.max(jnp.abs(y - y_ref)))
    assert max_err < 2e-2, max_err

    print("KERNEL_OK")
</pallas_src>

<mosaic_0001>
module attributes {stable_mosaic.version = 11 : i64} {
  func.func @_vae_kernel(%arg0: i32, %arg1: memref<8x896xbf16, #tpu.memory_space<vmem>>, %arg2: memref<896x1024xbf16, #tpu.memory_space<vmem>>, %arg3: memref<1x1024xf32, #tpu.memory_space<vmem>>, %arg4: memref<1024x256xbf16, #tpu.memory_space<vmem>>, %arg5: memref<1x256xf32, #tpu.memory_space<vmem>>, %arg6: memref<1x256xf32, #tpu.memory_space<vmem>>, %arg7: memref<1x1xf32, #tpu.memory_space<vmem>>, %arg8: memref<8x1xf32, #tpu.memory_space<vmem>>) attributes {dimension_semantics = [#tpu.dimension_semantics<parallel>], iteration_bounds = array<i64: 1>, scalar_prefetch = 0 : i64, scratch_operands = 0 : i64, tpu.core_type = #tpu.core_type<tc>, window_params = [{transform_indices = @transform_0, window_bounds = array<i64: 8, 896>}, {pipeline_mode = #tpu.pipeline_mode<synchronous>, transform_indices = @transform_1, window_bounds = array<i64: 896, 1024>}, {pipeline_mode = #tpu.pipeline_mode<synchronous>, transform_indices = @transform_2, window_bounds = array<i64: 1, 1024>}, {pipeline_mode = #tpu.pipeline_mode<synchronous>, transform_indices = @transform_3, window_bounds = array<i64: 1024, 256>}, {pipeline_mode = #tpu.pipeline_mode<synchronous>, transform_indices = @transform_4, window_bounds = array<i64: 1, 256>}, {pipeline_mode = #tpu.pipeline_mode<synchronous>, transform_indices = @transform_5, window_bounds = array<i64: 1, 256>}, {pipeline_mode = #tpu.pipeline_mode<synchronous>, transform_indices = @transform_6, window_bounds = array<i64: 1, 1>}, {transform_indices = @transform_7, window_bounds = array<i64: 8, 1>}]} {
    %c0 = arith.constant 0 : index
    %c0_0 = arith.constant 0 : index
    %0 = vector.load %arg1[%c0, %c0_0] : memref<8x896xbf16, #tpu.memory_space<vmem>>, vector<8x896xbf16>
    %c0_1 = arith.constant 0 : index
    %c0_2 = arith.constant 0 : index
    %1 = vector.load %arg2[%c0_1, %c0_2] : memref<896x1024xbf16, #tpu.memory_space<vmem>>, vector<896x1024xbf16>
    %cst = arith.constant dense<0.000000e+00> : vector<8x1024xf32>
    %2 = tpu.matmul %0, %1, %cst {dimension_numbers = #tpu.dot_dimension_numbers<[1], [0], [0], [1], [0, 0, 1, 1], [], []>} : vector<8x896xbf16>, vector<896x1024xbf16>, vector<8x1024xf32> -> vector<8x1024xf32>
    %c0_3 = arith.constant 0 : index
    %c0_4 = arith.constant 0 : index
    %3 = vector.load %arg3[%c0_3, %c0_4] : memref<1x1024xf32, #tpu.memory_space<vmem>>, vector<1x1024xf32>
    %4 = vector.broadcast %3 : vector<1x1024xf32> to vector<8x1024xf32>
    %5 = arith.addf %2, %4 : vector<8x1024xf32>
    %cst_5 = arith.constant 0.000000e+00 : f32
    %6 = vector.broadcast %cst_5 : f32 to vector<8x1024xf32>
    %7 = arith.maximumf %5, %6 : vector<8x1024xf32>
    %8 = arith.truncf %7 : vector<8x1024xf32> to vector<8x1024xbf16>
    %c0_6 = arith.constant 0 : index
    %c0_7 = arith.constant 0 : index
    %9 = vector.load %arg4[%c0_6, %c0_7] : memref<1024x256xbf16, #tpu.memory_space<vmem>>, vector<1024x256xbf16>
    %cst_8 = arith.constant dense<0.000000e+00> : vector<8x256xf32>
    %10 = tpu.matmul %8, %9, %cst_8 {dimension_numbers = #tpu.dot_dimension_numbers<[1], [0], [0], [1], [0, 0, 1, 1], [], []>} : vector<8x1024xbf16>, vector<1024x256xbf16>, vector<8x256xf32> -> vector<8x256xf32>
    %c0_9 = arith.constant 0 : index
    %c0_10 = arith.constant 0 : index
    %11 = vector.load %arg5[%c0_9, %c0_10] : memref<1x256xf32, #tpu.memory_space<vmem>>, vector<1x256xf32>
    %12 = vector.broadcast %11 : vector<1x256xf32> to vector<8x256xf32>
    %13 = arith.addf %10, %12 : vector<8x256xf32>
    %cst_11 = arith.constant 0.000000e+00 : f32
    %14 = vector.broadcast %cst_11 : f32 to vector<8x256xf32>
    %15 = arith.maximumf %13, %14 : vector<8x256xf32>
    %c0_12 = arith.constant 0 : index
    %c0_13 = arith.constant 0 : index
    %16 = vector.load %arg6[%c0_12, %c0_13] : memref<1x256xf32, #tpu.memory_space<vmem>>, vector<1x256xf32>
    %17 = vector.broadcast %16 : vector<1x256xf32> to vector<8x256xf32>
    %18 = arith.mulf %15, %17 : vector<8x256xf32>
    %cst_14 = arith.constant dense<0.000000e+00> : vector<8xf32>
    %19 = vector.multi_reduction <add>, %18, %cst_14 [1] : vector<8x256xf32> to vector<8xf32>
    %20 = vector.shape_cast %19 : vector<8xf32> to vector<8x1xf32>
    %c0_15 = arith.constant 0 : index
    %c0_16 = arith.constant 0 : index
    %21 = vector.load %arg7[%c0_15, %c0_16] : memref<1x1xf32, #tpu.memory_space<vmem>>, vector<1x1xf32>
    %22 = vector.broadcast %21 : vector<1x1xf32> to vector<8x1xf32>
    %23 = arith.addf %20, %22 : vector<8x1xf32>
    %cst_17 = arith.constant 0.000000e+00 : f32
    %24 = vector.broadcast %cst_17 : f32 to vector<8x1xf32>
    %25 = arith.subf %24, %23 : vector<8x1xf32>
    %26 = math.exp %25 : vector<8x1xf32>
    %cst_18 = arith.constant 1.000000e+00 : f32
    %27 = vector.broadcast %cst_18 : f32 to vector<8x1xf32>
    %28 = arith.addf %27, %26 : vector<8x1xf32>
    %cst_19 = arith.constant 1.000000e+00 : f32
    %29 = vector.broadcast %cst_19 : f32 to vector<8x1xf32>
    %30 = arith.divf %29, %28 : vector<8x1xf32>
    %c0_20 = arith.constant 0 : index
    %c0_21 = arith.constant 0 : index
    %31 = vector.load %arg8[%c0_20, %c0_21] : memref<8x1xf32, #tpu.memory_space<vmem>>, vector<8x1xf32>
    tpu.vector_store %arg8[%c0_20, %c0_21], %30 {strides = array<i32>} : memref<8x1xf32, #tpu.memory_space<vmem>>, vector<8x1xf32>,
    return
  }
  func.func @transform_0(%arg0: i32) -> (i32, i32) {
    %c0_i32 = arith.constant 0 : i32
    %c0_i32_0 = arith.constant 0 : i32
    return %arg0, %c0_i32 : i32, i32
  }
  func.func @transform_1(%arg0: i32) -> (i32, i32) {
    %c0_i32 = arith.constant 0 : i32
    %c0_i32_0 = arith.constant 0 : i32
    %c0_i32_1 = arith.constant 0 : i32
    return %c0_i32, %c0_i32_0 : i32, i32
  }
  func.func @transform_2(%arg0: i32) -> (i32, i32) {
    %c0_i32 = arith.constant 0 : i32
    %c0_i32_0 = arith.constant 0 : i32
    %c0_i32_1 = arith.constant 0 : i32
    return %c0_i32, %c0_i32_0 : i32, i32
  }
  func.func @transform_3(%arg0: i32) -> (i32, i32) {
    %c0_i32 = arith.constant 0 : i32
    %c0_i32_0 = arith.constant 0 : i32
    %c0_i32_1 = arith.constant 0 : i32
    return %c0_i32, %c0_i32_0 : i32, i32
  }
  func.func @transform_4(%arg0: i32) -> (i32, i32) {
    %c0_i32 = arith.constant 0 : i32
    %c0_i32_0 = arith.constant 0 : i32
    %c0_i32_1 = arith.constant 0 : i32
    return %c0_i32, %c0_i32_0 : i32, i32
  }
  func.func @transform_5(%arg0: i32) -> (i32, i32) {
    %c0_i32 = arith.constant 0 : i32
    %c0_i32_0 = arith.constant 0 : i32
    %c0_i32_1 = arith.constant 0 : i32
    return %c0_i32, %c0_i32_0 : i32, i32
  }
  func.func @transform_6(%arg0: i32) -> (i32, i32) {
    %c0_i32 = arith.constant 0 : i32
    %c0_i32_0 = arith.constant 0 : i32
    %c0_i32_1 = arith.constant 0 : i32
    return %c0_i32, %c0_i32_0 : i32, i32
  }
  func.func @transform_7(%arg0: i32) -> (i32, i32) {
    %c0_i32 = arith.constant 0 : i32
    %c0_i32_0 = arith.constant 0 : i32
    return %arg0, %c0_i32 : i32, i32
  }
}

</mosaic_0001>

<llo_original>
// kernel: vae_forward.1
$region0: #{vae_forward.1}
  #allocation0 [shape = 'u32[]', space=smem, size = 0x4, offset = 0x4, fixed_abs, tag = 'smem constant byte address 0x4 - core index']
  #allocation1 [shape = 'u32[144,128]{1,0:T(1,128)}', space=vmem, size = 0x12000, scoped, tag = 'internal scratch']
  #allocation2 [shape = 'f32[1,1]{1,0:T(1,128)S(1)}', space=vmem, size = 0x200, scoped, tag = 'scoped memory for vae_forward.1']
  %s0 = inlined_call_operand.vmem [shape: bf16[8,896], index: 0, kind: input, shape index: {}]
  %s1 = inlined_call_operand.hbm [shape: bf16[896,1024], index: 1, kind: input, shape index: {}]
  %s2 = inlined_call_operand.hbm [shape: f32[1,1024], index: 2, kind: input, shape index: {}]
  %s3 = inlined_call_operand.hbm [shape: bf16[1024,256], index: 3, kind: input, shape index: {}]
  %s4 = inlined_call_operand.hbm [shape: f32[1,256], index: 4, kind: input, shape index: {}]
  %s5 = inlined_call_operand.hbm [shape: f32[1,256], index: 5, kind: input, shape index: {}]
  %s6 = inlined_call_operand.<no memory space> [shape: f32[1,1], index: 6, kind: input, shape index: {}]
  %s7 = inlined_call_operand.vmem [shape: f32[8,1], index: 7, kind: output, shape index: {}]
  %s8 = sld [smem:[#allocation0]]
  $region58: #{vae_forward.1} parent=0
    _
  %s10 = ssub.s32 1, %s8
  %s11 = scalar_select 0, %s10, %s8
  %v12 = vstv %s6
  %13 = vst [vmem:[#allocation2] sm:$0x1] %v12
  $region1: #{vae_forward.1} parent=0
    #allocation3 [shape = 'u8[1835008]{0}', space=vmem, size = 0x1c0000, scoped, tag = 'input window, operand 1, single buffered']
    #allocation4 [shape = 's32[1]{0}', space=sflag, size = 0x4, scoped, tag = 'scoped memory for vae_forward.1']
    #allocation5 [shape = 'u8[4096]{0}', space=vmem, size = 0x1000, scoped, tag = 'input window, operand 2, single buffered']
    #allocation6 [shape = 's32[1]{0}', space=sflag, size = 0x4, scoped, tag = 'scoped memory for vae_forward.1']
    #allocation7 [shape = 'u8[524288]{0}', space=vmem, size = 0x80000, scoped, tag = 'input window, operand 3, single buffered']
    #allocation8 [shape = 'u8[1024]{0}', space=vmem, size = 0x400, scoped, tag = 'input window, operand 4, single buffered']
    #allocation9 [shape = 's32[1]{0}', space=sflag, size = 0x4, scoped, tag = 'scoped memory for vae_forward.1']
    #allocation10 [shape = 'u8[1024]{0}', space=vmem, size = 0x400, scoped, tag = 'input window, operand 5, single buffered']
    %14 = vsyncpa [#allocation4], 0
    %15 = vsyncpa [#allocation6], 0
    %16 = vsyncpa [#allocation9], 0
    // Predicated region
    $region2: #{vae_forward.1} parent=1 // pred_check
      _
    $region3: #{vae_forward.1} parent=1 // pred_check_branch
      %18 = sbr.rel (0) target = $region5
    $region4: #{vae_forward.1} parent=1 // pred_region
      _
    $region5: #{vae_forward.1} parent=1 // pred_fallthru
      _
    // Predicated region
    $region6: #{vae_forward.1} parent=1 // pred_check
      _
    $region7: #{vae_forward.1} parent=1 // pred_check_branch
      %20 = sbr.rel (0) target = $region9
    $region8: #{vae_forward.1} parent=1 // pred_region
      %s22 = ssub.s32 57344, 57344
      %23 = vsyncadd [#allocation4], %s22
      %s24 = sshll.u32 [#allocation3], 4
      %s25 = int_to_ptr.vmem [resolvable:$true] %s24
      %30 = dma.hbm_to_vmem [thread:$0]  %s1, 57344, %s25, [#allocation4], 512, 512, 32
    $region9: #{vae_forward.1} parent=1 // pred_fallthru
      _
    // Predicated region
    $region10: #{vae_forward.1} parent=1 // pred_check
      _
    $region11: #{vae_forward.1} parent=1 // pred_check_branch
      %32 = sbr.rel (0) target = $region13
    $region12: #{vae_forward.1} parent=1 // pred_region
      %s34 = ssub.s32 128, 128
      %35 = vsyncadd [#allocation6], %s34
      %s37 = sshll.u32 [#allocation5], 4
      %s38 = int_to_ptr.vmem [resolvable:$true] %s37
      %40 = dma.hbm_to_vmem [thread:$0]  %s2, 128, %s38, [#allocation6]
    $region13: #{vae_forward.1} parent=1 // pred_fallthru
      _
    // Predicated region
    $region14: #{vae_forward.1} parent=1 // pred_check
      _
    $region15: #{vae_forward.1} parent=1 // pred_check_branch
      %42 = sbr.rel (0) target = $region17
    $region16: #{vae_forward.1} parent=1 // pred_region
      %s44 = ssub.s32 16384, 16384
      %45 = vsyncadd [#allocation6], %s44
      %s46 = sshll.u32 [#allocation7], 4
      %s47 = int_to_ptr.vmem [resolvable:$true] %s46
      %52 = dma.hbm_to_vmem [thread:$0]  %s3, 16384, %s47, [#allocation6], 128, 128, 8
    $region17: #{vae_forward.1} parent=1 // pred_fallthru
      _
    // Predicated region
    $region18: #{vae_forward.1} parent=1 // pred_check
      _
    $region19: #{vae_forward.1} parent=1 // pred_check_branch
      %54 = sbr.rel (0) target = $region21
    $region20: #{vae_forward.1} parent=1 // pred_region
      %s56 = ssub.s32 32, 32
      %57 = vsyncadd [#allocation9], %s56
      %s59 = sshll.u32 [#allocation8], 4
      %s60 = int_to_ptr.vmem [resolvable:$true] %s59
      %62 = dma.hbm_to_vmem [thread:$0]  %s4, 32, %s60, [#allocation9]
    $region21: #{vae_forward.1} parent=1 // pred_fallthru
      _
    // Predicated region
    $region22: #{vae_forward.1} parent=1 // pred_check
      _
    $region23: #{vae_forward.1} parent=1 // pred_check_branch
      %64 = sbr.rel (0) target = $region25
    $region24: #{vae_forward.1} parent=1 // pred_region
      %s66 = ssub.s32 32, 32
      %67 = vsyncadd [#allocation9], %s66
      %s69 = sshll.u32 [#allocation10], 4
      %s70 = int_to_ptr.vmem [resolvable:$true] %s69
      %72 = dma.hbm_to_vmem [thread:$0]  %s5, 32, %s70, [#allocation9]
    $region25: #{vae_forward.1} parent=1 // pred_fallthru
      _
    // Predicated region
    $region26: #{vae_forward.1} parent=1 // pred_check
      _
    $region27: #{vae_forward.1} parent=1 // pred_check_branch
      %74 = sbr.rel (0) target = $region29
    $region28: #{vae_forward.1} parent=1 // pred_region
      _
    $region29: #{vae_forward.1} parent=1 // pred_fallthru
      _
    // Predicated region
    $region30: #{vae_forward.1} parent=1 // pred_check
      _
    $region31: #{vae_forward.1} parent=1 // pred_check_branch
      %76 = sbr.rel (0) target = $region33
    $region32: #{vae_forward.1} parent=1 // pred_region
      %77 = dma.done [#allocation4], 57344
    $region33: #{vae_forward.1} parent=1 // pred_fallthru
      _
    // Predicated region
    $region34: #{vae_forward.1} parent=1 // pred_check
      _
    $region35: #{vae_forward.1} parent=1 // pred_check_branch
      %79 = sbr.rel (0) target = $region37
    $region36: #{vae_forward.1} parent=1 // pred_region
      %80 = dma.done [#allocation6], 128
    $region37: #{vae_forward.1} parent=1 // pred_fallthru
      _
    // Predicated region
    $region38: #{vae_forward.1} parent=1 // pred_check
      _
    $region39: #{vae_forward.1} parent=1 // pred_check_branch
      %82 = sbr.rel (0) target = $region41
    $region40: #{vae_forward.1} parent=1 // pred_region
      %83 = dma.done [#allocation6], 16384
    $region41: #{vae_forward.1} parent=1 // pred_fallthru
      _
    // Predicated region
    $region42: #{vae_forward.1} parent=1 // pred_check
      _
    $region43: #{vae_forward.1} parent=1 // pred_check_branch
      %85 = sbr.rel (0) target = $region45
    $region44: #{vae_forward.1} parent=1 // pred_region
      %86 = dma.done [#allocation9], 32
    $region45: #{vae_forward.1} parent=1 // pred_fallthru
      _
    // Predicated region
    $region46: #{vae_forward.1} parent=1 // pred_check
      _
    $region47: #{vae_forward.1} parent=1 // pred_check_branch
      %88 = sbr.rel (0) target = $region49
    $region48: #{vae_forward.1} parent=1 // pred_region
      %89 = dma.done [#allocation9], 32
    $region49: #{vae_forward.1} parent=1 // pred_fallthru
      _
    %v91 = vld [vmem:[%s0] sm:$0xff]
    %v92 = vld [vmem:[%s0 + $0x8] sm:$0xff]
    %v93 = vld [vmem:[%s0 + $0x10] sm:$0xff]
    %v94 = vld [vmem:[%s0 + $0x18] sm:$0xf]
    %v95 = vld [vmem:[#allocation3] sm:$0xff]
    %v96 = vld [vmem:[#allocation3 + $0x8] sm:$0xff]
    %v97 = vld [vmem:[#allocation3 + $0x10] sm:$0xff]
    %v98 = vld [vmem:[#allocation3 + $0x18] sm:$0xff]
    %v99 = vld [vmem:[#allocation3 + $0x20] sm:$0xff]
    %v100 = vld [vmem:[#allocation3 + $0x28] sm:$0xff]
    %v101 = vld [vmem:[#allocation3 + $0x30] sm:$0xff]
    %v102 = vld [vmem:[#allocation3 + $0x38] sm:$0xff]
    %v103 = vld [vmem:[#allocation3 + $0x40] sm:$0xff]
    %v104 = vld [vmem:[#allocation3 + $0x48] sm:$0xff]
    %v105 = vld [vmem:[#allocation3 + $0x50] sm:$0xff]
    %v106 = vld [vmem:[#allocation3 + $0x58] sm:$0xff]
    %v107 = vld [vmem:[#allocation3 + $0x60] sm:$0xff]
    %v108 = vld [vmem:[#allocation3 + $0x68] sm:$0xff]
    %v109 = vld [vmem:[#allocation3 + $0x70] sm:$0xff]
    %v110 = vld [vmem:[#allocation3 + $0x78] sm:$0xff]
    %v111 = vld [vmem:[#allocation3 + $0x80] sm:$0xff]
    %v112 = vld [vmem:[#allocation3 + $0x88] sm:$0xff]
    %v113 = vld [vmem:[#allocation3 + $0x90] sm:$0xff]
    %v114 = vld [vmem:[#allocation3 + $0x98] sm:$0xff]
    %v115 = vld [vmem:[#allocation3 + $0xa0] sm:$0xff]
    %v116 = vld [vmem:[#allocation3 + $0xa8] sm:$0xff]
    %v117 = vld [vmem:[#allocation3 + $0xb0] sm:$0xff]
    %v118 = vld [vmem:[#allocation3 + $0xb8] sm:$0xff]
    %v119 = vld [vmem:[#allocation3 + $0xc0] sm:$0xff]
    %v120 = vld [vmem:[#allocation3 + $0xc8] sm:$0xff]
    %v121 = vld [vmem:[#allocation3 + $0xd0] sm:$0xff]
    %v122 = vld [vmem:[#allocation3 + $0xd8] sm:$0xff]
    %v123 = vld [vmem:[#allocation3 + $0xe0] sm:$0xff]
    %v124 = vld [vmem:[#allocation3 + $0xe8] sm:$0xff]
    %v125 = vld [vmem:[#allocation3 + $0xf0] sm:$0xff]
    %v126 = vld [vmem:[#allocation3 + $0xf8] sm:$0xff]
    %v127 = vld [vmem:[#allocation3 + $0x100] sm:$0xff]
    %v128 = vld [vmem:[#allocation3 + $0x108] sm:$0xff]
    %v129 = vld [vmem:[#allocation3 + $0x110] sm:$0xff]
    %v130 = vld [vmem:[#allocation3 + $0x118] sm:$0xff]
    %v131 = vld [vmem:[#allocation3 + $0x120] sm:$0xff]
    %v132 = vld [vmem:[#allocation3 + $0x128] sm:$0xff]
    %v133 = vld [vmem:[#allocation3 + $0x130] sm:$0xff]
    %v134 = vld [vmem:[#allocation3 + $0x138] sm:$0xff]
    %v135 = vld [vmem:[#allocation3 + $0x140] sm:$0xff]
    %v136 = vld [vmem:[#allocation3 + $0x148] sm:$0xff]
    %v137 = vld [vmem:[#allocation3 + $0x150] sm:$0xff]
    %v138 = vld [vmem:[#allocation3 + $0x158] sm:$0xff]
    %v139 = vld [vmem:[#allocation3 + $0x160] sm:$0xff]
    %v140 = vld [vmem:[#allocation3 + $0x168] sm:$0xff]
    %v141 = vld [vmem:[#allocation3 + $0x170] sm:$0xff]
    %v142 = vld [vmem:[#allocation3 + $0x178] sm:$0xff]
    %v143 = vld [vmem:[#allocation3 + $0x180] sm:$0xff]
    %v144 = vld [vmem:[#allocation3 + $0x188] sm:$0xff]
    %v145 = vld [vmem:[#allocation3 + $0x190] sm:$0xff]
    %v146 = vld [vmem:[#allocation3 + $0x198] sm:$0xff]
    %v147 = vld [vmem:[#allocation3 + $0x1a0] sm:$0xff]
    %v148 = vld [vmem:[#allocation3 + $0x1a8] sm:$0xff]
    %v149 = vld [vmem:[#allocation3 + $0x1b0] sm:$0xff]
    %v150 = vld [vmem:[#allocation3 + $0x1b8] sm:$0xff]
    %v151 = vld [vmem:[#allocation3 + $0x1c0] sm:$0xff]
    %v152 = vld [vmem:[#allocation3 + $0x1c8] sm:$0xff]
    %v153 = vld [vmem:[#allocation3 + $0x1d0] sm:$0xff]
    %v154 = vld [vmem:[#allocation3 + $0x1d8] sm:$0xff]
    %v155 = vld [vmem:[#allocation3 + $0x1e0] sm:$0xff]
    %v156 = vld [vmem:[#allocation3 + $0x1e8] sm:$0xff]
    %v157 = vld [vmem:[#allocation3 + $0x1f0] sm:$0xff]
    %v158 = vld [vmem:[#allocation3 + $0x1f8] sm:$0xff]
    %v159 = vld [vmem:[#allocation3 + $0x200] sm:$0xff]
    %v160 = vld [vmem:[#allocation3 + $0x208] sm:$0xff]
    %v161 = vld [vmem:[#allocation3 + $0x210] sm:$0xff]
    %v162 = vld [vmem:[#allocation3 + $0x218] sm:$0xff]
    %v163 = vld [vmem:[#allocation3 + $0x220] sm:$0xff]
    %v164 = vld [vmem:[#allocation3 + $0x228] sm:$0xff]
    %v165 = vld [vmem:[#allocation3 + $0x230] sm:$0xff]
    %v166 = vld [vmem:[#allocation3 + $0x238] sm:$0xff]
    %v167 = vld [vmem:[#allocation3 + $0x240] sm:$0xff]
    %v168 = vld [vmem:[#allocation3 + $0x248] sm:$0xff]
    %v169 = vld [vmem:[#allocation3 + $0x250] sm:$0xff]
    %v170 = vld [vmem:[#allocation3 + $0x258] sm:$0xff]
    %v171 = vld [vmem:[#allocation3 + $0x260] sm:$0xff]
    %v172 = vld [vmem:[#allocation3 + $0x268] sm:$0xff]
    %v173 = vld [vmem:[#allocation3 + $0x270] sm:$0xff]
    %v174 = vld [vmem:[#allocation3 + $0x278] sm:$0xff]
    %v175 = vld [vmem:[#allocation3 + $0x280] sm:$0xff]
    %v176 = vld [vmem:[#allocation3 + $0x288] sm:$0xff]
    %v177 = vld [vmem:[#allocation3 + $0x290] sm:$0xff]
    %v178 = vld [vmem:[#allocation3 + $0x298] sm:$0xff]
    %v179 = vld [vmem:[#allocation3 + $0x2a0] sm:$0xff]
    %v180 = vld [vmem:[#allocation3 + $0x2a8] sm:$0xff]
    %v181 = vld [vmem:[#allocation3 + $0x2b0] sm:$0xff]
    %v182 = vld [vmem:[#allocation3 + $0x2b8] sm:$0xff]
    %v183 = vld [vmem:[#allocation3 + $0x2c0] sm:$0xff]
    %v184 = vld [vmem:[#allocation3 + $0x2c8] sm:$0xff]
    %v185 = vld [vmem:[#allocation3 + $0x2d0] sm:$0xff]
    %v186 = vld [vmem:[#allocation3 + $0x2d8] sm:$0xff]
    %v187 = vld [vmem:[#allocation3 + $0x2e0] sm:$0xff]
    %v188 = vld [vmem:[#allocation3 + $0x2e8] sm:$0xff]
    %v189 = vld [vmem:[#allocation3 + $0x2f0] sm:$0xff]
    %v190 = vld [vmem:[#allocation3 + $0x2f8] sm:$0xff]
    %v191 = vld [vmem:[#allocation3 + $0x300] sm:$0xff]
    %v192 = vld [vmem:[#allocation3 + $0x308] sm:$0xff]
    %v193 = vld [vmem:[#allocation3 + $0x310] sm:$0xff]
    %v194 = vld [vmem:[#allocation3 + $0x318] sm:$0xff]
    %v195 = vld [vmem:[#allocation3 + $0x320] sm:$0xff]
    %v196 = vld [vmem:[#allocation3 + $0x328] sm:$0xff]
    %v197 = vld [vmem:[#allocation3 + $0x330] sm:$0xff]
    %v198 = vld [vmem:[#allocation3 + $0x338] sm:$0xff]
    %v199 = vld [vmem:[#allocation3 + $0x340] sm:$0xff]
    %v200 = vld [vmem:[#allocation3 + $0x348] sm:$0xff]
    %v201 = vld [vmem:[#allocation3 + $0x350] sm:$0xff]
    %v202 = vld [vmem:[#allocation3 + $0x358] sm:$0xff]
    %v203 = vld [vmem:[#allocation3 + $0x360] sm:$0xff]
    %v204 = vld [vmem:[#allocation3 + $0x368] sm:$0xff]
    %v205 = vld [vmem:[#allocation3 + $0x370] sm:$0xff]
    %v206 = vld [vmem:[#allocation3 + $0x378] sm:$0xff]
    %v207 = vld [vmem:[#allocation3 + $0x380] sm:$0xff]
    %v208 = vld [vmem:[#allocation3 + $0x388] sm:$0xff]
    %v209 = vld [vmem:[#allocation3 + $0x390] sm:$0xff]
    %v210 = vld [vmem:[#allocation3 + $0x398] sm:$0xff]
    %v211 = vld [vmem:[#allocation3 + $0x3a0] sm:$0xff]
    %v212 = vld [vmem:[#allocation3 + $0x3a8] sm:$0xff]
    %v213 = vld [vmem:[#allocation3 + $0x3b0] sm:$0xff]
    %v214 = vld [vmem:[#allocation3 + $0x3b8] sm:$0xff]
    %v215 = vld [vmem:[#allocation3 + $0x3c0] sm:$0xff]
    %v216 = vld [vmem:[#allocation3 + $0x3c8] sm:$0xff]
    %v217 = vld [vmem:[#allocation3 + $0x3d0] sm:$0xff]
    %v218 = vld [vmem:[#allocation3 + $0x3d8] sm:$0xff]
    %v219 = vld [vmem:[#allocation3 + $0x3e0] sm:$0xff]
    %v220 = vld [vmem:[#allocation3 + $0x3e8] sm:$0xff]
    %v221 = vld [vmem:[#allocation3 + $0x3f0] sm:$0xff]
    %v222 = vld [vmem:[#allocation3 + $0x3f8] sm:$0xff]
    %v223 = vld [vmem:[#allocation3 + $0x400] sm:$0xff]
    %v224 = vld [vmem:[#allocation3 + $0x408] sm:$0xff]
    %v225 = vld [vmem:[#allocation3 + $0x410] sm:$0xff]
    %v226 = vld [vmem:[#allocation3 + $0x418] sm:$0xff]
    %v227 = vld [vmem:[#allocation3 + $0x420] sm:$0xff]
    %v228 = vld [vmem:[#allocation3 + $0x428] sm:$0xff]
    %v229 = vld [vmem:[#allocation3 + $0x430] sm:$0xff]
    %v230 = vld [vmem:[#allocation3 + $0x438] sm:$0xff]
    %v231 = vld [vmem:[#allocation3 + $0x440] sm:$0xff]
    %v232 = vld [vmem:[#allocation3 + $0x448] sm:$0xff]
    %v233 = vld [vmem:[#allocation3 + $0x450] sm:$0xff]
    %v234 = vld [vmem:[#allocation3 + $0x458] sm:$0xff]
    %v235 = vld [vmem:[#allocation3 + $0x460] sm:$0xff]
    %v236 = vld [vmem:[#allocation3 + $0x468] sm:$0xff]
    %v237 = vld [vmem:[#allocation3 + $0x470] sm:$0xff]
    %v238 = vld [vmem:[#allocation3 + $0x478] sm:$0xff]
    %v239 = vld [vmem:[#allocation3 + $0x480] sm:$0xff]
    %v240 = vld [vmem:[#allocation3 + $0x488] sm:$0xff]
    %v241 = vld [vmem:[#allocation3 + $0x490] sm:$0xff]
    %v242 = vld [vmem:[#allocation3 + $0x498] sm:$0xff]
    %v243 = vld [vmem:[#allocation3 + $0x4a0] sm:$0xff]
    %v244 = vld [vmem:[#allocation3 + $0x4a8] sm:$0xff]
    %v245 = vld [vmem:[#allocation3 + $0x4b0] sm:$0xff]
    %v246 = vld [vmem:[#allocation3 + $0x4b8] sm:$0xff]
    %v247 = vld [vmem:[#allocation3 + $0x4c0] sm:$0xff]
    %v248 = vld [vmem:[#allocation3 + $0x4c8] sm:$0xff]
    %v249 = vld [vmem:[#allocation3 + $0x4d0] sm:$0xff]
    %v250 = vld [vmem:[#allocation3 + $0x4d8] sm:$0xff]
    %v251 = vld [vmem:[#allocation3 + $0x4e0] sm:$0xff]
    %v252 = vld [vmem:[#allocation3 + $0x4e8] sm:$0xff]
    %v253 = vld [vmem:[#allocation3 + $0x4f0] sm:$0xff]
    %v254 = vld [vmem:[#allocation3 + $0x4f8] sm:$0xff]
    %v255 = vld [vmem:[#allocation3 + $0x500] sm:$0xff]
    %v256 = vld [vmem:[#allocation3 + $0x508] sm:$0xff]
    %v257 = vld [vmem:[#allocation3 + $0x510] sm:$0xff]
    %v258 = vld [vmem:[#allocation3 + $0x518] sm:$0xff]
    %v259 = vld [vmem:[#allocation3 + $0x520] sm:$0xff]
    %v260 = vld [vmem:[#allocation3 + $0x528] sm:$0xff]
    %v261 = vld [vmem:[#allocation3 + $0x530] sm:$0xff]
    %v262 = vld [vmem:[#allocation3 + $0x538] sm:$0xff]
    %v263 = vld [vmem:[#allocation3 + $0x540] sm:$0xff]
    %v264 = vld [vmem:[#allocation3 + $0x548] sm:$0xff]
    %v265 = vld [vmem:[#allocation3 + $0x550] sm:$0xff]
    %v266 = vld [vmem:[#allocation3 + $0x558] sm:$0xff]
    %v267 = vld [vmem:[#allocation3 + $0x560] sm:$0xff]
    %v268 = vld [vmem:[#allocation3 + $0x568] sm:$0xff]
    %v269 = vld [vmem:[#allocation3 + $0x570] sm:$0xff]
    %v270 = vld [vmem:[#allocation3 + $0x578] sm:$0xff]
    %v271 = vld [vmem:[#allocation3 + $0x580] sm:$0xff]
    %v272 = vld [vmem:[#allocation3 + $0x588] sm:$0xff]
    %v273 = vld [vmem:[#allocation3 + $0x590] sm:$0xff]
    %v274 = vld [vmem:[#allocation3 + $0x598] sm:$0xff]
    %v275 = vld [vmem:[#allocation3 + $0x5a0] sm:$0xff]
    %v276 = vld [vmem:[#allocation3 + $0x5a8] sm:$0xff]
    %v277 = vld [vmem:[#allocation3 + $0x5b0] sm:$0xff]
    %v278 = vld [vmem:[#allocation3 + $0x5b8] sm:$0xff]
    %v279 = vld [vmem:[#allocation3 + $0x5c0] sm:$0xff]
    %v280 = vld [vmem:[#allocation3 + $0x5c8] sm:$0xff]
    %v281 = vld [vmem:[#allocation3 + $0x5d0] sm:$0xff]
    %v282 = vld [vmem:[#allocation3 + $0x5d8] sm:$0xff]
    %v283 = vld [vmem:[#allocation3 + $0x5e0] sm:$0xff]
    %v284 = vld [vmem:[#allocation3 + $0x5e8] sm:$0xff]
    %v285 = vld [vmem:[#allocation3 + $0x5f0] sm:$0xff]
    %v286 = vld [vmem:[#allocation3 + $0x5f8] sm:$0xff]
    %v287 = vld [vmem:[#allocation3 + $0x600] sm:$0xff]
    %v288 = vld [vmem:[#allocation3 + $0x608] sm:$0xff]
    %v289 = vld [vmem:[#allocation3 + $0x610] sm:$0xff]
    %v290 = vld [vmem:[#allocation3 + $0x618] sm:$0xff]
    %v291 = vld [vmem:[#allocation3 + $0x620] sm:$0xff]
    %v292 = vld [vmem:[#allocation3 + $0x628] sm:$0xff]
    %v293 = vld [vmem:[#allocation3 + $0x630] sm:$0xff]
    %v294 = vld [vmem:[#allocation3 + $0x638] sm:$0xff]
    %v295 = vld [vmem:[#allocation3 + $0x640] sm:$0xff]
    %v296 = vld [vmem:[#allocation3 + $0x648] sm:$0xff]
    %v297 = vld [vmem:[#allocation3 + $0x650] sm:$0xff]
    %v298 = vld [vmem:[#allocation3 + $0x658] sm:$0xff]
    %v299 = vld [vmem:[#allocation3 + $0x660] sm:$0xff]
    %v300 = vld [vmem:[#allocation3 + $0x668] sm:$0xff]
    %v301 = vld [vmem:[#allocation3 + $0x670] sm:$0xff]
    %v302 = vld [vmem:[#allocation3 + $0x678] sm:$0xff]
    %v303 = vld [vmem:[#allocation3 + $0x680] sm:$0xff]
    %v304 = vld [vmem:[#allocation3 + $0x688] sm:$0xff]
    %v305 = vld [vmem:[#allocation3 + $0x690] sm:$0xff]
    %v306 = vld [vmem:[#allocation3 + $0x698] sm:$0xff]
    %v307 = vld [vmem:[#allocation3 + $0x6a0] sm:$0xff]
    %v308 = vld [vmem:[#allocation3 + $0x6a8] sm:$0xff]
    %v309 = vld [vmem:[#allocation3 + $0x6b0] sm:$0xff]
    %v310 = vld [vmem:[#allocation3 + $0x6b8] sm:$0xff]
    %v311 = vld [vmem:[#allocation3 + $0x6c0] sm:$0xff]
    %v312 = vld [vmem:[#allocation3 + $0x6c8] sm:$0xff]
    %v313 = vld [vmem:[#allocation3 + $0x6d0] sm:$0xff]
    %v314 = vld [vmem:[#allocation3 + $0x6d8] sm:$0xff]
    %v315 = vld [vmem:[#allocation3 + $0x6e0] sm:$0xff]
    %v316 = vld [vmem:[#allocation3 + $0x6e8] sm:$0xff]
    %v317 = vld [vmem:[#allocation3 + $0x6f0] sm:$0xff]
    %v318 = vld [vmem:[#allocation3 + $0x6f8] sm:$0xff]
    %v319 = vld [vmem:[#allocation3 + $0x700] sm:$0xff]
    %v320 = vld [vmem:[#allocation3 + $0x708] sm:$0xff]
    %v321 = vld [vmem:[#allocation3 + $0x710] sm:$0xff]
    %v322 = vld [vmem:[#allocation3 + $0x718] sm:$0xff]
    %v323 = vld [vmem:[#allocation3 + $0x720] sm:$0xff]
    %v324 = vld [vmem:[#allocation3 + $0x728] sm:$0xff]
    %v325 = vld [vmem:[#allocation3 + $0x730] sm:$0xff]
    %v326 = vld [vmem:[#allocation3 + $0x738] sm:$0xff]
    %v327 = vld [vmem:[#allocation3 + $0x740] sm:$0xff]
    %v328 = vld [vmem:[#allocation3 + $0x748] sm:$0xff]
    %v329 = vld [vmem:[#allocation3 + $0x750] sm:$0xff]
    %v330 = vld [vmem:[#allocation3 + $0x758] sm:$0xff]
    %v331 = vld [vmem:[#allocation3 + $0x760] sm:$0xff]
    %v332 = vld [vmem:[#allocation3 + $0x768] sm:$0xff]
    %v333 = vld [vmem:[#allocation3 + $0x770] sm:$0xff]
    %v334 = vld [vmem:[#allocation3 + $0x778] sm:$0xff]
    %v335 = vld [vmem:[#allocation3 + $0x780] sm:$0xff]
    %v336 = vld [vmem:[#allocation3 + $0x788] sm:$0xff]
    %v337 = vld [vmem:[#allocation3 + $0x790] sm:$0xff]
    %v338 = vld [vmem:[#allocation3 + $0x798] sm:$0xff]
    %v339 = vld [vmem:[#allocation3 + $0x7a0] sm:$0xff]
    %v340 = vld [vmem:[#allocation3 + $0x7a8] sm:$0xff]
    %v341 = vld [vmem:[#allocation3 + $0x7b0] sm:$0xff]
    %v342 = vld [vmem:[#allocation3 + $0x7b8] sm:$0xff]
    %v343 = vld [vmem:[#allocation3 + $0x7c0] sm:$0xff]
    %v344 = vld [vmem:[#allocation3 + $0x7c8] sm:$0xff]
    %v345 = vld [vmem:[#allocation3 + $0x7d0] sm:$0xff]
    %v346 = vld [vmem:[#allocation3 + $0x7d8] sm:$0xff]
    %v347 = vld [vmem:[#allocation3 + $0x7e0] sm:$0xff]
    %v348 = vld [vmem:[#allocation3 + $0x7e8] sm:$0xff]
    %v349 = vld [vmem:[#allocation3 + $0x7f0] sm:$0xff]
    %v350 = vld [vmem:[#allocation3 + $0x7f8] sm:$0xff]
    %v351 = vld [vmem:[#allocation3 + $0x800] sm:$0xff]
    %v352 = vld [vmem:[#allocation3 + $0x808] sm:$0xff]
    %v353 = vld [vmem:[#allocation3 + $0x810] sm:$0xff]
    %v354 = vld [vmem:[#allocation3 + $0x818] sm:$0xff]
    %v355 = vld [vmem:[#allocation3 + $0x820] sm:$0xff]
    %v356 = vld [vmem:[#allocation3 + $0x828] sm:$0xff]
    %v357 = vld [vmem:[#allocation3 + $0x830] sm:$0xff]
    %v358 = vld [vmem:[#allocation3 + $0x838] sm:$0xff]
    %v359 = vld [vmem:[#allocation3 + $0x840] sm:$0xff]
    %v360 = vld [vmem:[#allocation3 + $0x848] sm:$0xff]
    %v361 = vld [vmem:[#allocation3 + $0x850] sm:$0xff]
    %v362 = vld [vmem:[#allocation3 + $0x858] sm:$0xff]
    %v363 = vld [vmem:[#allocation3 + $0x860] sm:$0xff]
    %v364 = vld [vmem:[#allocation3 + $0x868] sm:$0xff]
    %v365 = vld [vmem:[#allocation3 + $0x870] sm:$0xff]
    %v366 = vld [vmem:[#allocation3 + $0x878] sm:$0xff]
    %v367 = vld [vmem:[#allocation3 + $0x880] sm:$0xff]
    %v368 = vld [vmem:[#allocation3 + $0x888] sm:$0xff]
    %v369 = vld [vmem:[#allocation3 + $0x890] sm:$0xff]
    %v370 = vld [vmem:[#allocation3 + $0x898] sm:$0xff]
    %v371 = vld [vmem:[#allocation3 + $0x8a0] sm:$0xff]
    %v372 = vld [vmem:[#allocation3 + $0x8a8] sm:$0xff]
    %v373 = vld [vmem:[#allocation3 + $0x8b0] sm:$0xff]
    %v374 = vld [vmem:[#allocation3 + $0x8b8] sm:$0xff]
    %v375 = vld [vmem:[#allocation3 + $0x8c0] sm:$0xff]
    %v376 = vld [vmem:[#allocation3 + $0x8c8] sm:$0xff]
    %v377 = vld [vmem:[#allocation3 + $0x8d0] sm:$0xff]
    %v378 = vld [vmem:[#allocation3 + $0x8d8] sm:$0xff]
    %v379 = vld [vmem:[#allocation3 + $0x8e0] sm:$0xff]
    %v380 = vld [vmem:[#allocation3 + $0x8e8] sm:$0xff]
    %v381 = vld [vmem:[#allocation3 + $0x8f0] sm:$0xff]
    %v382 = vld [vmem:[#allocation3 + $0x8f8] sm:$0xff]
    %v383 = vld [vmem:[#allocation3 + $0x900] sm:$0xff]
    %v384 = vld [vmem:[#allocation3 + $0x908] sm:$0xff]
    %v385 = vld [vmem:[#allocation3 + $0x910] sm:$0xff]
    %v386 = vld [vmem:[#allocation3 + $0x918] sm:$0xff]
    %v387 = vld [vmem:[#allocation3 + $0x920] sm:$0xff]
    %v388 = vld [vmem:[#allocation3 + $0x928] sm:$0xff]
    %v389 = vld [vmem:[#allocation3 + $0x930] sm:$0xff]
    %v390 = vld [vmem:[#allocation3 + $0x938] sm:$0xff]
    %v391 = vld [vmem:[#allocation3 + $0x940] sm:$0xff]
    %v392 = vld [vmem:[#allocation3 + $0x948] sm:$0xff]
    %v393 = vld [vmem:[#allocation3 + $0x950] sm:$0xff]
    %v394 = vld [vmem:[#allocation3 + $0x958] sm:$0xff]
    %v395 = vld [vmem:[#allocation3 + $0x960] sm:$0xff]
    %v396 = vld [vmem:[#allocation3 + $0x968] sm:$0xff]
    %v397 = vld [vmem:[#allocation3 + $0x970] sm:$0xff]
    %v398 = vld [vmem:[#allocation3 + $0x978] sm:$0xff]
    %v399 = vld [vmem:[#allocation3 + $0x980] sm:$0xff]
    %v400 = vld [vmem:[#allocation3 + $0x988] sm:$0xff]
    %v401 = vld [vmem:[#allocation3 + $0x990] sm:$0xff]
    %v402 = vld [vmem:[#allocation3 + $0x998] sm:$0xff]
    %v403 = vld [vmem:[#allocation3 + $0x9a0] sm:$0xff]
    %v404 = vld [vmem:[#allocation3 + $0x9a8] sm:$0xff]
    %v405 = vld [vmem:[#allocation3 + $0x9b0] sm:$0xff]
    %v406 = vld [vmem:[#allocation3 + $0x9b8] sm:$0xff]
    %v407 = vld [vmem:[#allocation3 + $0x9c0] sm:$0xff]
    %v408 = vld [vmem:[#allocation3 + $0x9c8] sm:$0xff]
    %v409 = vld [vmem:[#allocation3 + $0x9d0] sm:$0xff]
    %v410 = vld [vmem:[#allocation3 + $0x9d8] sm:$0xff]
    %v411 = vld [vmem:[#allocation3 + $0x9e0] sm:$0xff]
    %v412 = vld [vmem:[#allocation3 + $0x9e8] sm:$0xff]
    %v413 = vld [vmem:[#allocation3 + $0x9f0] sm:$0xff]
    %v414 = vld [vmem:[#allocation3 + $0x9f8] sm:$0xff]
    %v415 = vld [vmem:[#allocation3 + $0xa00] sm:$0xff]
    %v416 = vld [vmem:[#allocation3 + $0xa08] sm:$0xff]
    %v417 = vld [vmem:[#allocation3 + $0xa10] sm:$0xff]
    %v418 = vld [vmem:[#allocation3 + $0xa18] sm:$0xff]
    %v419 = vld [vmem:[#allocation3 + $0xa20] sm:$0xff]
    %v420 = vld [vmem:[#allocation3 + $0xa28] sm:$0xff]
    %v421 = vld [vmem:[#allocation3 + $0xa30] sm:$0xff]
    %v422 = vld [vmem:[#allocation3 + $0xa38] sm:$0xff]
    %v423 = vld [vmem:[#allocation3 + $0xa40] sm:$0xff]
    %v424 = vld [vmem:[#allocation3 + $0xa48] sm:$0xff]
    %v425 = vld [vmem:[#allocation3 + $0xa50] sm:$0xff]
    %v426 = vld [vmem:[#allocation3 + $0xa58] sm:$0xff]
    %v427 = vld [vmem:[#allocation3 + $0xa60] sm:$0xff]
    %v428 = vld [vmem:[#allocation3 + $0xa68] sm:$0xff]
    %v429 = vld [vmem:[#allocation3 + $0xa70] sm:$0xff]
    %v430 = vld [vmem:[#allocation3 + $0xa78] sm:$0xff]
    %v431 = vld [vmem:[#allocation3 + $0xa80] sm:$0xff]
    %v432 = vld [vmem:[#allocation3 + $0xa88] sm:$0xff]
    %v433 = vld [vmem:[#allocation3 + $0xa90] sm:$0xff]
    %v434 = vld [vmem:[#allocation3 + $0xa98] sm:$0xff]
    %v435 = vld [vmem:[#allocation3 + $0xaa0] sm:$0xff]
    %v436 = vld [vmem:[#allocation3 + $0xaa8] sm:$0xff]
    %v437 = vld [vmem:[#allocation3 + $0xab0] sm:$0xff]
    %v438 = vld [vmem:[#allocation3 + $0xab8] sm:$0xff]
    %v439 = vld [vmem:[#allocation3 + $0xac0] sm:$0xff]
    %v440 = vld [vmem:[#allocation3 + $0xac8] sm:$0xff]
    %v441 = vld [vmem:[#allocation3 + $0xad0] sm:$0xff]
    %v442 = vld [vmem:[#allocation3 + $0xad8] sm:$0xff]
    %v443 = vld [vmem:[#allocation3 + $0xae0] sm:$0xff]
    %v444 = vld [vmem:[#allocation3 + $0xae8] sm:$0xff]
    %v445 = vld [vmem:[#allocation3 + $0xaf0] sm:$0xff]
    %v446 = vld [vmem:[#allocation3 + $0xaf8] sm:$0xff]
    %v447 = vld [vmem:[#allocation3 + $0xb00] sm:$0xff]
    %v448 = vld [vmem:[#allocation3 + $0xb08] sm:$0xff]
    %v449 = vld [vmem:[#allocation3 + $0xb10] sm:$0xff]
    %v450 = vld [vmem:[#allocation3 + $0xb18] sm:$0xff]
    %v451 = vld [vmem:[#allocation3 + $0xb20] sm:$0xff]
    %v452 = vld [vmem:[#allocation3 + $0xb28] sm:$0xff]
    %v453 = vld [vmem:[#allocation3 + $0xb30] sm:$0xff]
    %v454 = vld [vmem:[#allocation3 + $0xb38] sm:$0xff]
    %v455 = vld [vmem:[#allocation3 + $0xb40] sm:$0xff]
    %v456 = vld [vmem:[#allocation3 + $0xb48] sm:$0xff]
    %v457 = vld [vmem:[#allocation3 + $0xb50] sm:$0xff]
    %v458 = vld [vmem:[#allocation3 + $0xb58] sm:$0xff]
    %v459 = vld [vmem:[#allocation3 + $0xb60] sm:$0xff]
    %v460 = vld [vmem:[#allocation3 + $0xb68] sm:$0xff]
    %v461 = vld [vmem:[#allocation3 + $0xb70] sm:$0xff]
    %v462 = vld [vmem:[#allocation3 + $0xb78] sm:$0xff]
    %v463 = vld [vmem:[#allocation3 + $0xb80] sm:$0xff]
    %v464 = vld [vmem:[#allocation3 + $0xb88] sm:$0xff]
    %v465 = vld [vmem:[#allocation3 + $0xb90] sm:$0xff]
    %v466 = vld [vmem:[#allocation3 + $0xb98] sm:$0xff]
    %v467 = vld [vmem:[#allocation3 + $0xba0] sm:$0xff]
    %v468 = vld [vmem:[#allocation3 + $0xba8] sm:$0xff]
    %v469 = vld [vmem:[#allocation3 + $0xbb0] sm:$0xff]
    %v470 = vld [vmem:[#allocation3 + $0xbb8] sm:$0xff]
    %v471 = vld [vmem:[#allocation3 + $0xbc0] sm:$0xff]
    %v472 = vld [vmem:[#allocation3 + $0xbc8] sm:$0xff]
    %v473 = vld [vmem:[#allocation3 + $0xbd0] sm:$0xff]
    %v474 = vld [vmem:[#allocation3 + $0xbd8] sm:$0xff]
    %v475 = vld [vmem:[#allocation3 + $0xbe0] sm:$0xff]
    %v476 = vld [vmem:[#allocation3 + $0xbe8] sm:$0xff]
    %v477 = vld [vmem:[#allocation3 + $0xbf0] sm:$0xff]
    %v478 = vld [vmem:[#allocation3 + $0xbf8] sm:$0xff]
    %v479 = vld [vmem:[#allocation3 + $0xc00] sm:$0xff]
    %v480 = vld [vmem:[#allocation3 + $0xc08] sm:$0xff]
    %v481 = vld [vmem:[#allocation3 + $0xc10] sm:$0xff]
    %v482 = vld [vmem:[#allocation3 + $0xc18] sm:$0xff]
    %v483 = vld [vmem:[#allocation3 + $0xc20] sm:$0xff]
    %v484 = vld [vmem:[#allocation3 + $0xc28] sm:$0xff]
    %v485 = vld [vmem:[#allocation3 + $0xc30] sm:$0xff]
    %v486 = vld [vmem:[#allocation3 + $0xc38] sm:$0xff]
    %v487 = vld [vmem:[#allocation3 + $0xc40] sm:$0xff]
    %v488 = vld [vmem:[#allocation3 + $0xc48] sm:$0xff]
    %v489 = vld [vmem:[#allocation3 + $0xc50] sm:$0xff]
    %v490 = vld [vmem:[#allocation3 + $0xc58] sm:$0xff]
    %v491 = vld [vmem:[#allocation3 + $0xc60] sm:$0xff]
    %v492 = vld [vmem:[#allocation3 + $0xc68] sm:$0xff]
    %v493 = vld [vmem:[#allocation3 + $0xc70] sm:$0xff]
    %v494 = vld [vmem:[#allocation3 + $0xc78] sm:$0xff]
    %v495 = vld [vmem:[#allocation3 + $0xc80] sm:$0xff]
    %v496 = vld [vmem:[#allocation3 + $0xc88] sm:$0xff]
    %v497 = vld [vmem:[#allocation3 + $0xc90] sm:$0xff]
    %v498 = vld [vmem:[#allocation3 + $0xc98] sm:$0xff]
    %v499 = vld [vmem:[#allocation3 + $0xca0] sm:$0xff]
    %v500 = vld [vmem:[#allocation3 + $0xca8] sm:$0xff]
    %v501 = vld [vmem:[#allocation3 + $0xcb0] sm:$0xff]
    %v502 = vld [vmem:[#allocation3 + $0xcb8] sm:$0xff]
    %v503 = vld [vmem:[#allocation3 + $0xcc0] sm:$0xff]
    %v504 = vld [vmem:[#allocation3 + $0xcc8] sm:$0xff]
    %v505 = vld [vmem:[#allocation3 + $0xcd0] sm:$0xff]
    %v506 = vld [vmem:[#allocation3 + $0xcd8] sm:$0xff]
    %v507 = vld [vmem:[#allocation3 + $0xce0] sm:$0xff]
    %v508 = vld [vmem:[#allocation3 + $0xce8] sm:$0xff]
    %v509 = vld [vmem:[#allocation3 + $0xcf0] sm:$0xff]
    %v510 = vld [vmem:[#allocation3 + $0xcf8] sm:$0xff]
    %v511 = vld [vmem:[#allocation3 + $0xd00] sm:$0xff]
    %v512 = vld [vmem:[#allocation3 + $0xd08] sm:$0xff]
    %v513 = vld [vmem:[#allocation3 + $0xd10] sm:$0xff]
    %v514 = vld [vmem:[#allocation3 + $0xd18] sm:$0xff]
    %v515 = vld [vmem:[#allocation3 + $0xd20] sm:$0xff]
    %v516 = vld [vmem:[#allocation3 + $0xd28] sm:$0xff]
    %v517 = vld [vmem:[#allocation3 + $0xd30] sm:$0xff]
    %v518 = vld [vmem:[#allocation3 + $0xd38] sm:$0xff]
    %v519 = vld [vmem:[#allocation3 + $0xd40] sm:$0xff]
    %v520 = vld [vmem:[#allocation3 + $0xd48] sm:$0xff]
    %v521 = vld [vmem:[#allocation3 + $0xd50] sm:$0xff]
    %v522 = vld [vmem:[#allocation3 + $0xd58] sm:$0xff]
    %v523 = vld [vmem:[#allocation3 + $0xd60] sm:$0xff]
    %v524 = vld [vmem:[#allocation3 + $0xd68] sm:$0xff]
    %v525 = vld [vmem:[#allocation3 + $0xd70] sm:$0xff]
    %v526 = vld [vmem:[#allocation3 + $0xd78] sm:$0xff]
    %v527 = vld [vmem:[#allocation3 + $0xd80] sm:$0xff]
    %v528 = vld [vmem:[#allocation3 + $0xd88] sm:$0xff]
    %v529 = vld [vmem:[#allocation3 + $0xd90] sm:$0xff]
    %v530 = vld [vmem:[#allocation3 + $0xd98] sm:$0xff]
    %v531 = vld [vmem:[#allocation3 + $0xda0] sm:$0xff]
    %v532 = vld [vmem:[#allocation3 + $0xda8] sm:$0xff]
    %v533 = vld [vmem:[#allocation3 + $0xdb0] sm:$0xff]
    %v534 = vld [vmem:[#allocation3 + $0xdb8] sm:$0xff]
    %v535 = vld [vmem:[#allocation3 + $0xdc0] sm:$0xff]
    %v536 = vld [vmem:[#allocation3 + $0xdc8] sm:$0xff]
    %v537 = vld [vmem:[#allocation3 + $0xdd0] sm:$0xff]
    %v538 = vld [vmem:[#allocation3 + $0xdd8] sm:$0xff]
    %v539 = vld [vmem:[#allocation3 + $0xde0] sm:$0xff]
    %v540 = vld [vmem:[#allocation3 + $0xde8] sm:$0xff]
    %v541 = vld [vmem:[#allocation3 + $0xdf0] sm:$0xff]
    %v542 = vld [vmem:[#allocation3 + $0xdf8] sm:$0xff]
    %v543 = vld [vmem:[#allocation5] sm:$0xff]
    %v545 = vlaneseq
    %v546 = vshrl.u32 %v545, 7
    %v547 = vsub.s32 0, %v546
    %v548 = vrot.slane %v543, %v547
    %v549 = vlaneseq
    %v550 = vshrl.u32 %v549, 7
    %v551 = vsub.s32 1, %v550
    %v552 = vrot.slane %v543, %v551
    %v553 = vlaneseq
    %v554 = vshrl.u32 %v553, 7
    %v555 = vsub.s32 2, %v554
    %v556 = vrot.slane %v543, %v555
    %v557 = vlaneseq
    %v558 = vshrl.u32 %v557, 7
    %v559 = vsub.s32 3, %v558
    %v560 = vrot.slane %v543, %v559
    %v561 = vlaneseq
    %v562 = vshrl.u32 %v561, 7
    %v563 = vsub.s32 4, %v562
    %v564 = vrot.slane %v543, %v563
    %v565 = vlaneseq
    %v566 = vshrl.u32 %v565, 7
    %v567 = vsub.s32 5, %v566
    %v568 = vrot.slane %v543, %v567
    %v569 = vlaneseq
    %v570 = vshrl.u32 %v569, 7
    %v571 = vsub.s32 6, %v570
    %v572 = vrot.slane %v543, %v571
    %v573 = vlaneseq
    %v574 = vshrl.u32 %v573, 7
    %v575 = vsub.s32 7, %v574
    %v576 = vrot.slane %v543, %v575
    %v589 = vunpack.c.l.b16 %v91
    %v590 = vunpack.c.h.b16 %v91
    %v591 = vunpack.c.l.b16 %v92
    %v592 = vunpack.c.h.b16 %v92
    %v593 = vunpack.c.l.b16 %v93
    %v594 = vunpack.c.h.b16 %v93
    %v595 = vunpack.c.l.b16 %v94
    %v596 = vpack.c.b16 %v589, %v589
    %v597 = vpack.c.b16 %v590, %v590
    %v598 = vpack.c.b16 %v591, %v591
    %v599 = vpack.c.b16 %v592, %v592
    %v600 = vpack.c.b16 %v593, %v593
    %v601 = vpack.c.b16 %v594, %v594
    %v602 = vpack.c.b16 %v595, %v595
    %v1058 = vunpack.c.l.b16 %v95
    %v1059 = vunpack.c.h.b16 %v95
    %v1060 = vunpack.c.l.b16 %v96
    %v1061 = vunpack.c.h.b16 %v96
    %v1062 = vunpack.c.l.b16 %v97
    %v1063 = vunpack.c.h.b16 %v97
    %v1064 = vunpack.c.l.b16 %v98
    %v1065 = vunpack.c.h.b16 %v98
    %v1066 = vunpack.c.l.b16 %v99
    %v1067 = vunpack.c.h.b16 %v99
    %v1068 = vunpack.c.l.b16 %v100
    %v1069 = vunpack.c.h.b16 %v100
    %v1070 = vunpack.c.l.b16 %v101
    %v1071 = vunpack.c.h.b16 %v101
    %v1072 = vunpack.c.l.b16 %v102
    %v1073 = vunpack.c.h.b16 %v102
    %v1074 = vunpack.c.l.b16 %v103
    %v1075 = vunpack.c.h.b16 %v103
    %v1076 = vunpack.c.l.b16 %v104
    %v1077 = vunpack.c.h.b16 %v104
    %v1078 = vunpack.c.l.b16 %v105
    %v1079 = vunpack.c.h.b16 %v105
    %v1080 = vunpack.c.l.b16 %v106
    %v1081 = vunpack.c.h.b16 %v106
    %v1082 = vunpack.c.l.b16 %v107
    %v1083 = vunpack.c.h.b16 %v107
    %v1084 = vunpack.c.l.b16 %v108
    %v1085 = vunpack.c.h.b16 %v108
    %v1086 = vunpack.c.l.b16 %v109
    %v1087 = vunpack.c.h.b16 %v109
    %v1088 = vunpack.c.l.b16 %v110
    %v1089 = vunpack.c.h.b16 %v110
    %v1090 = vunpack.c.l.b16 %v111
    %v1091 = vunpack.c.h.b16 %v111
    %v1092 = vunpack.c.l.b16 %v112
    %v1093 = vunpack.c.h.b16 %v112
    %v1094 = vunpack.c.l.b16 %v113
    %v1095 = vunpack.c.h.b16 %v113
    %v1096 = vunpack.c.l.b16 %v114
    %v1097 = vunpack.c.h.b16 %v114
    %v1098 = vunpack.c.l.b16 %v115
    %v1099 = vunpack.c.h.b16 %v115
    %v1100 = vunpack.c.l.b16 %v116
    %v1101 = vunpack.c.h.b16 %v116
    %v1102 = vunpack.c.l.b16 %v117
    %v1103 = vunpack.c.h.b16 %v117
    %v1104 = vunpack.c.l.b16 %v118
    %v1105 = vunpack.c.h.b16 %v118
    %v1106 = vunpack.c.l.b16 %v119
    %v1107 = vunpack.c.h.b16 %v119
    %v1108 = vunpack.c.l.b16 %v120
    %v1109 = vunpack.c.h.b16 %v120
    %v1110 = vunpack.c.l.b16 %v121
    %v1111 = vunpack.c.h.b16 %v121
    %v1112 = vunpack.c.l.b16 %v122
    %v1113 = vunpack.c.h.b16 %v122
    %v1114 = vunpack.c.l.b16 %v123
    %v1115 = vunpack.c.h.b16 %v123
    %v1116 = vunpack.c.l.b16 %v124
    %v1117 = vunpack.c.h.b16 %v124
    %v1118 = vunpack.c.l.b16 %v125
    %v1119 = vunpack.c.h.b16 %v125
    %v1120 = vunpack.c.l.b16 %v126
    %v1121 = vunpack.c.h.b16 %v126
    %v1122 = vunpack.c.l.b16 %v127
    %v1123 = vunpack.c.h.b16 %v127
    %v1124 = vunpack.c.l.b16 %v128
    %v1125 = vunpack.c.h.b16 %v128
    %v1126 = vunpack.c.l.b16 %v129
    %v1127 = vunpack.c.h.b16 %v129
    %v1128 = vunpack.c.l.b16 %v130
    %v1129 = vunpack.c.h.b16 %v130
    %v1130 = vunpack.c.l.b16 %v131
    %v1131 = vunpack.c.h.b16 %v131
    %v1132 = vunpack.c.l.b16 %v132
    %v1133 = vunpack.c.h.b16 %v132
    %v1134 = vunpack.c.l.b16 %v133
    %v1135 = vunpack.c.h.b16 %v133
    %v1136 = vunpack.c.l.b16 %v134
    %v1137 = vunpack.c.h.b16 %v134
    %v1138 = vunpack.c.l.b16 %v135
    %v1139 = vunpack.c.h.b16 %v135
    %v1140 = vunpack.c.l.b16 %v136
    %v1141 = vunpack.c.h.b16 %v136
    %v1142 = vunpack.c.l.b16 %v137
    %v1143 = vunpack.c.h.b16 %v137
    %v1144 = vunpack.c.l.b16 %v138
    %v1145 = vunpack.c.h.b16 %v138
    %v1146 = vunpack.c.l.b16 %v139
    %v1147 = vunpack.c.h.b16 %v139
    %v1148 = vunpack.c.l.b16 %v140
    %v1149 = vunpack.c.h.b16 %v140
    %v1150 = vunpack.c.l.b16 %v141
    %v1151 = vunpack.c.h.b16 %v141
    %v1152 = vunpack.c.l.b16 %v142
    %v1153 = vunpack.c.h.b16 %v142
    %v1154 = vunpack.c.l.b16 %v143
    %v1155 = vunpack.c.h.b16 %v143
    %v1156 = vunpack.c.l.b16 %v144
    %v1157 = vunpack.c.h.b16 %v144
    %v1158 = vunpack.c.l.b16 %v145
    %v1159 = vunpack.c.h.b16 %v145
    %v1160 = vunpack.c.l.b16 %v146
    %v1161 = vunpack.c.h.b16 %v146
    %v1162 = vunpack.c.l.b16 %v147
    %v1163 = vunpack.c.h.b16 %v147
    %v1164 = vunpack.c.l.b16 %v148
    %v1165 = vunpack.c.h.b16 %v148
    %v1166 = vunpack.c.l.b16 %v149
    %v1167 = vunpack.c.h.b16 %v149
    %v1168 = vunpack.c.l.b16 %v150
    %v1169 = vunpack.c.h.b16 %v150
    %v1170 = vunpack.c.l.b16 %v151
    %v1171 = vunpack.c.h.b16 %v151
    %v1172 = vunpack.c.l.b16 %v152
    %v1173 = vunpack.c.h.b16 %v152
    %v1174 = vunpack.c.l.b16 %v153
    %v1175 = vunpack.c.h.b16 %v153
    %v1176 = vunpack.c.l.b16 %v154
    %v1177 = vunpack.c.h.b16 %v154
    %v1178 = vunpack.c.l.b16 %v155
    %v1179 = vunpack.c.h.b16 %v155
    %v1180 = vunpack.c.l.b16 %v156
    %v1181 = vunpack.c.h.b16 %v156
    %v1182 = vunpack.c.l.b16 %v157
    %v1183 = vunpack.c.h.b16 %v157
    %v1184 = vunpack.c.l.b16 %v158
    %v1185 = vunpack.c.h.b16 %v158
    %v1186 = vunpack.c.l.b16 %v159
    %v1187 = vunpack.c.h.b16 %v159
    %v1188 = vunpack.c.l.b16 %v160
    %v1189 = vunpack.c.h.b16 %v160
    %v1190 = vunpack.c.l.b16 %v161
    %v1191 = vunpack.c.h.b16 %v161
    %v1192 = vunpack.c.l.b16 %v162
    %v1193 = vunpack.c.h.b16 %v162
    %v1194 = vunpack.c.l.b16 %v163
    %v1195 = vunpack.c.h.b16 %v163
    %v1196 = vunpack.c.l.b16 %v164
    %v1197 = vunpack.c.h.b16 %v164
    %v1198 = vunpack.c.l.b16 %v165
    %v1199 = vunpack.c.h.b16 %v165
    %v1200 = vunpack.c.l.b16 %v166
    %v1201 = vunpack.c.h.b16 %v166
    %v1202 = vunpack.c.l.b16 %v167
    %v1203 = vunpack.c.h.b16 %v167
    %v1204 = vunpack.c.l.b16 %v168
    %v1205 = vunpack.c.h.b16 %v168
    %v1206 = vunpack.c.l.b16 %v169
    %v1207 = vunpack.c.h.b16 %v169
    %v1208 = vunpack.c.l.b16 %v170
    %v1209 = vunpack.c.h.b16 %v170
    %v1210 = vunpack.c.l.b16 %v171
    %v1211 = vunpack.c.h.b16 %v171
    %v1212 = vunpack.c.l.b16 %v172
    %v1213 = vunpack.c.h.b16 %v172
    %v1214 = vunpack.c.l.b16 %v173
    %v1215 = vunpack.c.h.b16 %v173
    %v1216 = vunpack.c.l.b16 %v174
    %v1217 = vunpack.c.h.b16 %v174
    %v1218 = vunpack.c.l.b16 %v175
    %v1219 = vunpack.c.h.b16 %v175
    %v1220 = vunpack.c.l.b16 %v176
    %v1221 = vunpack.c.h.b16 %v176
    %v1222 = vunpack.c.l.b16 %v177
    %v1223 = vunpack.c.h.b16 %v177
    %v1224 = vunpack.c.l.b16 %v178
    %v1225 = vunpack.c.h.b16 %v178
    %v1226 = vunpack.c.l.b16 %v179
    %v1227 = vunpack.c.h.b16 %v179
    %v1228 = vunpack.c.l.b16 %v180
    %v1229 = vunpack.c.h.b16 %v180
    %v1230 = vunpack.c.l.b16 %v181
    %v1231 = vunpack.c.h.b16 %v181
    %v1232 = vunpack.c.l.b16 %v182
    %v1233 = vunpack.c.h.b16 %v182
    %v1234 = vunpack.c.l.b16 %v183
    %v1235 = vunpack.c.h.b16 %v183
    %v1236 = vunpack.c.l.b16 %v184
    %v1237 = vunpack.c.h.b16 %v184
    %v1238 = vunpack.c.l.b16 %v185
    %v1239 = vunpack.c.h.b16 %v185
    %v1240 = vunpack.c.l.b16 %v186
    %v1241 = vunpack.c.h.b16 %v186
    %v1242 = vunpack.c.l.b16 %v187
    %v1243 = vunpack.c.h.b16 %v187
    %v1244 = vunpack.c.l.b16 %v188
    %v1245 = vunpack.c.h.b16 %v188
    %v1246 = vunpack.c.l.b16 %v189
    %v1247 = vunpack.c.h.b16 %v189
    %v1248 = vunpack.c.l.b16 %v190
    %v1249 = vunpack.c.h.b16 %v190
    %v1250 = vunpack.c.l.b16 %v191
    %v1251 = vunpack.c.h.b16 %v191
    %v1252 = vunpack.c.l.b16 %v192
    %v1253 = vunpack.c.h.b16 %v192
    %v1254 = vunpack.c.l.b16 %v193
    %v1255 = vunpack.c.h.b16 %v193
    %v1256 = vunpack.c.l.b16 %v194
    %v1257 = vunpack.c.h.b16 %v194
    %v1258 = vunpack.c.l.b16 %v195
    %v1259 = vunpack.c.h.b16 %v195
    %v1260 = vunpack.c.l.b16 %v196
    %v1261 = vunpack.c.h.b16 %v196
    %v1262 = vunpack.c.l.b16 %v197
    %v1263 = vunpack.c.h.b16 %v197
    %v1264 = vunpack.c.l.b16 %v198
    %v1265 = vunpack.c.h.b16 %v198
    %v1266 = vunpack.c.l.b16 %v199
    %v1267 = vunpack.c.h.b16 %v199
    %v1268 = vunpack.c.l.b16 %v200
    %v1269 = vunpack.c.h.b16 %v200
    %v1270 = vunpack.c.l.b16 %v201
    %v1271 = vunpack.c.h.b16 %v201
    %v1272 = vunpack.c.l.b16 %v202
    %v1273 = vunpack.c.h.b16 %v202
    %v1274 = vunpack.c.l.b16 %v203
    %v1275 = vunpack.c.h.b16 %v203
    %v1276 = vunpack.c.l.b16 %v204
    %v1277 = vunpack.c.h.b16 %v204
    %v1278 = vunpack.c.l.b16 %v205
    %v1279 = vunpack.c.h.b16 %v205
    %v1280 = vunpack.c.l.b16 %v206
    %v1281 = vunpack.c.h.b16 %v206
    %v1282 = vunpack.c.l.b16 %v207
    %v1283 = vunpack.c.h.b16 %v207
    %v1284 = vunpack.c.l.b16 %v208
    %v1285 = vunpack.c.h.b16 %v208
    %v1286 = vunpack.c.l.b16 %v209
    %v1287 = vunpack.c.h.b16 %v209
    %v1288 = vunpack.c.l.b16 %v210
    %v1289 = vunpack.c.h.b16 %v210
    %v1290 = vunpack.c.l.b16 %v211
    %v1291 = vunpack.c.h.b16 %v211
    %v1292 = vunpack.c.l.b16 %v212
    %v1293 = vunpack.c.h.b16 %v212
    %v1294 = vunpack.c.l.b16 %v213
    %v1295 = vunpack.c.h.b16 %v213
    %v1296 = vunpack.c.l.b16 %v214
    %v1297 = vunpack.c.h.b16 %v214
    %v1298 = vunpack.c.l.b16 %v215
    %v1299 = vunpack.c.h.b16 %v215
    %v1300 = vunpack.c.l.b16 %v216
    %v1301 = vunpack.c.h.b16 %v216
    %v1302 = vunpack.c.l.b16 %v217
    %v1303 = vunpack.c.h.b16 %v217
    %v1304 = vunpack.c.l.b16 %v218
    %v1305 = vunpack.c.h.b16 %v218
    %v1306 = vunpack.c.l.b16 %v219
    %v1307 = vunpack.c.h.b16 %v219
    %v1308 = vunpack.c.l.b16 %v220
    %v1309 = vunpack.c.h.b16 %v220
    %v1310 = vunpack.c.l.b16 %v221
    %v1311 = vunpack.c.h.b16 %v221
    %v1312 = vunpack.c.l.b16 %v222
    %v1313 = vunpack.c.h.b16 %v222
    %v1314 = vunpack.c.l.b16 %v223
    %v1315 = vunpack.c.h.b16 %v223
    %v1316 = vunpack.c.l.b16 %v224
    %v1317 = vunpack.c.h.b16 %v224
    %v1318 = vunpack.c.l.b16 %v225
    %v1319 = vunpack.c.h.b16 %v225
    %v1320 = vunpack.c.l.b16 %v226
    %v1321 = vunpack.c.h.b16 %v226
    %v1322 = vunpack.c.l.b16 %v227
    %v1323 = vunpack.c.h.b16 %v227
    %v1324 = vunpack.c.l.b16 %v228
    %v1325 = vunpack.c.h.b16 %v228
    %v1326 = vunpack.c.l.b16 %v229
    %v1327 = vunpack.c.h.b16 %v229
    %v1328 = vunpack.c.l.b16 %v230
    %v1329 = vunpack.c.h.b16 %v230
    %v1330 = vunpack.c.l.b16 %v231
    %v1331 = vunpack.c.h.b16 %v231
    %v1332 = vunpack.c.l.b16 %v232
    %v1333 = vunpack.c.h.b16 %v232
    %v1334 = vunpack.c.l.b16 %v233
    %v1335 = vunpack.c.h.b16 %v233
    %v1336 = vunpack.c.l.b16 %v234
    %v1337 = vunpack.c.h.b16 %v234
    %v1338 = vunpack.c.l.b16 %v235
    %v1339 = vunpack.c.h.b16 %v235
    %v1340 = vunpack.c.l.b16 %v236
    %v1341 = vunpack.c.h.b16 %v236
    %v1342 = vunpack.c.l.b16 %v237
    %v1343 = vunpack.c.h.b16 %v237
    %v1344 = vunpack.c.l.b16 %v238
    %v1345 = vunpack.c.h.b16 %v238
    %v1346 = vunpack.c.l.b16 %v239
    %v1347 = vunpack.c.h.b16 %v239
    %v1348 = vunpack.c.l.b16 %v240
    %v1349 = vunpack.c.h.b16 %v240
    %v1350 = vunpack.c.l.b16 %v241
    %v1351 = vunpack.c.h.b16 %v241
    %v1352 = vunpack.c.l.b16 %v242
    %v1353 = vunpack.c.h.b16 %v242
    %v1354 = vunpack.c.l.b16 %v243
    %v1355 = vunpack.c.h.b16 %v243
    %v1356 = vunpack.c.l.b16 %v244
    %v1357 = vunpack.c.h.b16 %v244
    %v1358 = vunpack.c.l.b16 %v245
    %v1359 = vunpack.c.h.b16 %v245
    %v1360 = vunpack.c.l.b16 %v246
    %v1361 = vunpack.c.h.b16 %v246
    %v1362 = vunpack.c.l.b16 %v247
    %v1363 = vunpack.c.h.b16 %v247
    %v1364 = vunpack.c.l.b16 %v248
    %v1365 = vunpack.c.h.b16 %v248
    %v1366 = vunpack.c.l.b16 %v249
    %v1367 = vunpack.c.h.b16 %v249
    %v1368 = vunpack.c.l.b16 %v250
    %v1369 = vunpack.c.h.b16 %v250
    %v1370 = vunpack.c.l.b16 %v251
    %v1371 = vunpack.c.h.b16 %v251
    %v1372 = vunpack.c.l.b16 %v252
    %v1373 = vunpack.c.h.b16 %v252
    %v1374 = vunpack.c.l.b16 %v253
    %v1375 = vunpack.c.h.b16 %v253
    %v1376 = vunpack.c.l.b16 %v254
    %v1377 = vunpack.c.h.b16 %v254
    %v1378 = vunpack.c.l.b16 %v255
    %v1379 = vunpack.c.h.b16 %v255
    %v1380 = vunpack.c.l.b16 %v256
    %v1381 = vunpack.c.h.b16 %v256
    %v1382 = vunpack.c.l.b16 %v257
    %v1383 = vunpack.c.h.b16 %v257
    %v1384 = vunpack.c.l.b16 %v258
    %v1385 = vunpack.c.h.b16 %v258
    %v1386 = vunpack.c.l.b16 %v259
    %v1387 = vunpack.c.h.b16 %v259
    %v1388 = vunpack.c.l.b16 %v260
    %v1389 = vunpack.c.h.b16 %v260
    %v1390 = vunpack.c.l.b16 %v261
    %v1391 = vunpack.c.h.b16 %v261
    %v1392 = vunpack.c.l.b16 %v262
    %v1393 = vunpack.c.h.b16 %v262
    %v1394 = vunpack.c.l.b16 %v263
    %v1395 = vunpack.c.h.b16 %v263
    %v1396 = vunpack.c.l.b16 %v264
    %v1397 = vunpack.c.h.b16 %v264
    %v1398 = vunpack.c.l.b16 %v265
    %v1399 = vunpack.c.h.b16 %v265
    %v1400 = vunpack.c.l.b16 %v266
    %v1401 = vunpack.c.h.b16 %v266
    %v1402 = vunpack.c.l.b16 %v267
    %v1403 = vunpack.c.h.b16 %v267
    %v1404 = vunpack.c.l.b16 %v268
    %v1405 = vunpack.c.h.b16 %v268
    %v1406 = vunpack.c.l.b16 %v269
    %v1407 = vunpack.c.h.b16 %v269
    %v1408 = vunpack.c.l.b16 %v270
    %v1409 = vunpack.c.h.b16 %v270
    %v1410 = vunpack.c.l.b16 %v271
    %v1411 = vunpack.c.h.b16 %v271
    %v1412 = vunpack.c.l.b16 %v272
    %v1413 = vunpack.c.h.b16 %v272
    %v1414 = vunpack.c.l.b16 %v273
    %v1415 = vunpack.c.h.b16 %v273
    %v1416 = vunpack.c.l.b16 %v274
    %v1417 = vunpack.c.h.b16 %v274
    %v1418 = vunpack.c.l.b16 %v275
    %v1419 = vunpack.c.h.b16 %v275
    %v1420 = vunpack.c.l.b16 %v276
    %v1421 = vunpack.c.h.b16 %v276
    %v1422 = vunpack.c.l.b16 %v277
    %v1423 = vunpack.c.h.b16 %v277
    %v1424 = vunpack.c.l.b16 %v278
    %v1425 = vunpack.c.h.b16 %v278
    %v1426 = vunpack.c.l.b16 %v279
    %v1427 = vunpack.c.h.b16 %v279
    %v1428 = vunpack.c.l.b16 %v280
    %v1429 = vunpack.c.h.b16 %v280
    %v1430 = vunpack.c.l.b16 %v281
    %v1431 = vunpack.c.h.b16 %v281
    %v1432 = vunpack.c.l.b16 %v282
    %v1433 = vunpack.c.h.b16 %v282
    %v1434 = vunpack.c.l.b16 %v283
    %v1435 = vunpack.c.h.b16 %v283
    %v1436 = vunpack.c.l.b16 %v284
    %v1437 = vunpack.c.h.b16 %v284
    %v1438 = vunpack.c.l.b16 %v285
    %v1439 = vunpack.c.h.b16 %v285
    %v1440 = vunpack.c.l.b16 %v286
    %v1441 = vunpack.c.h.b16 %v286
    %v1442 = vunpack.c.l.b16 %v287
    %v1443 = vunpack.c.h.b16 %v287
    %v1444 = vunpack.c.l.b16 %v288
    %v1445 = vunpack.c.h.b16 %v288
    %v1446 = vunpack.c.l.b16 %v289
    %v1447 = vunpack.c.h.b16 %v289
    %v1448 = vunpack.c.l.b16 %v290
    %v1449 = vunpack.c.h.b16 %v290
    %v1450 = vunpack.c.l.b16 %v291
    %v1451 = vunpack.c.h.b16 %v291
    %v1452 = vunpack.c.l.b16 %v292
    %v1453 = vunpack.c.h.b16 %v292
    %v1454 = vunpack.c.l.b16 %v293
    %v1455 = vunpack.c.h.b16 %v293
    %v1456 = vunpack.c.l.b16 %v294
    %v1457 = vunpack.c.h.b16 %v294
    %v1458 = vunpack.c.l.b16 %v295
    %v1459 = vunpack.c.h.b16 %v295
    %v1460 = vunpack.c.l.b16 %v296
    %v1461 = vunpack.c.h.b16 %v296
    %v1462 = vunpack.c.l.b16 %v297
    %v1463 = vunpack.c.h.b16 %v297
    %v1464 = vunpack.c.l.b16 %v298
    %v1465 = vunpack.c.h.b16 %v298
    %v1466 = vunpack.c.l.b16 %v299
    %v1467 = vunpack.c.h.b16 %v299
    %v1468 = vunpack.c.l.b16 %v300
    %v1469 = vunpack.c.h.b16 %v300
    %v1470 = vunpack.c.l.b16 %v301
    %v1471 = vunpack.c.h.b16 %v301
    %v1472 = vunpack.c.l.b16 %v302
    %v1473 = vunpack.c.h.b16 %v302
    %v1474 = vunpack.c.l.b16 %v303
    %v1475 = vunpack.c.h.b16 %v303
    %v1476 = vunpack.c.l.b16 %v304
    %v1477 = vunpack.c.h.b16 %v304
    %v1478 = vunpack.c.l.b16 %v305
    %v1479 = vunpack.c.h.b16 %v305
    %v1480 = vunpack.c.l.b16 %v306
    %v1481 = vunpack.c.h.b16 %v306
    %v1482 = vunpack.c.l.b16 %v307
    %v1483 = vunpack.c.h.b16 %v307
    %v1484 = vunpack.c.l.b16 %v308
    %v1485 = vunpack.c.h.b16 %v308
    %v1486 = vunpack.c.l.b16 %v309
    %v1487 = vunpack.c.h.b16 %v309
    %v1488 = vunpack.c.l.b16 %v310
    %v1489 = vunpack.c.h.b16 %v310
    %v1490 = vunpack.c.l.b16 %v311
    %v1491 = vunpack.c.h.b16 %v311
    %v1492 = vunpack.c.l.b16 %v312
    %v1493 = vunpack.c.h.b16 %v312
    %v1494 = vunpack.c.l.b16 %v313
    %v1495 = vunpack.c.h.b16 %v313
    %v1496 = vunpack.c.l.b16 %v314
    %v1497 = vunpack.c.h.b16 %v314
    %v1498 = vunpack.c.l.b16 %v315
    %v1499 = vunpack.c.h.b16 %v315
    %v1500 = vunpack.c.l.b16 %v316
    %v1501 = vunpack.c.h.b16 %v316
    %v1502 = vunpack.c.l.b16 %v317
    %v1503 = vunpack.c.h.b16 %v317
    %v1504 = vunpack.c.l.b16 %v318
    %v1505 = vunpack.c.h.b16 %v318
    %v1506 = vunpack.c.l.b16 %v319
    %v1507 = vunpack.c.h.b16 %v319
    %v1508 = vunpack.c.l.b16 %v320
    %v1509 = vunpack.c.h.b16 %v320
    %v1510 = vunpack.c.l.b16 %v321
    %v1511 = vunpack.c.h.b16 %v321
    %v1512 = vunpack.c.l.b16 %v322
    %v1513 = vunpack.c.h.b16 %v322
    %v1514 = vunpack.c.l.b16 %v323
    %v1515 = vunpack.c.h.b16 %v323
    %v1516 = vunpack.c.l.b16 %v324
    %v1517 = vunpack.c.h.b16 %v324
    %v1518 = vunpack.c.l.b16 %v325
    %v1519 = vunpack.c.h.b16 %v325
    %v1520 = vunpack.c.l.b16 %v326
    %v1521 = vunpack.c.h.b16 %v326
    %v1522 = vunpack.c.l.b16 %v327
    %v1523 = vunpack.c.h.b16 %v327
    %v1524 = vunpack.c.l.b16 %v328
    %v1525 = vunpack.c.h.b16 %v328
    %v1526 = vunpack.c.l.b16 %v329
    %v1527 = vunpack.c.h.b16 %v329
    %v1528 = vunpack.c.l.b16 %v330
    %v1529 = vunpack.c.h.b16 %v330
    %v1530 = vunpack.c.l.b16 %v331
    %v1531 = vunpack.c.h.b16 %v331
    %v1532 = vunpack.c.l.b16 %v332
    %v1533 = vunpack.c.h.b16 %v332
    %v1534 = vunpack.c.l.b16 %v333
    %v1535 = vunpack.c.h.b16 %v333
    %v1536 = vunpack.c.l.b16 %v334
    %v1537 = vunpack.c.h.b16 %v334
    %v1538 = vunpack.c.l.b16 %v335
    %v1539 = vunpack.c.h.b16 %v335
    %v1540 = vunpack.c.l.b16 %v336
    %v1541 = vunpack.c.h.b16 %v336
    %v1542 = vunpack.c.l.b16 %v337
    %v1543 = vunpack.c.h.b16 %v337
    %v1544 = vunpack.c.l.b16 %v338
    %v1545 = vunpack.c.h.b16 %v338
    %v1546 = vunpack.c.l.b16 %v339
    %v1547 = vunpack.c.h.b16 %v339
    %v1548 = vunpack.c.l.b16 %v340
    %v1549 = vunpack.c.h.b16 %v340
    %v1550 = vunpack.c.l.b16 %v341
    %v1551 = vunpack.c.h.b16 %v341
    %v1552 = vunpack.c.l.b16 %v342
    %v1553 = vunpack.c.h.b16 %v342
    %v1554 = vunpack.c.l.b16 %v343
    %v1555 = vunpack.c.h.b16 %v343
    %v1556 = vunpack.c.l.b16 %v344
    %v1557 = vunpack.c.h.b16 %v344
    %v1558 = vunpack.c.l.b16 %v345
    %v1559 = vunpack.c.h.b16 %v345
    %v1560 = vunpack.c.l.b16 %v346
    %v1561 = vunpack.c.h.b16 %v346
    %v1562 = vunpack.c.l.b16 %v347
    %v1563 = vunpack.c.h.b16 %v347
    %v1564 = vunpack.c.l.b16 %v348
    %v1565 = vunpack.c.h.b16 %v348
    %v1566 = vunpack.c.l.b16 %v349
    %v1567 = vunpack.c.h.b16 %v349
    %v1568 = vunpack.c.l.b16 %v350
    %v1569 = vunpack.c.h.b16 %v350
    %v1570 = vunpack.c.l.b16 %v351
    %v1571 = vunpack.c.h.b16 %v351
    %v1572 = vunpack.c.l.b16 %v352
    %v1573 = vunpack.c.h.b16 %v352
    %v1574 = vunpack.c.l.b16 %v353
    %v1575 = vunpack.c.h.b16 %v353
    %v1576 = vunpack.c.l.b16 %v354
    %v1577 = vunpack.c.h.b16 %v354
    %v1578 = vunpack.c.l.b16 %v355
    %v1579 = vunpack.c.h.b16 %v355
    %v1580 = vunpack.c.l.b16 %v356
    %v1581 = vunpack.c.h.b16 %v356
    %v1582 = vunpack.c.l.b16 %v357
    %v1583 = vunpack.c.h.b16 %v357
    %v1584 = vunpack.c.l.b16 %v358
    %v1585 = vunpack.c.h.b16 %v358
    %v1586 = vunpack.c.l.b16 %v359
    %v1587 = vunpack.c.h.b16 %v359
    %v1588 = vunpack.c.l.b16 %v360
    %v1589 = vunpack.c.h.b16 %v360
    %v1590 = vunpack.c.l.b16 %v361
    %v1591 = vunpack.c.h.b16 %v361
    %v1592 = vunpack.c.l.b16 %v362
    %v1593 = vunpack.c.h.b16 %v362
    %v1594 = vunpack.c.l.b16 %v363
    %v1595 = vunpack.c.h.b16 %v363
    %v1596 = vunpack.c.l.b16 %v364
    %v1597 = vunpack.c.h.b16 %v364
    %v1598 = vunpack.c.l.b16 %v365
    %v1599 = vunpack.c.h.b16 %v365
    %v1600 = vunpack.c.l.b16 %v366
    %v1601 = vunpack.c.h.b16 %v366
    %v1602 = vunpack.c.l.b16 %v367
    %v1603 = vunpack.c.h.b16 %v367
    %v1604 = vunpack.c.l.b16 %v368
    %v1605 = vunpack.c.h.b16 %v368
    %v1606 = vunpack.c.l.b16 %v369
    %v1607 = vunpack.c.h.b16 %v369
    %v1608 = vunpack.c.l.b16 %v370
    %v1609 = vunpack.c.h.b16 %v370
    %v1610 = vunpack.c.l.b16 %v371
    %v1611 = vunpack.c.h.b16 %v371
    %v1612 = vunpack.c.l.b16 %v372
    %v1613 = vunpack.c.h.b16 %v372
    %v1614 = vunpack.c.l.b16 %v373
    %v1615 = vunpack.c.h.b16 %v373
    %v1616 = vunpack.c.l.b16 %v374
    %v1617 = vunpack.c.h.b16 %v374
    %v1618 = vunpack.c.l.b16 %v375
    %v1619 = vunpack.c.h.b16 %v375
    %v1620 = vunpack.c.l.b16 %v376
    %v1621 = vunpack.c.h.b16 %v376
    %v1622 = vunpack.c.l.b16 %v377
    %v1623 = vunpack.c.h.b16 %v377
    %v1624 = vunpack.c.l.b16 %v378
    %v1625 = vunpack.c.h.b16 %v378
    %v1626 = vunpack.c.l.b16 %v379
    %v1627 = vunpack.c.h.b16 %v379
    %v1628 = vunpack.c.l.b16 %v380
    %v1629 = vunpack.c.h.b16 %v380
    %v1630 = vunpack.c.l.b16 %v381
    %v1631 = vunpack.c.h.b16 %v381
    %v1632 = vunpack.c.l.b16 %v382
    %v1633 = vunpack.c.h.b16 %v382
    %v1634 = vunpack.c.l.b16 %v383
    %v1635 = vunpack.c.h.b16 %v383
    %v1636 = vunpack.c.l.b16 %v384
    %v1637 = vunpack.c.h.b16 %v384
    %v1638 = vunpack.c.l.b16 %v385
    %v1639 = vunpack.c.h.b16 %v385
    %v1640 = vunpack.c.l.b16 %v386
    %v1641 = vunpack.c.h.b16 %v386
    %v1642 = vunpack.c.l.b16 %v387
    %v1643 = vunpack.c.h.b16 %v387
    %v1644 = vunpack.c.l.b16 %v388
    %v1645 = vunpack.c.h.b16 %v388
    %v1646 = vunpack.c.l.b16 %v389
    %v1647 = vunpack.c.h.b16 %v389
    %v1648 = vunpack.c.l.b16 %v390
    %v1649 = vunpack.c.h.b16 %v390
    %v1650 = vunpack.c.l.b16 %v391
    %v1651 = vunpack.c.h.b16 %v391
    %v1652 = vunpack.c.l.b16 %v392
    %v1653 = vunpack.c.h.b16 %v392
    %v1654 = vunpack.c.l.b16 %v393
    %v1655 = vunpack.c.h.b16 %v393
    %v1656 = vunpack.c.l.b16 %v394
    %v1657 = vunpack.c.h.b16 %v394
    %v1658 = vunpack.c.l.b16 %v395
    %v1659 = vunpack.c.h.b16 %v395
    %v1660 = vunpack.c.l.b16 %v396
    %v1661 = vunpack.c.h.b16 %v396
    %v1662 = vunpack.c.l.b16 %v397
    %v1663 = vunpack.c.h.b16 %v397
    %v1664 = vunpack.c.l.b16 %v398
    %v1665 = vunpack.c.h.b16 %v398
    %v1666 = vunpack.c.l.b16 %v399
    %v1667 = vunpack.c.h.b16 %v399
    %v1668 = vunpack.c.l.b16 %v400
    %v1669 = vunpack.c.h.b16 %v400
    %v1670 = vunpack.c.l.b16 %v401
    %v1671 = vunpack.c.h.b16 %v401
    %v1672 = vunpack.c.l.b16 %v402
    %v1673 = vunpack.c.h.b16 %v402
    %v1674 = vunpack.c.l.b16 %v403
    %v1675 = vunpack.c.h.b16 %v403
    %v1676 = vunpack.c.l.b16 %v404
    %v1677 = vunpack.c.h.b16 %v404
    %v1678 = vunpack.c.l.b16 %v405
    %v1679 = vunpack.c.h.b16 %v405
    %v1680 = vunpack.c.l.b16 %v406
    %v1681 = vunpack.c.h.b16 %v406
    %v1682 = vunpack.c.l.b16 %v407
    %v1683 = vunpack.c.h.b16 %v407
    %v1684 = vunpack.c.l.b16 %v408
    %v1685 = vunpack.c.h.b16 %v408
    %v1686 = vunpack.c.l.b16 %v409
    %v1687 = vunpack.c.h.b16 %v409
    %v1688 = vunpack.c.l.b16 %v410
    %v1689 = vunpack.c.h.b16 %v410
    %v1690 = vunpack.c.l.b16 %v411
    %v1691 = vunpack.c.h.b16 %v411
    %v1692 = vunpack.c.l.b16 %v412
    %v1693 = vunpack.c.h.b16 %v412
    %v1694 = vunpack.c.l.b16 %v413
    %v1695 = vunpack.c.h.b16 %v413
    %v1696 = vunpack.c.l.b16 %v414
    %v1697 = vunpack.c.h.b16 %v414
    %v1698 = vunpack.c.l.b16 %v415
    %v1699 = vunpack.c.h.b16 %v415
    %v1700 = vunpack.c.l.b16 %v416
    %v1701 = vunpack.c.h.b16 %v416
    %v1702 = vunpack.c.l.b16 %v417
    %v1703 = vunpack.c.h.b16 %v417
    %v1704 = vunpack.c.l.b16 %v418
    %v1705 = vunpack.c.h.b16 %v418
    %v1706 = vunpack.c.l.b16 %v419
    %v1707 = vunpack.c.h.b16 %v419
    %v1708 = vunpack.c.l.b16 %v420
    %v1709 = vunpack.c.h.b16 %v420
    %v1710 = vunpack.c.l.b16 %v421
    %v1711 = vunpack.c.h.b16 %v421
    %v1712 = vunpack.c.l.b16 %v422
    %v1713 = vunpack.c.h.b16 %v422
    %v1714 = vunpack.c.l.b16 %v423
    %v1715 = vunpack.c.h.b16 %v423
    %v1716 = vunpack.c.l.b16 %v424
    %v1717 = vunpack.c.h.b16 %v424
    %v1718 = vunpack.c.l.b16 %v425
    %v1719 = vunpack.c.h.b16 %v425
    %v1720 = vunpack.c.l.b16 %v426
    %v1721 = vunpack.c.h.b16 %v426
    %v1722 = vunpack.c.l.b16 %v427
    %v1723 = vunpack.c.h.b16 %v427
    %v1724 = vunpack.c.l.b16 %v428
    %v1725 = vunpack.c.h.b16 %v428
    %v1726 = vunpack.c.l.b16 %v429
    %v1727 = vunpack.c.h.b16 %v429
    %v1728 = vunpack.c.l.b16 %v430
    %v1729 = vunpack.c.h.b16 %v430
    %v1730 = vunpack.c.l.b16 %v431
    %v1731 = vunpack.c.h.b16 %v431
    %v1732 = vunpack.c.l.b16 %v432
    %v1733 = vunpack.c.h.b16 %v432
    %v1734 = vunpack.c.l.b16 %v433
    %v1735 = vunpack.c.h.b16 %v433
    %v1736 = vunpack.c.l.b16 %v434
    %v1737 = vunpack.c.h.b16 %v434
    %v1738 = vunpack.c.l.b16 %v435
    %v1739 = vunpack.c.h.b16 %v435
    %v1740 = vunpack.c.l.b16 %v436
    %v1741 = vunpack.c.h.b16 %v436
    %v1742 = vunpack.c.l.b16 %v437
    %v1743 = vunpack.c.h.b16 %v437
    %v1744 = vunpack.c.l.b16 %v438
    %v1745 = vunpack.c.h.b16 %v438
    %v1746 = vunpack.c.l.b16 %v439
    %v1747 = vunpack.c.h.b16 %v439
    %v1748 = vunpack.c.l.b16 %v440
    %v1749 = vunpack.c.h.b16 %v440
    %v1750 = vunpack.c.l.b16 %v441
    %v1751 = vunpack.c.h.b16 %v441
    %v1752 = vunpack.c.l.b16 %v442
    %v1753 = vunpack.c.h.b16 %v442
    %v1754 = vunpack.c.l.b16 %v443
    %v1755 = vunpack.c.h.b16 %v443
    %v1756 = vunpack.c.l.b16 %v444
    %v1757 = vunpack.c.h.b16 %v444
    %v1758 = vunpack.c.l.b16 %v445
    %v1759 = vunpack.c.h.b16 %v445
    %v1760 = vunpack.c.l.b16 %v446
    %v1761 = vunpack.c.h.b16 %v446
    %v1762 = vunpack.c.l.b16 %v447
    %v1763 = vunpack.c.h.b16 %v447
    %v1764 = vunpack.c.l.b16 %v448
    %v1765 = vunpack.c.h.b16 %v448
    %v1766 = vunpack.c.l.b16 %v449
    %v1767 = vunpack.c.h.b16 %v449
    %v1768 = vunpack.c.l.b16 %v450
    %v1769 = vunpack.c.h.b16 %v450
    %v1770 = vunpack.c.l.b16 %v451
    %v1771 = vunpack.c.h.b16 %v451
    %v1772 = vunpack.c.l.b16 %v452
    %v1773 = vunpack.c.h.b16 %v452
    %v1774 = vunpack.c.l.b16 %v453
    %v1775 = vunpack.c.h.b16 %v453
    %v1776 = vunpack.c.l.b16 %v454
    %v1777 = vunpack.c.h.b16 %v454
    %v1778 = vunpack.c.l.b16 %v455
    %v1779 = vunpack.c.h.b16 %v455
    %v1780 = vunpack.c.l.b16 %v456
    %v1781 = vunpack.c.h.b16 %v456
    %v1782 = vunpack.c.l.b16 %v457
    %v1783 = vunpack.c.h.b16 %v457
    %v1784 = vunpack.c.l.b16 %v458
    %v1785 = vunpack.c.h.b16 %v458
    %v1786 = vunpack.c.l.b16 %v459
    %v1787 = vunpack.c.h.b16 %v459
    %v1788 = vunpack.c.l.b16 %v460
    %v1789 = vunpack.c.h.b16 %v460
    %v1790 = vunpack.c.l.b16 %v461
    %v1791 = vunpack.c.h.b16 %v461
    %v1792 = vunpack.c.l.b16 %v462
    %v1793 = vunpack.c.h.b16 %v462
    %v1794 = vunpack.c.l.b16 %v463
    %v1795 = vunpack.c.h.b16 %v463
    %v1796 = vunpack.c.l.b16 %v464
    %v1797 = vunpack.c.h.b16 %v464
    %v1798 = vunpack.c.l.b16 %v465
    %v1799 = vunpack.c.h.b16 %v465
    %v1800 = vunpack.c.l.b16 %v466
    %v1801 = vunpack.c.h.b16 %v466
    %v1802 = vunpack.c.l.b16 %v467
    %v1803 = vunpack.c.h.b16 %v467
    %v1804 = vunpack.c.l.b16 %v468
    %v1805 = vunpack.c.h.b16 %v468
    %v1806 = vunpack.c.l.b16 %v469
    %v1807 = vunpack.c.h.b16 %v469
    %v1808 = vunpack.c.l.b16 %v470
    %v1809 = vunpack.c.h.b16 %v470
    %v1810 = vunpack.c.l.b16 %v471
    %v1811 = vunpack.c.h.b16 %v471
    %v1812 = vunpack.c.l.b16 %v472
    %v1813 = vunpack.c.h.b16 %v472
    %v1814 = vunpack.c.l.b16 %v473
    %v1815 = vunpack.c.h.b16 %v473
    %v1816 = vunpack.c.l.b16 %v474
    %v1817 = vunpack.c.h.b16 %v474
    %v1818 = vunpack.c.l.b16 %v475
    %v1819 = vunpack.c.h.b16 %v475
    %v1820 = vunpack.c.l.b16 %v476
    %v1821 = vunpack.c.h.b16 %v476
    %v1822 = vunpack.c.l.b16 %v477
    %v1823 = vunpack.c.h.b16 %v477
    %v1824 = vunpack.c.l.b16 %v478
    %v1825 = vunpack.c.h.b16 %v478
    %v1826 = vunpack.c.l.b16 %v479
    %v1827 = vunpack.c.h.b16 %v479
    %v1828 = vunpack.c.l.b16 %v480
    %v1829 = vunpack.c.h.b16 %v480
    %v1830 = vunpack.c.l.b16 %v481
    %v1831 = vunpack.c.h.b16 %v481
    %v1832 = vunpack.c.l.b16 %v482
    %v1833 = vunpack.c.h.b16 %v482
    %v1834 = vunpack.c.l.b16 %v483
    %v1835 = vunpack.c.h.b16 %v483
    %v1836 = vunpack.c.l.b16 %v484
    %v1837 = vunpack.c.h.b16 %v484
    %v1838 = vunpack.c.l.b16 %v485
    %v1839 = vunpack.c.h.b16 %v485
    %v1840 = vunpack.c.l.b16 %v486
    %v1841 = vunpack.c.h.b16 %v486
    %v1842 = vunpack.c.l.b16 %v487
    %v1843 = vunpack.c.h.b16 %v487
    %v1844 = vunpack.c.l.b16 %v488
    %v1845 = vunpack.c.h.b16 %v488
    %v1846 = vunpack.c.l.b16 %v489
    %v1847 = vunpack.c.h.b16 %v489
    %v1848 = vunpack.c.l.b16 %v490
    %v1849 = vunpack.c.h.b16 %v490
    %v1850 = vunpack.c.l.b16 %v491
    %v1851 = vunpack.c.h.b16 %v491
    %v1852 = vunpack.c.l.b16 %v492
    %v1853 = vunpack.c.h.b16 %v492
    %v1854 = vunpack.c.l.b16 %v493
    %v1855 = vunpack.c.h.b16 %v493
    %v1856 = vunpack.c.l.b16 %v494
    %v1857 = vunpack.c.h.b16 %v494
    %v1858 = vunpack.c.l.b16 %v495
    %v1859 = vunpack.c.h.b16 %v495
    %v1860 = vunpack.c.l.b16 %v496
    %v1861 = vunpack.c.h.b16 %v496
    %v1862 = vunpack.c.l.b16 %v497
    %v1863 = vunpack.c.h.b16 %v497
    %v1864 = vunpack.c.l.b16 %v498
    %v1865 = vunpack.c.h.b16 %v498
    %v1866 = vunpack.c.l.b16 %v499
    %v1867 = vunpack.c.h.b16 %v499
    %v1868 = vunpack.c.l.b16 %v500
    %v1869 = vunpack.c.h.b16 %v500
    %v1870 = vunpack.c.l.b16 %v501
    %v1871 = vunpack.c.h.b16 %v501
    %v1872 = vunpack.c.l.b16 %v502
    %v1873 = vunpack.c.h.b16 %v502
    %v1874 = vunpack.c.l.b16 %v503
    %v1875 = vunpack.c.h.b16 %v503
    %v1876 = vunpack.c.l.b16 %v504
    %v1877 = vunpack.c.h.b16 %v504
    %v1878 = vunpack.c.l.b16 %v505
    %v1879 = vunpack.c.h.b16 %v505
    %v1880 = vunpack.c.l.b16 %v506
    %v1881 = vunpack.c.h.b16 %v506
    %v1882 = vunpack.c.l.b16 %v507
    %v1883 = vunpack.c.h.b16 %v507
    %v1884 = vunpack.c.l.b16 %v508
    %v1885 = vunpack.c.h.b16 %v508
    %v1886 = vunpack.c.l.b16 %v509
    %v1887 = vunpack.c.h.b16 %v509
    %v1888 = vunpack.c.l.b16 %v510
    %v1889 = vunpack.c.h.b16 %v510
    %v1890 = vunpack.c.l.b16 %v511
    %v1891 = vunpack.c.h.b16 %v511
    %v1892 = vunpack.c.l.b16 %v512
    %v1893 = vunpack.c.h.b16 %v512
    %v1894 = vunpack.c.l.b16 %v513
    %v1895 = vunpack.c.h.b16 %v513
    %v1896 = vunpack.c.l.b16 %v514
    %v1897 = vunpack.c.h.b16 %v514
    %v1898 = vunpack.c.l.b16 %v515
    %v1899 = vunpack.c.h.b16 %v515
    %v1900 = vunpack.c.l.b16 %v516
    %v1901 = vunpack.c.h.b16 %v516
    %v1902 = vunpack.c.l.b16 %v517
    %v1903 = vunpack.c.h.b16 %v517
    %v1904 = vunpack.c.l.b16 %v518
    %v1905 = vunpack.c.h.b16 %v518
    %v1906 = vunpack.c.l.b16 %v519
    %v1907 = vunpack.c.h.b16 %v519
    %v1908 = vunpack.c.l.b16 %v520
    %v1909 = vunpack.c.h.b16 %v520
    %v1910 = vunpack.c.l.b16 %v521
    %v1911 = vunpack.c.h.b16 %v521
    %v1912 = vunpack.c.l.b16 %v522
    %v1913 = vunpack.c.h.b16 %v522
    %v1914 = vunpack.c.l.b16 %v523
    %v1915 = vunpack.c.h.b16 %v523
    %v1916 = vunpack.c.l.b16 %v524
    %v1917 = vunpack.c.h.b16 %v524
    %v1918 = vunpack.c.l.b16 %v525
    %v1919 = vunpack.c.h.b16 %v525
    %v1920 = vunpack.c.l.b16 %v526
    %v1921 = vunpack.c.h.b16 %v526
    %v1922 = vunpack.c.l.b16 %v527
    %v1923 = vunpack.c.h.b16 %v527
    %v1924 = vunpack.c.l.b16 %v528
    %v1925 = vunpack.c.h.b16 %v528
    %v1926 = vunpack.c.l.b16 %v529
    %v1927 = vunpack.c.h.b16 %v529
    %v1928 = vunpack.c.l.b16 %v530
    %v1929 = vunpack.c.h.b16 %v530
    %v1930 = vunpack.c.l.b16 %v531
    %v1931 = vunpack.c.h.b16 %v531
    %v1932 = vunpack.c.l.b16 %v532
    %v1933 = vunpack.c.h.b16 %v532
    %v1934 = vunpack.c.l.b16 %v533
    %v1935 = vunpack.c.h.b16 %v533
    %v1936 = vunpack.c.l.b16 %v534
    %v1937 = vunpack.c.h.b16 %v534
    %v1938 = vunpack.c.l.b16 %v535
    %v1939 = vunpack.c.h.b16 %v535
    %v1940 = vunpack.c.l.b16 %v536
    %v1941 = vunpack.c.h.b16 %v536
    %v1942 = vunpack.c.l.b16 %v537
    %v1943 = vunpack.c.h.b16 %v537
    %v1944 = vunpack.c.l.b16 %v538
    %v1945 = vunpack.c.h.b16 %v538
    %v1946 = vunpack.c.l.b16 %v539
    %v1947 = vunpack.c.h.b16 %v539
    %v1948 = vunpack.c.l.b16 %v540
    %v1949 = vunpack.c.h.b16 %v540
    %v1950 = vunpack.c.l.b16 %v541
    %v1951 = vunpack.c.h.b16 %v541
    %v1952 = vunpack.c.l.b16 %v542
    %v1953 = vunpack.c.h.b16 %v542
    %v1954 = vpack.c.b16 %v1066, %v1058
    %v1955 = vpack.c.b16 %v1067, %v1059
    %v1956 = vpack.c.b16 %v1068, %v1060
    %v1957 = vpack.c.b16 %v1069, %v1061
    %v1958 = vpack.c.b16 %v1070, %v1062
    %v1959 = vpack.c.b16 %v1071, %v1063
    %v1960 = vpack.c.b16 %v1072, %v1064
    %v1961 = vpack.c.b16 %v1073, %v1065
    %v1962 = vpack.c.b16 %v1082, %v1074
    %v1963 = vpack.c.b16 %v1083, %v1075
    %v1964 = vpack.c.b16 %v1084, %v1076
    %v1965 = vpack.c.b16 %v1085, %v1077
    %v1966 = vpack.c.b16 %v1086, %v1078
    %v1967 = vpack.c.b16 %v1087, %v1079
    %v1968 = vpack.c.b16 %v1088, %v1080
    %v1969 = vpack.c.b16 %v1089, %v1081
    %v1970 = vpack.c.b16 %v1098, %v1090
    %v1971 = vpack.c.b16 %v1099, %v1091
    %v1972 = vpack.c.b16 %v1100, %v1092
    %v1973 = vpack.c.b16 %v1101, %v1093
    %v1974 = vpack.c.b16 %v1102, %v1094
    %v1975 = vpack.c.b16 %v1103, %v1095
    %v1976 = vpack.c.b16 %v1104, %v1096
    %v1977 = vpack.c.b16 %v1105, %v1097
    %v1978 = vpack.c.b16 %v1114, %v1106
    %v1979 = vpack.c.b16 %v1115, %v1107
    %v1980 = vpack.c.b16 %v1116, %v1108
    %v1981 = vpack.c.b16 %v1117, %v1109
    %v1982 = vpack.c.b16 %v1118, %v1110
    %v1983 = vpack.c.b16 %v1119, %v1111
    %v1984 = vpack.c.b16 %v1120, %v1112
    %v1985 = vpack.c.b16 %v1121, %v1113
    %v1986 = vpack.c.b16 %v1130, %v1122
    %v1987 = vpack.c.b16 %v1131, %v1123
    %v1988 = vpack.c.b16 %v1132, %v1124
    %v1989 = vpack.c.b16 %v1133, %v1125
    %v1990 = vpack.c.b16 %v1134, %v1126
    %v1991 = vpack.c.b16 %v1135, %v1127
    %v1992 = vpack.c.b16 %v1136, %v1128
    %v1993 = vpack.c.b16 %v1137, %v1129
    %v1994 = vpack.c.b16 %v1146, %v1138
    %v1995 = vpack.c.b16 %v1147, %v1139
    %v1996 = vpack.c.b16 %v1148, %v1140
    %v1997 = vpack.c.b16 %v1149, %v1141
    %v1998 = vpack.c.b16 %v1150, %v1142
    %v1999 = vpack.c.b16 %v1151, %v1143
    %v2000 = vpack.c.b16 %v1152, %v1144
    %v2001 = vpack.c.b16 %v1153, %v1145
    %v2002 = vpack.c.b16 %v1162, %v1154
    %v2003 = vpack.c.b16 %v1163, %v1155
    %v2004 = vpack.c.b16 %v1164, %v1156
    %v2005 = vpack.c.b16 %v1165, %v1157
    %v2006 = vpack.c.b16 %v1166, %v1158
    %v2007 = vpack.c.b16 %v1167, %v1159
    %v2008 = vpack.c.b16 %v1168, %v1160
    %v2009 = vpack.c.b16 %v1169, %v1161
    %v2010 = vpack.c.b16 %v1178, %v1170
    %v2011 = vpack.c.b16 %v1179, %v1171
    %v2012 = vpack.c.b16 %v1180, %v1172
    %v2013 = vpack.c.b16 %v1181, %v1173
    %v2014 = vpack.c.b16 %v1182, %v1174
    %v2015 = vpack.c.b16 %v1183, %v1175
    %v2016 = vpack.c.b16 %v1184, %v1176
    %v2017 = vpack.c.b16 %v1185, %v1177
    %v2018 = vpack.c.b16 %v1194, %v1186
    %v2019 = vpack.c.b16 %v1195, %v1187
    %v2020 = vpack.c.b16 %v1196, %v1188
    %v2021 = vpack.c.b16 %v1197, %v1189
    %v2022 = vpack.c.b16 %v1198, %v1190
    %v2023 = vpack.c.b16 %v1199, %v1191
    %v2024 = vpack.c.b16 %v1200, %v1192
    %v2025 = vpack.c.b16 %v1201, %v1193
    %v2026 = vpack.c.b16 %v1210, %v1202
    %v2027 = vpack.c.b16 %v1211, %v1203
    %v2028 = vpack.c.b16 %v1212, %v1204
    %v2029 = vpack.c.b16 %v1213, %v1205
    %v2030 = vpack.c.b16 %v1214, %v1206
    %v2031 = vpack.c.b16 %v1215, %v1207
    %v2032 = vpack.c.b16 %v1216, %v1208
    %v2033 = vpack.c.b16 %v1217, %v1209
    %v2034 = vpack.c.b16 %v1226, %v1218
    %v2035 = vpack.c.b16 %v1227, %v1219
    %v2036 = vpack.c.b16 %v1228, %v1220
    %v2037 = vpack.c.b16 %v1229, %v1221
    %v2038 = vpack.c.b16 %v1230, %v1222
    %v2039 = vpack.c.b16 %v1231, %v1223
    %v2040 = vpack.c.b16 %v1232, %v1224
    %v2041 = vpack.c.b16 %v1233, %v1225
    %v2042 = vpack.c.b16 %v1242, %v1234
    %v2043 = vpack.c.b16 %v1243, %v1235
    %v2044 = vpack.c.b16 %v1244, %v1236
    %v2045 = vpack.c.b16 %v1245, %v1237
    %v2046 = vpack.c.b16 %v1246, %v1238
    %v2047 = vpack.c.b16 %v1247, %v1239
    %v2048 = vpack.c.b16 %v1248, %v1240
    %v2049 = vpack.c.b16 %v1249, %v1241
    %v2050 = vpack.c.b16 %v1258, %v1250
    %v2051 = vpack.c.b16 %v1259, %v1251
    %v2052 = vpack.c.b16 %v1260, %v1252
    %v2053 = vpack.c.b16 %v1261, %v1253
    %v2054 = vpack.c.b16 %v1262, %v1254
    %v2055 = vpack.c.b16 %v1263, %v1255
    %v2056 = vpack.c.b16 %v1264, %v1256
    %v2057 = vpack.c.b16 %v1265, %v1257
    %v2058 = vpack.c.b16 %v1274, %v1266
    %v2059 = vpack.c.b16 %v1275, %v1267
    %v2060 = vpack.c.b16 %v1276, %v1268
    %v2061 = vpack.c.b16 %v1277, %v1269
    %v2062 = vpack.c.b16 %v1278, %v1270
    %v2063 = vpack.c.b16 %v1279, %v1271
    %v2064 = vpack.c.b16 %v1280, %v1272
    %v2065 = vpack.c.b16 %v1281, %v1273
    %v2066 = vpack.c.b16 %v1290, %v1282
    %v2067 = vpack.c.b16 %v1291, %v1283
    %v2068 = vpack.c.b16 %v1292, %v1284
    %v2069 = vpack.c.b16 %v1293, %v1285
    %v2070 = vpack.c.b16 %v1294, %v1286
    %v2071 = vpack.c.b16 %v1295, %v1287
    %v2072 = vpack.c.b16 %v1296, %v1288
    %v2073 = vpack.c.b16 %v1297, %v1289
    %v2074 = vpack.c.b16 %v1306, %v1298
    %v2075 = vpack.c.b16 %v1307, %v1299
    %v2076 = vpack.c.b16 %v1308, %v1300
    %v2077 = vpack.c.b16 %v1309, %v1301
    %v2078 = vpack.c.b16 %v1310, %v1302
    %v2079 = vpack.c.b16 %v1311, %v1303
    %v2080 = vpack.c.b16 %v1312, %v1304
    %v2081 = vpack.c.b16 %v1313, %v1305
    %v2082 = vpack.c.b16 %v1322, %v1314
    %v2083 = vpack.c.b16 %v1323, %v1315
    %v2084 = vpack.c.b16 %v1324, %v1316
    %v2085 = vpack.c.b16 %v1325, %v1317
    %v2086 = vpack.c.b16 %v1326, %v1318
    %v2087 = vpack.c.b16 %v1327, %v1319
    %v2088 = vpack.c.b16 %v1328, %v1320
    %v2089 = vpack.c.b16 %v1329, %v1321
    %v2090 = vpack.c.b16 %v1338, %v1330
    %v2091 = vpack.c.b16 %v1339, %v1331
    %v2092 = vpack.c.b16 %v1340, %v1332
    %v2093 = vpack.c.b16 %v1341, %v1333
    %v2094 = vpack.c.b16 %v1342, %v1334
    %v2095 = vpack.c.b16 %v1343, %v1335
    %v2096 = vpack.c.b16 %v1344, %v1336
    %v2097 = vpack.c.b16 %v1345, %v1337
    %v2098 = vpack.c.b16 %v1354, %v1346
    %v2099 = vpack.c.b16 %v1355, %v1347
    %v2100 = vpack.c.b16 %v1356, %v1348
    %v2101 = vpack.c.b16 %v1357, %v1349
    %v2102 = vpack.c.b16 %v1358, %v1350
    %v2103 = vpack.c.b16 %v1359, %v1351
    %v2104 = vpack.c.b16 %v1360, %v1352
    %v2105 = vpack.c.b16 %v1361, %v1353
    %v2106 = vpack.c.b16 %v1370, %v1362
    %v2107 = vpack.c.b16 %v1371, %v1363
    %v2108 = vpack.c.b16 %v1372, %v1364
    %v2109 = vpack.c.b16 %v1373, %v1365
    %v2110 = vpack.c.b16 %v1374, %v1366
    %v2111 = vpack.c.b16 %v1375, %v1367
    %v2112 = vpack.c.b16 %v1376, %v1368
    %v2113 = vpack.c.b16 %v1377, %v1369
    %v2114 = vpack.c.b16 %v1386, %v1378
    %v2115 = vpack.c.b16 %v1387, %v1379
    %v2116 = vpack.c.b16 %v1388, %v1380
    %v2117 = vpack.c.b16 %v1389, %v1381
    %v2118 = vpack.c.b16 %v1390, %v1382
    %v2119 = vpack.c.b16 %v1391, %v1383
    %v2120 = vpack.c.b16 %v1392, %v1384
    %v2121 = vpack.c.b16 %v1393, %v1385
    %v2122 = vpack.c.b16 %v1402, %v1394
    %v2123 = vpack.c.b16 %v1403, %v1395
    %v2124 = vpack.c.b16 %v1404, %v1396
    %v2125 = vpack.c.b16 %v1405, %v1397
    %v2126 = vpack.c.b16 %v1406, %v1398
    %v2127 = vpack.c.b16 %v1407, %v1399
    %v2128 = vpack.c.b16 %v1408, %v1400
    %v2129 = vpack.c.b16 %v1409, %v1401
    %v2130 = vpack.c.b16 %v1418, %v1410
    %v2131 = vpack.c.b16 %v1419, %v1411
    %v2132 = vpack.c.b16 %v1420, %v1412
    %v2133 = vpack.c.b16 %v1421, %v1413
    %v2134 = vpack.c.b16 %v1422, %v1414
    %v2135 = vpack.c.b16 %v1423, %v1415
    %v2136 = vpack.c.b16 %v1424, %v1416
    %v2137 = vpack.c.b16 %v1425, %v1417
    %v2138 = vpack.c.b16 %v1434, %v1426
    %v2139 = vpack.c.b16 %v1435, %v1427
    %v2140 = vpack.c.b16 %v1436, %v1428
    %v2141 = vpack.c.b16 %v1437, %v1429
    %v2142 = vpack.c.b16 %v1438, %v1430
    %v2143 = vpack.c.b16 %v1439, %v1431
    %v2144 = vpack.c.b16 %v1440, %v1432
    %v2145 = vpack.c.b16 %v1441, %v1433
    %v2146 = vpack.c.b16 %v1450, %v1442
    %v2147 = vpack.c.b16 %v1451, %v1443
    %v2148 = vpack.c.b16 %v1452, %v1444
    %v2149 = vpack.c.b16 %v1453, %v1445
    %v2150 = vpack.c.b16 %v1454, %v1446
    %v2151 = vpack.c.b16 %v1455, %v1447
    %v2152 = vpack.c.b16 %v1456, %v1448
    %v2153 = vpack.c.b16 %v1457, %v1449
    %v2154 = vpack.c.b16 %v1466, %v1458
    %v2155 = vpack.c.b16 %v1467, %v1459
    %v2156 = vpack.c.b16 %v1468, %v1460
    %v2157 = vpack.c.b16 %v1469, %v1461
    %v2158 = vpack.c.b16 %v1470, %v1462
    %v2159 = vpack.c.b16 %v1471, %v1463
    %v2160 = vpack.c.b16 %v1472, %v1464
    %v2161 = vpack.c.b16 %v1473, %v1465
    %v2162 = vpack.c.b16 %v1482, %v1474
    %v2163 = vpack.c.b16 %v1483, %v1475
    %v2164 = vpack.c.b16 %v1484, %v1476
    %v2165 = vpack.c.b16 %v1485, %v1477
    %v2166 = vpack.c.b16 %v1486, %v1478
    %v2167 = vpack.c.b16 %v1487, %v1479
    %v2168 = vpack.c.b16 %v1488, %v1480
    %v2169 = vpack.c.b16 %v1489, %v1481
    %v2170 = vpack.c.b16 %v1498, %v1490
    %v2171 = vpack.c.b16 %v1499, %v1491
    %v2172 = vpack.c.b16 %v1500, %v1492
    %v2173 = vpack.c.b16 %v1501, %v1493
    %v2174 = vpack.c.b16 %v1502, %v1494
    %v2175 = vpack.c.b16 %v1503, %v1495
    %v2176 = vpack.c.b16 %v1504, %v1496
    %v2177 = vpack.c.b16 %v1505, %v1497
    %v2178 = vpack.c.b16 %v1514, %v1506
    %v2179 = vpack.c.b16 %v1515, %v1507
    %v2180 = vpack.c.b16 %v1516, %v1508
    %v2181 = vpack.c.b16 %v1517, %v1509
    %v2182 = vpack.c.b16 %v1518, %v1510
    %v2183 = vpack.c.b16 %v1519, %v1511
    %v2184 = vpack.c.b16 %v1520, %v1512
    %v2185 = vpack.c.b16 %v1521, %v1513
    %v2186 = vpack.c.b16 %v1530, %v1522
    %v2187 = vpack.c.b16 %v1531, %v1523
    %v2188 = vpack.c.b16 %v1532, %v1524
    %v2189 = vpack.c.b16 %v1533, %v1525
    %v2190 = vpack.c.b16 %v1534, %v1526
    %v2191 = vpack.c.b16 %v1535, %v1527
    %v2192 = vpack.c.b16 %v1536, %v1528
    %v2193 = vpack.c.b16 %v1537, %v1529
    %v2194 = vpack.c.b16 %v1546, %v1538
    %v2195 = vpack.c.b16 %v1547, %v1539
    %v2196 = vpack.c.b16 %v1548, %v1540
    %v2197 = vpack.c.b16 %v1549, %v1541
    %v2198 = vpack.c.b16 %v1550, %v1542
    %v2199 = vpack.c.b16 %v1551, %v1543
    %v2200 = vpack.c.b16 %v1552, %v1544
    %v2201 = vpack.c.b16 %v1553, %v1545
    %v2202 = vpack.c.b16 %v1562, %v1554
    %v2203 = vpack.c.b16 %v1563, %v1555
    %v2204 = vpack.c.b16 %v1564, %v1556
    %v2205 = vpack.c.b16 %v1565, %v1557
    %v2206 = vpack.c.b16 %v1566, %v1558
    %v2207 = vpack.c.b16 %v1567, %v1559
    %v2208 = vpack.c.b16 %v1568, %v1560
    %v2209 = vpack.c.b16 %v1569, %v1561
    %v2210 = vpack.c.b16 %v1578, %v1570
    %v2211 = vpack.c.b16 %v1579, %v1571
    %v2212 = vpack.c.b16 %v1580, %v1572
    %v2213 = vpack.c.b16 %v1581, %v1573
    %v2214 = vpack.c.b16 %v1582, %v1574
    %v2215 = vpack.c.b16 %v1583, %v1575
    %v2216 = vpack.c.b16 %v1584, %v1576
    %v2217 = vpack.c.b16 %v1585, %v1577
    %v2218 = vpack.c.b16 %v1594, %v1586
    %v2219 = vpack.c.b16 %v1595, %v1587
    %v2220 = vpack.c.b16 %v1596, %v1588
    %v2221 = vpack.c.b16 %v1597, %v1589
    %v2222 = vpack.c.b16 %v1598, %v1590
    %v2223 = vpack.c.b16 %v1599, %v1591
    %v2224 = vpack.c.b16 %v1600, %v1592
    %v2225 = vpack.c.b16 %v1601, %v1593
    %v2226 = vpack.c.b16 %v1610, %v1602
    %v2227 = vpack.c.b16 %v1611, %v1603
    %v2228 = vpack.c.b16 %v1612, %v1604
    %v2229 = vpack.c.b16 %v1613, %v1605
    %v2230 = vpack.c.b16 %v1614, %v1606
    %v2231 = vpack.c.b16 %v1615, %v1607
    %v2232 = vpack.c.b16 %v1616, %v1608
    %v2233 = vpack.c.b16 %v1617, %v1609
    %v2234 = vpack.c.b16 %v1626, %v1618
    %v2235 = vpack.c.b16 %v1627, %v1619
    %v2236 = vpack.c.b16 %v1628, %v1620
    %v2237 = vpack.c.b16 %v1629, %v1621
    %v2238 = vpack.c.b16 %v1630, %v1622
    %v2239 = vpack.c.b16 %v1631, %v1623
    %v2240 = vpack.c.b16 %v1632, %v1624
    %v2241 = vpack.c.b16 %v1633, %v1625
    %v2242 = vpack.c.b16 %v1642, %v1634
    %v2243 = vpack.c.b16 %v1643, %v1635
    %v2244 = vpack.c.b16 %v1644, %v1636
    %v2245 = vpack.c.b16 %v1645, %v1637
    %v2246 = vpack.c.b16 %v1646, %v1638
    %v2247 = vpack.c.b16 %v1647, %v1639
    %v2248 = vpack.c.b16 %v1648, %v1640
    %v2249 = vpack.c.b16 %v1649, %v1641
    %v2250 = vpack.c.b16 %v1658, %v1650
    %v2251 = vpack.c.b16 %v1659, %v1651
    %v2252 = vpack.c.b16 %v1660, %v1652
    %v2253 = vpack.c.b16 %v1661, %v1653
    %v2254 = vpack.c.b16 %v1662, %v1654
    %v2255 = vpack.c.b16 %v1663, %v1655
    %v2256 = vpack.c.b16 %v1664, %v1656
    %v2257 = vpack.c.b16 %v1665, %v1657
    %v2258 = vpack.c.b16 %v1674, %v1666
    %v2259 = vpack.c.b16 %v1675, %v1667
    %v2260 = vpack.c.b16 %v1676, %v1668
    %v2261 = vpack.c.b16 %v1677, %v1669
    %v2262 = vpack.c.b16 %v1678, %v1670
    %v2263 = vpack.c.b16 %v1679, %v1671
    %v2264 = vpack.c.b16 %v1680, %v1672
    %v2265 = vpack.c.b16 %v1681, %v1673
    %v2266 = vpack.c.b16 %v1690, %v1682
    %v2267 = vpack.c.b16 %v1691, %v1683
    %v2268 = vpack.c.b16 %v1692, %v1684
    %v2269 = vpack.c.b16 %v1693, %v1685
    %v2270 = vpack.c.b16 %v1694, %v1686
    %v2271 = vpack.c.b16 %v1695, %v1687
    %v2272 = vpack.c.b16 %v1696, %v1688
    %v2273 = vpack.c.b16 %v1697, %v1689
    %v2274 = vpack.c.b16 %v1706, %v1698
    %v2275 = vpack.c.b16 %v1707, %v1699
    %v2276 = vpack.c.b16 %v1708, %v1700
    %v2277 = vpack.c.b16 %v1709, %v1701
    %v2278 = vpack.c.b16 %v1710, %v1702
    %v2279 = vpack.c.b16 %v1711, %v1703
    %v2280 = vpack.c.b16 %v1712, %v1704
    %v2281 = vpack.c.b16 %v1713, %v1705
    %v2282 = vpack.c.b16 %v1722, %v1714
    %v2283 = vpack.c.b16 %v1723, %v1715
    %v2284 = vpack.c.b16 %v1724, %v1716
    %v2285 = vpack.c.b16 %v1725, %v1717
    %v2286 = vpack.c.b16 %v1726, %v1718
    %v2287 = vpack.c.b16 %v1727, %v1719
    %v2288 = vpack.c.b16 %v1728, %v1720
    %v2289 = vpack.c.b16 %v1729, %v1721
    %v2290 = vpack.c.b16 %v1738, %v1730
    %v2291 = vpack.c.b16 %v1739, %v1731
    %v2292 = vpack.c.b16 %v1740, %v1732
    %v2293 = vpack.c.b16 %v1741, %v1733
    %v2294 = vpack.c.b16 %v1742, %v1734
    %v2295 = vpack.c.b16 %v1743, %v1735
    %v2296 = vpack.c.b16 %v1744, %v1736
    %v2297 = vpack.c.b16 %v1745, %v1737
    %v2298 = vpack.c.b16 %v1754, %v1746
    %v2299 = vpack.c.b16 %v1755, %v1747
    %v2300 = vpack.c.b16 %v1756, %v1748
    %v2301 = vpack.c.b16 %v1757, %v1749
    %v2302 = vpack.c.b16 %v1758, %v1750
    %v2303 = vpack.c.b16 %v1759, %v1751
    %v2304 = vpack.c.b16 %v1760, %v1752
    %v2305 = vpack.c.b16 %v1761, %v1753
    %v2306 = vpack.c.b16 %v1770, %v1762
    %v2307 = vpack.c.b16 %v1771, %v1763
    %v2308 = vpack.c.b16 %v1772, %v1764
    %v2309 = vpack.c.b16 %v1773, %v1765
    %v2310 = vpack.c.b16 %v1774, %v1766
    %v2311 = vpack.c.b16 %v1775, %v1767
    %v2312 = vpack.c.b16 %v1776, %v1768
    %v2313 = vpack.c.b16 %v1777, %v1769
    %v2314 = vpack.c.b16 %v1786, %v1778
    %v2315 = vpack.c.b16 %v1787, %v1779
    %v2316 = vpack.c.b16 %v1788, %v1780
    %v2317 = vpack.c.b16 %v1789, %v1781
    %v2318 = vpack.c.b16 %v1790, %v1782
    %v2319 = vpack.c.b16 %v1791, %v1783
    %v2320 = vpack.c.b16 %v1792, %v1784
    %v2321 = vpack.c.b16 %v1793, %v1785
    %v2322 = vpack.c.b16 %v1802, %v1794
    %v2323 = vpack.c.b16 %v1803, %v1795
    %v2324 = vpack.c.b16 %v1804, %v1796
    %v2325 = vpack.c.b16 %v1805, %v1797
    %v2326 = vpack.c.b16 %v1806, %v1798
    %v2327 = vpack.c.b16 %v1807, %v1799
    %v2328 = vpack.c.b16 %v1808, %v1800
    %v2329 = vpack.c.b16 %v1809, %v1801
    %v2330 = vpack.c.b16 %v1818, %v1810
    %v2331 = vpack.c.b16 %v1819, %v1811
    %v2332 = vpack.c.b16 %v1820, %v1812
    %v2333 = vpack.c.b16 %v1821, %v1813
    %v2334 = vpack.c.b16 %v1822, %v1814
    %v2335 = vpack.c.b16 %v1823, %v1815
    %v2336 = vpack.c.b16 %v1824, %v1816
    %v2337 = vpack.c.b16 %v1825, %v1817
    %v2338 = vpack.c.b16 %v1834, %v1826
    %v2339 = vpack.c.b16 %v1835, %v1827
    %v2340 = vpack.c.b16 %v1836, %v1828
    %v2341 = vpack.c.b16 %v1837, %v1829
    %v2342 = vpack.c.b16 %v1838, %v1830
    %v2343 = vpack.c.b16 %v1839, %v1831
    %v2344 = vpack.c.b16 %v1840, %v1832
    %v2345 = vpack.c.b16 %v1841, %v1833
    %v2346 = vpack.c.b16 %v1850, %v1842
    %v2347 = vpack.c.b16 %v1851, %v1843
    %v2348 = vpack.c.b16 %v1852, %v1844
    %v2349 = vpack.c.b16 %v1853, %v1845
    %v2350 = vpack.c.b16 %v1854, %v1846
    %v2351 = vpack.c.b16 %v1855, %v1847
    %v2352 = vpack.c.b16 %v1856, %v1848
    %v2353 = vpack.c.b16 %v1857, %v1849
    %v2354 = vpack.c.b16 %v1866, %v1858
    %v2355 = vpack.c.b16 %v1867, %v1859
    %v2356 = vpack.c.b16 %v1868, %v1860
    %v2357 = vpack.c.b16 %v1869, %v1861
    %v2358 = vpack.c.b16 %v1870, %v1862
    %v2359 = vpack.c.b16 %v1871, %v1863
    %v2360 = vpack.c.b16 %v1872, %v1864
    %v2361 = vpack.c.b16 %v1873, %v1865
    %v2362 = vpack.c.b16 %v1882, %v1874
    %v2363 = vpack.c.b16 %v1883, %v1875
    %v2364 = vpack.c.b16 %v1884, %v1876
    %v2365 = vpack.c.b16 %v1885, %v1877
    %v2366 = vpack.c.b16 %v1886, %v1878
    %v2367 = vpack.c.b16 %v1887, %v1879
    %v2368 = vpack.c.b16 %v1888, %v1880
    %v2369 = vpack.c.b16 %v1889, %v1881
    %v2370 = vpack.c.b16 %v1898, %v1890
    %v2371 = vpack.c.b16 %v1899, %v1891
    %v2372 = vpack.c.b16 %v1900, %v1892
    %v2373 = vpack.c.b16 %v1901, %v1893
    %v2374 = vpack.c.b16 %v1902, %v1894
    %v2375 = vpack.c.b16 %v1903, %v1895
    %v2376 = vpack.c.b16 %v1904, %v1896
    %v2377 = vpack.c.b16 %v1905, %v1897
    %v2378 = vpack.c.b16 %v1914, %v1906
    %v2379 = vpack.c.b16 %v1915, %v1907
    %v2380 = vpack.c.b16 %v1916, %v1908
    %v2381 = vpack.c.b16 %v1917, %v1909
    %v2382 = vpack.c.b16 %v1918, %v1910
    %v2383 = vpack.c.b16 %v1919, %v1911
    %v2384 = vpack.c.b16 %v1920, %v1912
    %v2385 = vpack.c.b16 %v1921, %v1913
    %v2386 = vpack.c.b16 %v1930, %v1922
    %v2387 = vpack.c.b16 %v1931, %v1923
    %v2388 = vpack.c.b16 %v1932, %v1924
    %v2389 = vpack.c.b16 %v1933, %v1925
    %v2390 = vpack.c.b16 %v1934, %v1926
    %v2391 = vpack.c.b16 %v1935, %v1927
    %v2392 = vpack.c.b16 %v1936, %v1928
    %v2393 = vpack.c.b16 %v1937, %v1929
    %v2394 = vpack.c.b16 %v1946, %v1938
    %v2395 = vpack.c.b16 %v1947, %v1939
    %v2396 = vpack.c.b16 %v1948, %v1940
    %v2397 = vpack.c.b16 %v1949, %v1941
    %v2398 = vpack.c.b16 %v1950, %v1942
    %v2399 = vpack.c.b16 %v1951, %v1943
    %v2400 = vpack.c.b16 %v1952, %v1944
    %v2401 = vpack.c.b16 %v1953, %v1945
    %2850 = vmatprep.subr.bf16.mxu0 %v2011
    %2851 = vmatpush1.bf16.msra.mxu0 %v2010
    %2852 = vmatprep.subr.bf16.mxu0 %v2003
    %2853 = vmatpush1.bf16.msra.mxu0 %v2002
    %2854 = vmatprep.subr.bf16.mxu0 %v1995
    %2855 = vmatpush1.bf16.msra.mxu0 %v1994
    %2856 = vmatprep.subr.bf16.mxu0 %v1987
    %2857 = vmatpush1.bf16.msra.mxu0 %v1986
    %2858 = vmatprep.subr.bf16.mxu0 %v1979
    %2859 = vmatpush1.bf16.msra.mxu0 %v1978
    %2860 = vmatprep.subr.bf16.mxu0 %v1971
    %2861 = vmatpush1.bf16.msra.mxu0 %v1970
    %2862 = vmatprep.subr.bf16.mxu0 %v1963
    %2863 = vmatpush1.bf16.msra.mxu0 %v1962
    %2864 = vmatprep.subr.bf16.mxu0 %v1955
    %2865 = vmatpush1.bf16.msra.mxu0 %v1954
    %2866 = vmatprep.subr.bf16.mxu0 %v2075
    %2867 = vmatpush2.bf16.msra.mxu0 %v2074
    %2868 = vmatprep.subr.bf16.mxu0 %v2067
    %2869 = vmatpush2.bf16.msra.mxu0 %v2066
    %2870 = vmatprep.subr.bf16.mxu0 %v2059
    %2871 = vmatpush2.bf16.msra.mxu0 %v2058
    %2872 = vmatprep.subr.bf16.mxu0 %v2051
    %2873 = vmatpush2.bf16.msra.mxu0 %v2050
    %2874 = vmatprep.subr.bf16.mxu0 %v2043
    %2875 = vmatpush2.bf16.msra.mxu0 %v2042
    %2876 = vmatprep.subr.bf16.mxu0 %v2035
    %2877 = vmatpush2.bf16.msra.mxu0 %v2034
    %2878 = vmatprep.subr.bf16.mxu0 %v2027
    %2879 = vmatpush2.bf16.msra.mxu0 %v2026
    %2880 = vmatprep.subr.bf16.mxu0 %v2019
    %2881 = vmatpush2.bf16.msra.mxu0 %v2018
    %2882 = vmatprep.mubr.bf16.mxu0 %v597
    %2883 = vmatmul.mubr.bf16.gmra.mxu0 %v596
    %v2884 = vpop.f32.mrf.mxu0
    %v2885 = vadd.f32 %v548, %v2884
    %v2886 = vpop.f32.mrf.mxu0
    %v2887 = vadd.f32 %v552, %v2886
    %v2888 = vpop.f32.mrf.mxu0
    %v2889 = vpop.f32.mrf.mxu0
    %2890 = vdwg.mxu0
    %2891 = vmatprep.subr.bf16.mxu0 %v2139
    %2892 = vmatpush1.bf16.msra.mxu0 %v2138
    %2893 = vmatprep.subr.bf16.mxu0 %v2131
    %2894 = vmatpush1.bf16.msra.mxu0 %v2130
    %2895 = vmatprep.subr.bf16.mxu0 %v2123
    %2896 = vmatpush1.bf16.msra.mxu0 %v2122
    %2897 = vmatprep.subr.bf16.mxu0 %v2115
    %2898 = vmatpush1.bf16.msra.mxu0 %v2114
    %2899 = vmatprep.subr.bf16.mxu0 %v2107
    %2900 = vmatpush1.bf16.msra.mxu0 %v2106
    %2901 = vmatprep.subr.bf16.mxu0 %v2099
    %2902 = vmatpush1.bf16.msra.mxu0 %v2098
    %2903 = vmatprep.subr.bf16.mxu0 %v2091
    %2904 = vmatpush1.bf16.msra.mxu0 %v2090
    %2905 = vmatprep.subr.bf16.mxu0 %v2083
    %2906 = vmatpush1.bf16.msra.mxu0 %v2082
    %2907 = vmatprep.subr.bf16.mxu0 %v2203
    %2908 = vmatpush2.bf16.msra.mxu0 %v2202
    %2909 = vmatprep.subr.bf16.mxu0 %v2195
    %2910 = vmatpush2.bf16.msra.mxu0 %v2194
    %2911 = vmatprep.subr.bf16.mxu0 %v2187
    %2912 = vmatpush2.bf16.msra.mxu0 %v2186
    %2913 = vmatprep.subr.bf16.mxu0 %v2179
    %2914 = vmatpush2.bf16.msra.mxu0 %v2178
    %2915 = vmatprep.subr.bf16.mxu0 %v2171
    %2916 = vmatpush2.bf16.msra.mxu0 %v2170
    %2917 = vmatprep.subr.bf16.mxu0 %v2163
    %2918 = vmatpush2.bf16.msra.mxu0 %v2162
    %2919 = vmatprep.subr.bf16.mxu0 %v2155
    %2920 = vmatpush2.bf16.msra.mxu0 %v2154
    %2921 = vmatprep.subr.bf16.mxu0 %v2147
    %2922 = vmatpush2.bf16.msra.mxu0 %v2146
    %2923 = vmatprep.mubr.bf16.mxu0 %v599
    %2924 = vmatmul.mubr.bf16.gmra.mxu0 %v598
    %v2925 = vpop.f32.mrf.mxu0
    %v2926 = vadd.f32 %v2885, %v2925
    %v2927 = vpop.f32.mrf.mxu0
    %v2928 = vadd.f32 %v2887, %v2927
    %v2929 = vpop.f32.mrf.mxu0
    %v2930 = vpop.f32.mrf.mxu0
    %2931 = vdwg.mxu0
    %2932 = vmatprep.subr.bf16.mxu0 %v2267
    %2933 = vmatpush1.bf16.msra.mxu0 %v2266
    %2934 = vmatprep.subr.bf16.mxu0 %v2259
    %2935 = vmatpush1.bf16.msra.mxu0 %v2258
    %2936 = vmatprep.subr.bf16.mxu0 %v2251
    %2937 = vmatpush1.bf16.msra.mxu0 %v2250
    %2938 = vmatprep.subr.bf16.mxu0 %v2243
    %2939 = vmatpush1.bf16.msra.mxu0 %v2242
    %2940 = vmatprep.subr.bf16.mxu0 %v2235
    %2941 = vmatpush1.bf16.msra.mxu0 %v2234
    %2942 = vmatprep.subr.bf16.mxu0 %v2227
    %2943 = vmatpush1.bf16.msra.mxu0 %v2226
    %2944 = vmatprep.subr.bf16.mxu0 %v2219
    %2945 = vmatpush1.bf16.msra.mxu0 %v2218
    %2946 = vmatprep.subr.bf16.mxu0 %v2211
    %2947 = vmatpush1.bf16.msra.mxu0 %v2210
    %2948 = vmatprep.subr.bf16.mxu0 %v2331
    %2949 = vmatpush2.bf16.msra.mxu0 %v2330
    %2950 = vmatprep.subr.bf16.mxu0 %v2323
    %2951 = vmatpush2.bf16.msra.mxu0 %v2322
    %2952 = vmatprep.subr.bf16.mxu0 %v2315
    %2953 = vmatpush2.bf16.msra.mxu0 %v2314
    %2954 = vmatprep.subr.bf16.mxu0 %v2307
    %2955 = vmatpush2.bf16.msra.mxu0 %v2306
    %2956 = vmatprep.subr.bf16.mxu0 %v2299
    %2957 = vmatpush2.bf16.msra.mxu0 %v2298
    %2958 = vmatprep.subr.bf16.mxu0 %v2291
    %2959 = vmatpush2.bf16.msra.mxu0 %v2290
    %2960 = vmatprep.subr.bf16.mxu0 %v2283
    %2961 = vmatpush2.bf16.msra.mxu0 %v2282
    %2962 = vmatprep.subr.bf16.mxu0 %v2275
    %2963 = vmatpush2.bf16.msra.mxu0 %v2274
    %2964 = vmatprep.mubr.bf16.mxu0 %v601
    %2965 = vmatmul.mubr.bf16.gmra.mxu0 %v600
    %v2966 = vpop.f32.mrf.mxu0
    %v2967 = vadd.f32 %v2926, %v2966
    %v2968 = vpop.f32.mrf.mxu0
    %v2969 = vadd.f32 %v2928, %v2968
    %v2970 = vpop.f32.mrf.mxu0
    %v2971 = vpop.f32.mrf.mxu0
    %2972 = vdwg.mxu0
    %2973 = vmatprep.subr.bf16.mxu0 %v2395
    %2974 = vmatpush1.bf16.msra.mxu0 %v2394
    %2975 = vmatprep.subr.bf16.mxu0 %v2387
    %2976 = vmatpush1.bf16.msra.mxu0 %v2386
    %2977 = vmatprep.subr.bf16.mxu0 %v2379
    %2978 = vmatpush1.bf16.msra.mxu0 %v2378
    %2979 = vmatprep.subr.bf16.mxu0 %v2371
    %2980 = vmatpush1.bf16.msra.mxu0 %v2370
    %2981 = vmatprep.subr.bf16.mxu0 %v2363
    %2982 = vmatpush1.bf16.msra.mxu0 %v2362
    %2983 = vmatprep.subr.bf16.mxu0 %v2355
    %2984 = vmatpush1.bf16.msra.mxu0 %v2354
    %2985 = vmatprep.subr.bf16.mxu0 %v2347
    %2986 = vmatpush1.bf16.msra.mxu0 %v2346
    %2987 = vmatprep.subr.bf16.mxu0 %v2339
    %2988 = vmatpush1.bf16.msra.mxu0 %v2338
    %2989 = vmatprep.subr.bf16.mxu0 0
    %2990 = vmatpush2.bf16.msra.mxu0 0
    %2991 = vmatprep.subr.bf16.mxu0 0
    %2992 = vmatpush2.bf16.msra.mxu0 0
    %2993 = vmatprep.subr.bf16.mxu0 0
    %2994 = vmatpush2.bf16.msra.mxu0 0
    %2995 = vmatprep.subr.bf16.mxu0 0
    %2996 = vmatpush2.bf16.msra.mxu0 0
    %2997 = vmatprep.subr.bf16.mxu0 0
    %2998 = vmatpush2.bf16.msra.mxu0 0
    %2999 = vmatprep.subr.bf16.mxu0 0
    %3000 = vmatpush2.bf16.msra.mxu0 0
    %3001 = vmatprep.subr.bf16.mxu0 0
    %3002 = vmatpush2.bf16.msra.mxu0 0
    %3003 = vmatprep.subr.bf16.mxu0 0
    %3004 = vmatpush2.bf16.msra.mxu0 0
    %3005 = vmatprep.mubr.bf16.mxu0 0
    %3006 = vmatmul.mubr.bf16.gmra.mxu0 %v602
    %v3007 = vpop.f32.mrf.mxu0
    %v3008 = vadd.f32 %v2967, %v3007
    %v3009 = vpop.f32.mrf.mxu0
    %v3010 = vadd.f32 %v2969, %v3009
    %v3011 = vpop.f32.mrf.mxu0
    %v3012 = vpop.f32.mrf.mxu0
    %3013 = vdwg.mxu0
    %3014 = vmatprep.subr.bf16.mxu0 %v2013
    %3015 = vmatpush1.bf16.msra.mxu0 %v2012
    %3016 = vmatprep.subr.bf16.mxu0 %v2005
    %3017 = vmatpush1.bf16.msra.mxu0 %v2004
    %3018 = vmatprep.subr.bf16.mxu0 %v1997
    %3019 = vmatpush1.bf16.msra.mxu0 %v1996
    %3020 = vmatprep.subr.bf16.mxu0 %v1989
    %3021 = vmatpush1.bf16.msra.mxu0 %v1988
    %3022 = vmatprep.subr.bf16.mxu0 %v1981
    %3023 = vmatpush1.bf16.msra.mxu0 %v1980
    %3024 = vmatprep.subr.bf16.mxu0 %v1973
    %3025 = vmatpush1.bf16.msra.mxu0 %v1972
    %3026 = vmatprep.subr.bf16.mxu0 %v1965
    %3027 = vmatpush1.bf16.msra.mxu0 %v1964
    %3028 = vmatprep.subr.bf16.mxu0 %v1957
    %3029 = vmatpush1.bf16.msra.mxu0 %v1956
    %3030 = vmatprep.subr.bf16.mxu0 %v2077
    %3031 = vmatpush2.bf16.msra.mxu0 %v2076
    %3032 = vmatprep.subr.bf16.mxu0 %v2069
    %3033 = vmatpush2.bf16.msra.mxu0 %v2068
    %3034 = vmatprep.subr.bf16.mxu0 %v2061
    %3035 = vmatpush2.bf16.msra.mxu0 %v2060
    %3036 = vmatprep.subr.bf16.mxu0 %v2053
    %3037 = vmatpush2.bf16.msra.mxu0 %v2052
    %3038 = vmatprep.subr.bf16.mxu0 %v2045
    %3039 = vmatpush2.bf16.msra.mxu0 %v2044
    %3040 = vmatprep.subr.bf16.mxu0 %v2037
    %3041 = vmatpush2.bf16.msra.mxu0 %v2036
    %3042 = vmatprep.subr.bf16.mxu0 %v2029
    %3043 = vmatpush2.bf16.msra.mxu0 %v2028
    %3044 = vmatprep.subr.bf16.mxu0 %v2021
    %3045 = vmatpush2.bf16.msra.mxu0 %v2020
    %3046 = vmatprep.mubr.bf16.mxu0 %v597
    %3047 = vmatmul.mubr.bf16.gmra.mxu0 %v596
    %v3048 = vpop.f32.mrf.mxu0
    %v3049 = vadd.f32 %v556, %v3048
    %v3050 = vpop.f32.mrf.mxu0
    %v3051 = vadd.f32 %v560, %v3050
    %v3052 = vpop.f32.mrf.mxu0
    %v3053 = vpop.f32.mrf.mxu0
    %3054 = vdwg.mxu0
    %3055 = vmatprep.subr.bf16.mxu0 %v2141
    %3056 = vmatpush1.bf16.msra.mxu0 %v2140
    %3057 = vmatprep.subr.bf16.mxu0 %v2133
    %3058 = vmatpush1.bf16.msra.mxu0 %v2132
    %3059 = vmatprep.subr.bf16.mxu0 %v2125
    %3060 = vmatpush1.bf16.msra.mxu0 %v2124
    %3061 = vmatprep.subr.bf16.mxu0 %v2117
    %3062 = vmatpush1.bf16.msra.mxu0 %v2116
    %3063 = vmatprep.subr.bf16.mxu0 %v2109
    %3064 = vmatpush1.bf16.msra.mxu0 %v2108
    %3065 = vmatprep.subr.bf16.mxu0 %v2101
    %3066 = vmatpush1.bf16.msra.mxu0 %v2100
    %3067 = vmatprep.subr.bf16.mxu0 %v2093
    %3068 = vmatpush1.bf16.msra.mxu0 %v2092
    %3069 = vmatprep.subr.bf16.mxu0 %v2085
    %3070 = vmatpush1.bf16.msra.mxu0 %v2084
    %3071 = vmatprep.subr.bf16.mxu0 %v2205
    %3072 = vmatpush2.bf16.msra.mxu0 %v2204
    %3073 = vmatprep.subr.bf16.mxu0 %v2197
    %3074 = vmatpush2.bf16.msra.mxu0 %v2196
    %3075 = vmatprep.subr.bf16.mxu0 %v2189
    %3076 = vmatpush2.bf16.msra.mxu0 %v2188
    %3077 = vmatprep.subr.bf16.mxu0 %v2181
    %3078 = vmatpush2.bf16.msra.mxu0 %v2180
    %3079 = vmatprep.subr.bf16.mxu0 %v2173
    %3080 = vmatpush2.bf16.msra.mxu0 %v2172
    %3081 = vmatprep.subr.bf16.mxu0 %v2165
    %3082 = vmatpush2.bf16.msra.mxu0 %v2164
    %3083 = vmatprep.subr.bf16.mxu0 %v2157
    %3084 = vmatpush2.bf16.msra.mxu0 %v2156
    %3085 = vmatprep.subr.bf16.mxu0 %v2149
    %3086 = vmatpush2.bf16.msra.mxu0 %v2148
    %3087 = vmatprep.mubr.bf16.mxu0 %v599
    %3088 = vmatmul.mubr.bf16.gmra.mxu0 %v598
    %v3089 = vpop.f32.mrf.mxu0
    %v3090 = vadd.f32 %v3049, %v3089
    %v3091 = vpop.f32.mrf.mxu0
    %v3092 = vadd.f32 %v3051, %v3091
    %v3093 = vpop.f32.mrf.mxu0
    %v3094 = vpop.f32.mrf.mxu0
    %3095 = vdwg.mxu0
    %3096 = vmatprep.subr.bf16.mxu0 %v2269
    %3097 = vmatpush1.bf16.msra.mxu0 %v2268
    %3098 = vmatprep.subr.bf16.mxu0 %v2261
    %3099 = vmatpush1.bf16.msra.mxu0 %v2260
    %3100 = vmatprep.subr.bf16.mxu0 %v2253
    %3101 = vmatpush1.bf16.msra.mxu0 %v2252
    %3102 = vmatprep.subr.bf16.mxu0 %v2245
    %3103 = vmatpush1.bf16.msra.mxu0 %v2244
    %3104 = vmatprep.subr.bf16.mxu0 %v2237
    %3105 = vmatpush1.bf16.msra.mxu0 %v2236
    %3106 = vmatprep.subr.bf16.mxu0 %v2229
    %3107 = vmatpush1.bf16.msra.mxu0 %v2228
    %3108 = vmatprep.subr.bf16.mxu0 %v2221
    %3109 = vmatpush1.bf16.msra.mxu0 %v2220
    %3110 = vmatprep.subr.bf16.mxu0 %v2213
    %3111 = vmatpush1.bf16.msra.mxu0 %v2212
    %3112 = vmatprep.subr.bf16.mxu0 %v2333
    %3113 = vmatpush2.bf16.msra.mxu0 %v2332
    %3114 = vmatprep.subr.bf16.mxu0 %v2325
    %3115 = vmatpush2.bf16.msra.mxu0 %v2324
    %3116 = vmatprep.subr.bf16.mxu0 %v2317
    %3117 = vmatpush2.bf16.msra.mxu0 %v2316
    %3118 = vmatprep.subr.bf16.mxu0 %v2309
    %3119 = vmatpush2.bf16.msra.mxu0 %v2308
    %3120 = vmatprep.subr.bf16.mxu0 %v2301
    %3121 = vmatpush2.bf16.msra.mxu0 %v2300
    %3122 = vmatprep.subr.bf16.mxu0 %v2293
    %3123 = vmatpush2.bf16.msra.mxu0 %v2292
    %3124 = vmatprep.subr.bf16.mxu0 %v2285
    %3125 = vmatpush2.bf16.msra.mxu0 %v2284
    %3126 = vmatprep.subr.bf16.mxu0 %v2277
    %3127 = vmatpush2.bf16.msra.mxu0 %v2276
    %3128 = vmatprep.mubr.bf16.mxu0 %v601
    %3129 = vmatmul.mubr.bf16.gmra.mxu0 %v600
    %v3130 = vpop.f32.mrf.mxu0
    %v3131 = vadd.f32 %v3090, %v3130
    %v3132 = vpop.f32.mrf.mxu0
    %v3133 = vadd.f32 %v3092, %v3132
    %v3134 = vpop.f32.mrf.mxu0
    %v3135 = vpop.f32.mrf.mxu0
    %3136 = vdwg.mxu0
    %3137 = vmatprep.subr.bf16.mxu0 %v2397
    %3138 = vmatpush1.bf16.msra.mxu0 %v2396
    %3139 = vmatprep.subr.bf16.mxu0 %v2389
    %3140 = vmatpush1.bf16.msra.mxu0 %v2388
    %3141 = vmatprep.subr.bf16.mxu0 %v2381
    %3142 = vmatpush1.bf16.msra.mxu0 %v2380
    %3143 = vmatprep.subr.bf16.mxu0 %v2373
    %3144 = vmatpush1.bf16.msra.mxu0 %v2372
    %3145 = vmatprep.subr.bf16.mxu0 %v2365
    %3146 = vmatpush1.bf16.msra.mxu0 %v2364
    %3147 = vmatprep.subr.bf16.mxu0 %v2357
    %3148 = vmatpush1.bf16.msra.mxu0 %v2356
    %3149 = vmatprep.subr.bf16.mxu0 %v2349
    %3150 = vmatpush1.bf16.msra.mxu0 %v2348
    %3151 = vmatprep.subr.bf16.mxu0 %v2341
    %3152 = vmatpush1.bf16.msra.mxu0 %v2340
    %3153 = vmatprep.subr.bf16.mxu0 0
    %3154 = vmatpush2.bf16.msra.mxu0 0
    %3155 = vmatprep.subr.bf16.mxu0 0
    %3156 = vmatpush2.bf16.msra.mxu0 0
    %3157 = vmatprep.subr.bf16.mxu0 0
    %3158 = vmatpush2.bf16.msra.mxu0 0
    %3159 = vmatprep.subr.bf16.mxu0 0
    %3160 = vmatpush2.bf16.msra.mxu0 0
    %3161 = vmatprep.subr.bf16.mxu0 0
    %3162 = vmatpush2.bf16.msra.mxu0 0
    %3163 = vmatprep.subr.bf16.mxu0 0
    %3164 = vmatpush2.bf16.msra.mxu0 0
    %3165 = vmatprep.subr.bf16.mxu0 0
    %3166 = vmatpush2.bf16.msra.mxu0 0
    %3167 = vmatprep.subr.bf16.mxu0 0
    %3168 = vmatpush2.bf16.msra.mxu0 0
    %3169 = vmatprep.mubr.bf16.mxu0 0
    %3170 = vmatmul.mubr.bf16.gmra.mxu0 %v602
    %v3171 = vpop.f32.mrf.mxu0
    %v3172 = vadd.f32 %v3131, %v3171
    %v3173 = vpop.f32.mrf.mxu0
    %v3174 = vadd.f32 %v3133, %v3173
    %v3175 = vpop.f32.mrf.mxu0
    %v3176 = vpop.f32.mrf.mxu0
    %3177 = vdwg.mxu0
    %3178 = vmatprep.subr.bf16.mxu0 %v2015
    %3179 = vmatpush1.bf16.msra.mxu0 %v2014
    %3180 = vmatprep.subr.bf16.mxu0 %v2007
    %3181 = vmatpush1.bf16.msra.mxu0 %v2006
    %3182 = vmatprep.subr.bf16.mxu0 %v1999
    %3183 = vmatpush1.bf16.msra.mxu0 %v1998
    %3184 = vmatprep.subr.bf16.mxu0 %v1991
    %3185 = vmatpush1.bf16.msra.mxu0 %v1990
    %3186 = vmatprep.subr.bf16.mxu0 %v1983
    %3187 = vmatpush1.bf16.msra.mxu0 %v1982
    %3188 = vmatprep.subr.bf16.mxu0 %v1975
    %3189 = vmatpush1.bf16.msra.mxu0 %v1974
    %3190 = vmatprep.subr.bf16.mxu0 %v1967
    %3191 = vmatpush1.bf16.msra.mxu0 %v1966
    %3192 = vmatprep.subr.bf16.mxu0 %v1959
    %3193 = vmatpush1.bf16.msra.mxu0 %v1958
    %3194 = vmatprep.subr.bf16.mxu0 %v2079
    %3195 = vmatpush2.bf16.msra.mxu0 %v2078
    %3196 = vmatprep.subr.bf16.mxu0 %v2071
    %3197 = vmatpush2.bf16.msra.mxu0 %v2070
    %3198 = vmatprep.subr.bf16.mxu0 %v2063
    %3199 = vmatpush2.bf16.msra.mxu0 %v2062
    %3200 = vmatprep.subr.bf16.mxu0 %v2055
    %3201 = vmatpush2.bf16.msra.mxu0 %v2054
    %3202 = vmatprep.subr.bf16.mxu0 %v2047
    %3203 = vmatpush2.bf16.msra.mxu0 %v2046
    %3204 = vmatprep.subr.bf16.mxu0 %v2039
    %3205 = vmatpush2.bf16.msra.mxu0 %v2038
    %3206 = vmatprep.subr.bf16.mxu0 %v2031
    %3207 = vmatpush2.bf16.msra.mxu0 %v2030
    %3208 = vmatprep.subr.bf16.mxu0 %v2023
    %3209 = vmatpush2.bf16.msra.mxu0 %v2022
    %3210 = vmatprep.mubr.bf16.mxu0 %v597
    %3211 = vmatmul.mubr.bf16.gmra.mxu0 %v596
    %v3212 = vpop.f32.mrf.mxu0
    %v3213 = vadd.f32 %v564, %v3212
    %v3214 = vpop.f32.mrf.mxu0
    %v3215 = vadd.f32 %v568, %v3214
    %v3216 = vpop.f32.mrf.mxu0
    %v3217 = vpop.f32.mrf.mxu0
    %3218 = vdwg.mxu0
    %3219 = vmatprep.subr.bf16.mxu0 %v2143
    %3220 = vmatpush1.bf16.msra.mxu0 %v2142
    %3221 = vmatprep.subr.bf16.mxu0 %v2135
    %3222 = vmatpush1.bf16.msra.mxu0 %v2134
    %3223 = vmatprep.subr.bf16.mxu0 %v2127
    %3224 = vmatpush1.bf16.msra.mxu0 %v2126
    %3225 = vmatprep.subr.bf16.mxu0 %v2119
    %3226 = vmatpush1.bf16.msra.mxu0 %v2118
    %3227 = vmatprep.subr.bf16.mxu0 %v2111
    %3228 = vmatpush1.bf16.msra.mxu0 %v2110
    %3229 = vmatprep.subr.bf16.mxu0 %v2103
    %3230 = vmatpush1.bf16.msra.mxu0 %v2102
    %3231 = vmatprep.subr.bf16.mxu0 %v2095
    %3232 = vmatpush1.bf16.msra.mxu0 %v2094
    %3233 = vmatprep.subr.bf16.mxu0 %v2087
    %3234 = vmatpush1.bf16.msra.mxu0 %v2086
    %3235 = vmatprep.subr.bf16.mxu0 %v2207
    %3236 = vmatpush2.bf16.msra.mxu0 %v2206
    %3237 = vmatprep.subr.bf16.mxu0 %v2199
    %3238 = vmatpush2.bf16.msra.mxu0 %v2198
    %3239 = vmatprep.subr.bf16.mxu0 %v2191
    %3240 = vmatpush2.bf16.msra.mxu0 %v2190
    %3241 = vmatprep.subr.bf16.mxu0 %v2183
    %3242 = vmatpush2.bf16.msra.mxu0 %v2182
    %3243 = vmatprep.subr.bf16.mxu0 %v2175
    %3244 = vmatpush2.bf16.msra.mxu0 %v2174
    %3245 = vmatprep.subr.bf16.mxu0 %v2167
    %3246 = vmatpush2.bf16.msra.mxu0 %v2166
    %3247 = vmatprep.subr.bf16.mxu0 %v2159
    %3248 = vmatpush2.bf16.msra.mxu0 %v2158
    %3249 = vmatprep.subr.bf16.mxu0 %v2151
    %3250 = vmatpush2.bf16.msra.mxu0 %v2150
    %3251 = vmatprep.mubr.bf16.mxu0 %v599
    %3252 = vmatmul.mubr.bf16.gmra.mxu0 %v598
    %v3253 = vpop.f32.mrf.mxu0
    %v3254 = vadd.f32 %v3213, %v3253
    %v3255 = vpop.f32.mrf.mxu0
    %v3256 = vadd.f32 %v3215, %v3255
    %v3257 = vpop.f32.mrf.mxu0
    %v3258 = vpop.f32.mrf.mxu0
    %3259 = vdwg.mxu0
    %3260 = vmatprep.subr.bf16.mxu0 %v2271
    %3261 = vmatpush1.bf16.msra.mxu0 %v2270
    %3262 = vmatprep.subr.bf16.mxu0 %v2263
    %3263 = vmatpush1.bf16.msra.mxu0 %v2262
    %3264 = vmatprep.subr.bf16.mxu0 %v2255
    %3265 = vmatpush1.bf16.msra.mxu0 %v2254
    %3266 = vmatprep.subr.bf16.mxu0 %v2247
    %3267 = vmatpush1.bf16.msra.mxu0 %v2246
    %3268 = vmatprep.subr.bf16.mxu0 %v2239
    %3269 = vmatpush1.bf16.msra.mxu0 %v2238
    %3270 = vmatprep.subr.bf16.mxu0 %v2231
    %3271 = vmatpush1.bf16.msra.mxu0 %v2230
    %3272 = vmatprep.subr.bf16.mxu0 %v2223
    %3273 = vmatpush1.bf16.msra.mxu0 %v2222
    %3274 = vmatprep.subr.bf16.mxu0 %v2215
    %3275 = vmatpush1.bf16.msra.mxu0 %v2214
    %3276 = vmatprep.subr.bf16.mxu0 %v2335
    %3277 = vmatpush2.bf16.msra.mxu0 %v2334
    %3278 = vmatprep.subr.bf16.mxu0 %v2327
    %3279 = vmatpush2.bf16.msra.mxu0 %v2326
    %3280 = vmatprep.subr.bf16.mxu0 %v2319
    %3281 = vmatpush2.bf16.msra.mxu0 %v2318
    %3282 = vmatprep.subr.bf16.mxu0 %v2311
    %3283 = vmatpush2.bf16.msra.mxu0 %v2310
    %3284 = vmatprep.subr.bf16.mxu0 %v2303
    %3285 = vmatpush2.bf16.msra.mxu0 %v2302
    %3286 = vmatprep.subr.bf16.mxu0 %v2295
    %3287 = vmatpush2.bf16.msra.mxu0 %v2294
    %3288 = vmatprep.subr.bf16.mxu0 %v2287
    %3289 = vmatpush2.bf16.msra.mxu0 %v2286
    %3290 = vmatprep.subr.bf16.mxu0 %v2279
    %3291 = vmatpush2.bf16.msra.mxu0 %v2278
    %3292 = vmatprep.mubr.bf16.mxu0 %v601
    %3293 = vmatmul.mubr.bf16.gmra.mxu0 %v600
    %v3294 = vpop.f32.mrf.mxu0
    %v3295 = vadd.f32 %v3254, %v3294
    %v3296 = vpop.f32.mrf.mxu0
    %v3297 = vadd.f32 %v3256, %v3296
    %v3298 = vpop.f32.mrf.mxu0
    %v3299 = vpop.f32.mrf.mxu0
    %3300 = vdwg.mxu0
    %3301 = vmatprep.subr.bf16.mxu0 %v2399
    %3302 = vmatpush1.bf16.msra.mxu0 %v2398
    %3303 = vmatprep.subr.bf16.mxu0 %v2391
    %3304 = vmatpush1.bf16.msra.mxu0 %v2390
    %3305 = vmatprep.subr.bf16.mxu0 %v2383
    %3306 = vmatpush1.bf16.msra.mxu0 %v2382
    %3307 = vmatprep.subr.bf16.mxu0 %v2375
    %3308 = vmatpush1.bf16.msra.mxu0 %v2374
    %3309 = vmatprep.subr.bf16.mxu0 %v2367
    %3310 = vmatpush1.bf16.msra.mxu0 %v2366
    %3311 = vmatprep.subr.bf16.mxu0 %v2359
    %3312 = vmatpush1.bf16.msra.mxu0 %v2358
    %3313 = vmatprep.subr.bf16.mxu0 %v2351
    %3314 = vmatpush1.bf16.msra.mxu0 %v2350
    %3315 = vmatprep.subr.bf16.mxu0 %v2343
    %3316 = vmatpush1.bf16.msra.mxu0 %v2342
    %3317 = vmatprep.subr.bf16.mxu0 0
    %3318 = vmatpush2.bf16.msra.mxu0 0
    %3319 = vmatprep.subr.bf16.mxu0 0
    %3320 = vmatpush2.bf16.msra.mxu0 0
    %3321 = vmatprep.subr.bf16.mxu0 0
    %3322 = vmatpush2.bf16.msra.mxu0 0
    %3323 = vmatprep.subr.bf16.mxu0 0
    %3324 = vmatpush2.bf16.msra.mxu0 0
    %3325 = vmatprep.subr.bf16.mxu0 0
    %3326 = vmatpush2.bf16.msra.mxu0 0
    %3327 = vmatprep.subr.bf16.mxu0 0
    %3328 = vmatpush2.bf16.msra.mxu0 0
    %3329 = vmatprep.subr.bf16.mxu0 0
    %3330 = vmatpush2.bf16.msra.mxu0 0
    %3331 = vmatprep.subr.bf16.mxu0 0
    %3332 = vmatpush2.bf16.msra.mxu0 0
    %3333 = vmatprep.mubr.bf16.mxu0 0
    %3334 = vmatmul.mubr.bf16.gmra.mxu0 %v602
    %v3335 = vpop.f32.mrf.mxu0
    %v3336 = vadd.f32 %v3295, %v3335
    %v3337 = vpop.f32.mrf.mxu0
    %v3338 = vadd.f32 %v3297, %v3337
    %v3339 = vpop.f32.mrf.mxu0
    %v3340 = vpop.f32.mrf.mxu0
    %3341 = vdwg.mxu0
    %3342 = vmatprep.subr.bf16.mxu0 %v2017
    %3343 = vmatpush1.bf16.msra.mxu0 %v2016
    %3344 = vmatprep.subr.bf16.mxu0 %v2009
    %3345 = vmatpush1.bf16.msra.mxu0 %v2008
    %3346 = vmatprep.subr.bf16.mxu0 %v2001
    %3347 = vmatpush1.bf16.msra.mxu0 %v2000
    %3348 = vmatprep.subr.bf16.mxu0 %v1993
    %3349 = vmatpush1.bf16.msra.mxu0 %v1992
    %3350 = vmatprep.subr.bf16.mxu0 %v1985
    %3351 = vmatpush1.bf16.msra.mxu0 %v1984
    %3352 = vmatprep.subr.bf16.mxu0 %v1977
    %3353 = vmatpush1.bf16.msra.mxu0 %v1976
    %3354 = vmatprep.subr.bf16.mxu0 %v1969
    %3355 = vmatpush1.bf16.msra.mxu0 %v1968
    %3356 = vmatprep.subr.bf16.mxu0 %v1961
    %3357 = vmatpush1.bf16.msra.mxu0 %v1960
    %3358 = vmatprep.subr.bf16.mxu0 %v2081
    %3359 = vmatpush2.bf16.msra.mxu0 %v2080
    %3360 = vmatprep.subr.bf16.mxu0 %v2073
    %3361 = vmatpush2.bf16.msra.mxu0 %v2072
    %3362 = vmatprep.subr.bf16.mxu0 %v2065
    %3363 = vmatpush2.bf16.msra.mxu0 %v2064
    %3364 = vmatprep.subr.bf16.mxu0 %v2057
    %3365 = vmatpush2.bf16.msra.mxu0 %v2056
    %3366 = vmatprep.subr.bf16.mxu0 %v2049
    %3367 = vmatpush2.bf16.msra.mxu0 %v2048
    %3368 = vmatprep.subr.bf16.mxu0 %v2041
    %3369 = vmatpush2.bf16.msra.mxu0 %v2040
    %3370 = vmatprep.subr.bf16.mxu0 %v2033
    %3371 = vmatpush2.bf16.msra.mxu0 %v2032
    %3372 = vmatprep.subr.bf16.mxu0 %v2025
    %3373 = vmatpush2.bf16.msra.mxu0 %v2024
    %3374 = vmatprep.mubr.bf16.mxu0 %v597
    %3375 = vmatmul.mubr.bf16.gmra.mxu0 %v596
    %v3376 = vpop.f32.mrf.mxu0
    %v3377 = vadd.f32 %v572, %v3376
    %v3378 = vpop.f32.mrf.mxu0
    %v3379 = vadd.f32 %v576, %v3378
    %v3380 = vpop.f32.mrf.mxu0
    %v3381 = vpop.f32.mrf.mxu0
    %3382 = vdwg.mxu0
    %3383 = vmatprep.subr.bf16.mxu0 %v2145
    %3384 = vmatpush1.bf16.msra.mxu0 %v2144
    %3385 = vmatprep.subr.bf16.mxu0 %v2137
    %3386 = vmatpush1.bf16.msra.mxu0 %v2136
    %3387 = vmatprep.subr.bf16.mxu0 %v2129
    %3388 = vmatpush1.bf16.msra.mxu0 %v2128
    %3389 = vmatprep.subr.bf16.mxu0 %v2121
    %3390 = vmatpush1.bf16.msra.mxu0 %v2120
    %3391 = vmatprep.subr.bf16.mxu0 %v2113
    %3392 = vmatpush1.bf16.msra.mxu0 %v2112
    %3393 = vmatprep.subr.bf16.mxu0 %v2105
    %3394 = vmatpush1.bf16.msra.mxu0 %v2104
    %3395 = vmatprep.subr.bf16.mxu0 %v2097
    %3396 = vmatpush1.bf16.msra.mxu0 %v2096
    %3397 = vmatprep.subr.bf16.mxu0 %v2089
    %3398 = vmatpush1.bf16.msra.mxu0 %v2088
    %3399 = vmatprep.subr.bf16.mxu0 %v2209
    %3400 = vmatpush2.bf16.msra.mxu0 %v2208
    %3401 = vmatprep.subr.bf16.mxu0 %v2201
    %3402 = vmatpush2.bf16.msra.mxu0 %v2200
    %3403 = vmatprep.subr.bf16.mxu0 %v2193
    %3404 = vmatpush2.bf16.msra.mxu0 %v2192
    %3405 = vmatprep.subr.bf16.mxu0 %v2185
    %3406 = vmatpush2.bf16.msra.mxu0 %v2184
    %3407 = vmatprep.subr.bf16.mxu0 %v2177
    %3408 = vmatpush2.bf16.msra.mxu0 %v2176
    %3409 = vmatprep.subr.bf16.mxu0 %v2169
    %3410 = vmatpush2.bf16.msra.mxu0 %v2168
    %3411 = vmatprep.subr.bf16.mxu0 %v2161
    %3412 = vmatpush2.bf16.msra.mxu0 %v2160
    %3413 = vmatprep.subr.bf16.mxu0 %v2153
    %3414 = vmatpush2.bf16.msra.mxu0 %v2152
    %3415 = vmatprep.mubr.bf16.mxu0 %v599
    %3416 = vmatmul.mubr.bf16.gmra.mxu0 %v598
    %v3417 = vpop.f32.mrf.mxu0
    %v3418 = vadd.f32 %v3377, %v3417
    %v3419 = vpop.f32.mrf.mxu0
    %v3420 = vadd.f32 %v3379, %v3419
    %v3421 = vpop.f32.mrf.mxu0
    %v3422 = vpop.f32.mrf.mxu0
    %3423 = vdwg.mxu0
    %3424 = vmatprep.subr.bf16.mxu0 %v2273
    %3425 = vmatpush1.bf16.msra.mxu0 %v2272
    %3426 = vmatprep.subr.bf16.mxu0 %v2265
    %3427 = vmatpush1.bf16.msra.mxu0 %v2264
    %3428 = vmatprep.subr.bf16.mxu0 %v2257
    %3429 = vmatpush1.bf16.msra.mxu0 %v2256
    %3430 = vmatprep.subr.bf16.mxu0 %v2249
    %3431 = vmatpush1.bf16.msra.mxu0 %v2248
    %3432 = vmatprep.subr.bf16.mxu0 %v2241
    %3433 = vmatpush1.bf16.msra.mxu0 %v2240
    %3434 = vmatprep.subr.bf16.mxu0 %v2233
    %3435 = vmatpush1.bf16.msra.mxu0 %v2232
    %3436 = vmatprep.subr.bf16.mxu0 %v2225
    %3437 = vmatpush1.bf16.msra.mxu0 %v2224
    %3438 = vmatprep.subr.bf16.mxu0 %v2217
    %3439 = vmatpush1.bf16.msra.mxu0 %v2216
    %3440 = vmatprep.subr.bf16.mxu0 %v2337
    %3441 = vmatpush2.bf16.msra.mxu0 %v2336
    %3442 = vmatprep.subr.bf16.mxu0 %v2329
    %3443 = vmatpush2.bf16.msra.mxu0 %v2328
    %3444 = vmatprep.subr.bf16.mxu0 %v2321
    %3445 = vmatpush2.bf16.msra.mxu0 %v2320
    %3446 = vmatprep.subr.bf16.mxu0 %v2313
    %3447 = vmatpush2.bf16.msra.mxu0 %v2312
    %3448 = vmatprep.subr.bf16.mxu0 %v2305
    %3449 = vmatpush2.bf16.msra.mxu0 %v2304
    %3450 = vmatprep.subr.bf16.mxu0 %v2297
    %3451 = vmatpush2.bf16.msra.mxu0 %v2296
    %3452 = vmatprep.subr.bf16.mxu0 %v2289
    %3453 = vmatpush2.bf16.msra.mxu0 %v2288
    %3454 = vmatprep.subr.bf16.mxu0 %v2281
    %3455 = vmatpush2.bf16.msra.mxu0 %v2280
    %3456 = vmatprep.mubr.bf16.mxu0 %v601
    %3457 = vmatmul.mubr.bf16.gmra.mxu0 %v600
    %v3458 = vpop.f32.mrf.mxu0
    %v3459 = vadd.f32 %v3418, %v3458
    %v3460 = vpop.f32.mrf.mxu0
    %v3461 = vadd.f32 %v3420, %v3460
    %v3462 = vpop.f32.mrf.mxu0
    %v3463 = vpop.f32.mrf.mxu0
    %3464 = vdwg.mxu0
    %3465 = vmatprep.subr.bf16.mxu0 %v2401
    %3466 = vmatpush1.bf16.msra.mxu0 %v2400
    %3467 = vmatprep.subr.bf16.mxu0 %v2393
    %3468 = vmatpush1.bf16.msra.mxu0 %v2392
    %3469 = vmatprep.subr.bf16.mxu0 %v2385
    %3470 = vmatpush1.bf16.msra.mxu0 %v2384
    %3471 = vmatprep.subr.bf16.mxu0 %v2377
    %3472 = vmatpush1.bf16.msra.mxu0 %v2376
    %3473 = vmatprep.subr.bf16.mxu0 %v2369
    %3474 = vmatpush1.bf16.msra.mxu0 %v2368
    %3475 = vmatprep.subr.bf16.mxu0 %v2361
    %3476 = vmatpush1.bf16.msra.mxu0 %v2360
    %3477 = vmatprep.subr.bf16.mxu0 %v2353
    %3478 = vmatpush1.bf16.msra.mxu0 %v2352
    %3479 = vmatprep.subr.bf16.mxu0 %v2345
    %3480 = vmatpush1.bf16.msra.mxu0 %v2344
    %3481 = vmatprep.subr.bf16.mxu0 0
    %3482 = vmatpush2.bf16.msra.mxu0 0
    %3483 = vmatprep.subr.bf16.mxu0 0
    %3484 = vmatpush2.bf16.msra.mxu0 0
    %3485 = vmatprep.subr.bf16.mxu0 0
    %3486 = vmatpush2.bf16.msra.mxu0 0
    %3487 = vmatprep.subr.bf16.mxu0 0
    %3488 = vmatpush2.bf16.msra.mxu0 0
    %3489 = vmatprep.subr.bf16.mxu0 0
    %3490 = vmatpush2.bf16.msra.mxu0 0
    %3491 = vmatprep.subr.bf16.mxu0 0
    %3492 = vmatpush2.bf16.msra.mxu0 0
    %3493 = vmatprep.subr.bf16.mxu0 0
    %3494 = vmatpush2.bf16.msra.mxu0 0
    %3495 = vmatprep.subr.bf16.mxu0 0
    %3496 = vmatpush2.bf16.msra.mxu0 0
    %3497 = vmatprep.mubr.bf16.mxu0 0
    %3498 = vmatmul.mubr.bf16.gmra.mxu0 %v602
    %v3499 = vpop.f32.mrf.mxu0
    %v3500 = vadd.f32 %v3459, %v3499
    %v3501 = vpop.f32.mrf.mxu0
    %v3502 = vadd.f32 %v3461, %v3501
    %v3503 = vpop.f32.mrf.mxu0
    %v3504 = vpop.f32.mrf.mxu0
    %3505 = vdwg.mxu0
    %v3506 = vmax.f32 %v3008, 0.0
    %v3507 = vmax.f32 %v3010, 0.0
    %v3508 = vmax.f32 %v3172, 0.0
    %v3509 = vmax.f32 %v3174, 0.0
    %v3510 = vmax.f32 %v3336, 0.0
    %v3511 = vmax.f32 %v3338, 0.0
    %v3512 = vmax.f32 %v3500, 0.0
    %v3513 = vmax.f32 %v3502, 0.0
    %v3514 = vpack.c.bf16 %v3506, %v3506
    %v3515 = vpack.c.bf16 %v3507, %v3507
    %v3516 = vpack.c.bf16 %v3508, %v3508
    %v3517 = vpack.c.bf16 %v3509, %v3509
    %v3518 = vpack.c.bf16 %v3510, %v3510
    %v3519 = vpack.c.bf16 %v3511, %v3511
    %v3520 = vpack.c.bf16 %v3512, %v3512
    %v3521 = vpack.c.bf16 %v3513, %v3513
    %v3522 = vld [vmem:[#allocation7] sm:$0xff]
    %v3523 = vld [vmem:[#allocation7 + $0x8] sm:$0xff]
    %v3524 = vld [vmem:[#allocation7 + $0x10] sm:$0xff]
    %v3525 = vld [vmem:[#allocation7 + $0x18] sm:$0xff]
    %v3526 = vld [vmem:[#allocation7 + $0x20] sm:$0xff]
    %v3527 = vld [vmem:[#allocation7 + $0x28] sm:$0xff]
    %v3528 = vld [vmem:[#allocation7 + $0x30] sm:$0xff]
    %v3529 = vld [vmem:[#allocation7 + $0x38] sm:$0xff]
    %v3530 = vld [vmem:[#allocation7 + $0x40] sm:$0xff]
    %v3531 = vld [vmem:[#allocation7 + $0x48] sm:$0xff]
    %v3532 = vld [vmem:[#allocation7 + $0x50] sm:$0xff]
    %v3533 = vld [vmem:[#allocation7 + $0x58] sm:$0xff]
    %v3534 = vld [vmem:[#allocation7 + $0x60] sm:$0xff]
    %v3535 = vld [vmem:[#allocation7 + $0x68] sm:$0xff]
    %v3536 = vld [vmem:[#allocation7 + $0x70] sm:$0xff]
    %v3537 = vld [vmem:[#allocation7 + $0x78] sm:$0xff]
    %v3538 = vld [vmem:[#allocation7 + $0x80] sm:$0xff]
    %v3539 = vld [vmem:[#allocation7 + $0x88] sm:$0xff]
    %v3540 = vld [vmem:[#allocation7 + $0x90] sm:$0xff]
    %v3541 = vld [vmem:[#allocation7 + $0x98] sm:$0xff]
    %v3542 = vld [vmem:[#allocation7 + $0xa0] sm:$0xff]
    %v3543 = vld [vmem:[#allocation7 + $0xa8] sm:$0xff]
    %v3544 = vld [vmem:[#allocation7 + $0xb0] sm:$0xff]
    %v3545 = vld [vmem:[#allocation7 + $0xb8] sm:$0xff]
    %v3546 = vld [vmem:[#allocation7 + $0xc0] sm:$0xff]
    %v3547 = vld [vmem:[#allocation7 + $0xc8] sm:$0xff]
    %v3548 = vld [vmem:[#allocation7 + $0xd0] sm:$0xff]
    %v3549 = vld [vmem:[#allocation7 + $0xd8] sm:$0xff]
    %v3550 = vld [vmem:[#allocation7 + $0xe0] sm:$0xff]
    %v3551 = vld [vmem:[#allocation7 + $0xe8] sm:$0xff]
    %v3552 = vld [vmem:[#allocation7 + $0xf0] sm:$0xff]
    %v3553 = vld [vmem:[#allocation7 + $0xf8] sm:$0xff]
    %v3554 = vld [vmem:[#allocation7 + $0x100] sm:$0xff]
    %v3555 = vld [vmem:[#allocation7 + $0x108] sm:$0xff]
    %v3556 = vld [vmem:[#allocation7 + $0x110] sm:$0xff]
    %v3557 = vld [vmem:[#allocation7 + $0x118] sm:$0xff]
    %v3558 = vld [vmem:[#allocation7 + $0x120] sm:$0xff]
    %v3559 = vld [vmem:[#allocation7 + $0x128] sm:$0xff]
    %v3560 = vld [vmem:[#allocation7 + $0x130] sm:$0xff]
    %v3561 = vld [vmem:[#allocation7 + $0x138] sm:$0xff]
    %v3562 = vld [vmem:[#allocation7 + $0x140] sm:$0xff]
    %v3563 = vld [vmem:[#allocation7 + $0x148] sm:$0xff]
    %v3564 = vld [vmem:[#allocation7 + $0x150] sm:$0xff]
    %v3565 = vld [vmem:[#allocation7 + $0x158] sm:$0xff]
    %v3566 = vld [vmem:[#allocation7 + $0x160] sm:$0xff]
    %v3567 = vld [vmem:[#allocation7 + $0x168] sm:$0xff]
    %v3568 = vld [vmem:[#allocation7 + $0x170] sm:$0xff]
    %v3569 = vld [vmem:[#allocation7 + $0x178] sm:$0xff]
    %v3570 = vld [vmem:[#allocation7 + $0x180] sm:$0xff]
    %v3571 = vld [vmem:[#allocation7 + $0x188] sm:$0xff]
    %v3572 = vld [vmem:[#allocation7 + $0x190] sm:$0xff]
    %v3573 = vld [vmem:[#allocation7 + $0x198] sm:$0xff]
    %v3574 = vld [vmem:[#allocation7 + $0x1a0] sm:$0xff]
    %v3575 = vld [vmem:[#allocation7 + $0x1a8] sm:$0xff]
    %v3576 = vld [vmem:[#allocation7 + $0x1b0] sm:$0xff]
    %v3577 = vld [vmem:[#allocation7 + $0x1b8] sm:$0xff]
    %v3578 = vld [vmem:[#allocation7 + $0x1c0] sm:$0xff]
    %v3579 = vld [vmem:[#allocation7 + $0x1c8] sm:$0xff]
    %v3580 = vld [vmem:[#allocation7 + $0x1d0] sm:$0xff]
    %v3581 = vld [vmem:[#allocation7 + $0x1d8] sm:$0xff]
    %v3582 = vld [vmem:[#allocation7 + $0x1e0] sm:$0xff]
    %v3583 = vld [vmem:[#allocation7 + $0x1e8] sm:$0xff]
    %v3584 = vld [vmem:[#allocation7 + $0x1f0] sm:$0xff]
    %v3585 = vld [vmem:[#allocation7 + $0x1f8] sm:$0xff]
    %v3586 = vld [vmem:[#allocation7 + $0x200] sm:$0xff]
    %v3587 = vld [vmem:[#allocation7 + $0x208] sm:$0xff]
    %v3588 = vld [vmem:[#allocation7 + $0x210] sm:$0xff]
    %v3589 = vld [vmem:[#allocation7 + $0x218] sm:$0xff]
    %v3590 = vld [vmem:[#allocation7 + $0x220] sm:$0xff]
    %v3591 = vld [vmem:[#allocation7 + $0x228] sm:$0xff]
    %v3592 = vld [vmem:[#allocation7 + $0x230] sm:$0xff]
    %v3593 = vld [vmem:[#allocation7 + $0x238] sm:$0xff]
    %v3594 = vld [vmem:[#allocation7 + $0x240] sm:$0xff]
    %v3595 = vld [vmem:[#allocation7 + $0x248] sm:$0xff]
    %v3596 = vld [vmem:[#allocation7 + $0x250] sm:$0xff]
    %v3597 = vld [vmem:[#allocation7 + $0x258] sm:$0xff]
    %v3598 = vld [vmem:[#allocation7 + $0x260] sm:$0xff]
    %v3599 = vld [vmem:[#allocation7 + $0x268] sm:$0xff]
    %v3600 = vld [vmem:[#allocation7 + $0x270] sm:$0xff]
    %v3601 = vld [vmem:[#allocation7 + $0x278] sm:$0xff]
    %v3602 = vld [vmem:[#allocation7 + $0x280] sm:$0xff]
    %v3603 = vld [vmem:[#allocation7 + $0x288] sm:$0xff]
    %v3604 = vld [vmem:[#allocation7 + $0x290] sm:$0xff]
    %v3605 = vld [vmem:[#allocation7 + $0x298] sm:$0xff]
    %v3606 = vld [vmem:[#allocation7 + $0x2a0] sm:$0xff]
    %v3607 = vld [vmem:[#allocation7 + $0x2a8] sm:$0xff]
    %v3608 = vld [vmem:[#allocation7 + $0x2b0] sm:$0xff]
    %v3609 = vld [vmem:[#allocation7 + $0x2b8] sm:$0xff]
    %v3610 = vld [vmem:[#allocation7 + $0x2c0] sm:$0xff]
    %v3611 = vld [vmem:[#allocation7 + $0x2c8] sm:$0xff]
    %v3612 = vld [vmem:[#allocation7 + $0x2d0] sm:$0xff]
    %v3613 = vld [vmem:[#allocation7 + $0x2d8] sm:$0xff]
    %v3614 = vld [vmem:[#allocation7 + $0x2e0] sm:$0xff]
    %v3615 = vld [vmem:[#allocation7 + $0x2e8] sm:$0xff]
    %v3616 = vld [vmem:[#allocation7 + $0x2f0] sm:$0xff]
    %v3617 = vld [vmem:[#allocation7 + $0x2f8] sm:$0xff]
    %v3618 = vld [vmem:[#allocation7 + $0x300] sm:$0xff]
    %v3619 = vld [vmem:[#allocation7 + $0x308] sm:$0xff]
    %v3620 = vld [vmem:[#allocation7 + $0x310] sm:$0xff]
    %v3621 = vld [vmem:[#allocation7 + $0x318] sm:$0xff]
    %v3622 = vld [vmem:[#allocation7 + $0x320] sm:$0xff]
    %v3623 = vld [vmem:[#allocation7 + $0x328] sm:$0xff]
    %v3624 = vld [vmem:[#allocation7 + $0x330] sm:$0xff]
    %v3625 = vld [vmem:[#allocation7 + $0x338] sm:$0xff]
    %v3626 = vld [vmem:[#allocation7 + $0x340] sm:$0xff]
    %v3627 = vld [vmem:[#allocation7 + $0x348] sm:$0xff]
    %v3628 = vld [vmem:[#allocation7 + $0x350] sm:$0xff]
    %v3629 = vld [vmem:[#allocation7 + $0x358] sm:$0xff]
    %v3630 = vld [vmem:[#allocation7 + $0x360] sm:$0xff]
    %v3631 = vld [vmem:[#allocation7 + $0x368] sm:$0xff]
    %v3632 = vld [vmem:[#allocation7 + $0x370] sm:$0xff]
    %v3633 = vld [vmem:[#allocation7 + $0x378] sm:$0xff]
    %v3634 = vld [vmem:[#allocation7 + $0x380] sm:$0xff]
    %v3635 = vld [vmem:[#allocation7 + $0x388] sm:$0xff]
    %v3636 = vld [vmem:[#allocation7 + $0x390] sm:$0xff]
    %v3637 = vld [vmem:[#allocation7 + $0x398] sm:$0xff]
    %v3638 = vld [vmem:[#allocation7 + $0x3a0] sm:$0xff]
    %v3639 = vld [vmem:[#allocation7 + $0x3a8] sm:$0xff]
    %v3640 = vld [vmem:[#allocation7 + $0x3b0] sm:$0xff]
    %v3641 = vld [vmem:[#allocation7 + $0x3b8] sm:$0xff]
    %v3642 = vld [vmem:[#allocation7 + $0x3c0] sm:$0xff]
    %v3643 = vld [vmem:[#allocation7 + $0x3c8] sm:$0xff]
    %v3644 = vld [vmem:[#allocation7 + $0x3d0] sm:$0xff]
    %v3645 = vld [vmem:[#allocation7 + $0x3d8] sm:$0xff]
    %v3646 = vld [vmem:[#allocation7 + $0x3e0] sm:$0xff]
    %v3647 = vld [vmem:[#allocation7 + $0x3e8] sm:$0xff]
    %v3648 = vld [vmem:[#allocation7 + $0x3f0] sm:$0xff]
    %v3649 = vld [vmem:[#allocation7 + $0x3f8] sm:$0xff]
    %v3650 = vld [vmem:[#allocation8] sm:$0x3]
    %v3652 = vlaneseq
    %v3653 = vshrl.u32 %v3652, 7
    %v3654 = vsub.s32 0, %v3653
    %v3655 = vrot.slane %v3650, %v3654
    %v3656 = vlaneseq
    %v3657 = vshrl.u32 %v3656, 7
    %v3658 = vsub.s32 1, %v3657
    %v3659 = vrot.slane %v3650, %v3658
    %v3790 = vunpack.c.l.b16 %v3522
    %v3791 = vunpack.c.h.b16 %v3522
    %v3792 = vunpack.c.l.b16 %v3523
    %v3793 = vunpack.c.h.b16 %v3523
    %v3794 = vunpack.c.l.b16 %v3524
    %v3795 = vunpack.c.h.b16 %v3524
    %v3796 = vunpack.c.l.b16 %v3525
    %v3797 = vunpack.c.h.b16 %v3525
    %v3798 = vunpack.c.l.b16 %v3526
    %v3799 = vunpack.c.h.b16 %v3526
    %v3800 = vunpack.c.l.b16 %v3527
    %v3801 = vunpack.c.h.b16 %v3527
    %v3802 = vunpack.c.l.b16 %v3528
    %v3803 = vunpack.c.h.b16 %v3528
    %v3804 = vunpack.c.l.b16 %v3529
    %v3805 = vunpack.c.h.b16 %v3529
    %v3806 = vunpack.c.l.b16 %v3530
    %v3807 = vunpack.c.h.b16 %v3530
    %v3808 = vunpack.c.l.b16 %v3531
    %v3809 = vunpack.c.h.b16 %v3531
    %v3810 = vunpack.c.l.b16 %v3532
    %v3811 = vunpack.c.h.b16 %v3532
    %v3812 = vunpack.c.l.b16 %v3533
    %v3813 = vunpack.c.h.b16 %v3533
    %v3814 = vunpack.c.l.b16 %v3534
    %v3815 = vunpack.c.h.b16 %v3534
    %v3816 = vunpack.c.l.b16 %v3535
    %v3817 = vunpack.c.h.b16 %v3535
    %v3818 = vunpack.c.l.b16 %v3536
    %v3819 = vunpack.c.h.b16 %v3536
    %v3820 = vunpack.c.l.b16 %v3537
    %v3821 = vunpack.c.h.b16 %v3537
    %v3822 = vunpack.c.l.b16 %v3538
    %v3823 = vunpack.c.h.b16 %v3538
    %v3824 = vunpack.c.l.b16 %v3539
    %v3825 = vunpack.c.h.b16 %v3539
    %v3826 = vunpack.c.l.b16 %v3540
    %v3827 = vunpack.c.h.b16 %v3540
    %v3828 = vunpack.c.l.b16 %v3541
    %v3829 = vunpack.c.h.b16 %v3541
    %v3830 = vunpack.c.l.b16 %v3542
    %v3831 = vunpack.c.h.b16 %v3542
    %v3832 = vunpack.c.l.b16 %v3543
    %v3833 = vunpack.c.h.b16 %v3543
    %v3834 = vunpack.c.l.b16 %v3544
    %v3835 = vunpack.c.h.b16 %v3544
    %v3836 = vunpack.c.l.b16 %v3545
    %v3837 = vunpack.c.h.b16 %v3545
    %v3838 = vunpack.c.l.b16 %v3546
    %v3839 = vunpack.c.h.b16 %v3546
    %v3840 = vunpack.c.l.b16 %v3547
    %v3841 = vunpack.c.h.b16 %v3547
    %v3842 = vunpack.c.l.b16 %v3548
    %v3843 = vunpack.c.h.b16 %v3548
    %v3844 = vunpack.c.l.b16 %v3549
    %v3845 = vunpack.c.h.b16 %v3549
    %v3846 = vunpack.c.l.b16 %v3550
    %v3847 = vunpack.c.h.b16 %v3550
    %v3848 = vunpack.c.l.b16 %v3551
    %v3849 = vunpack.c.h.b16 %v3551
    %v3850 = vunpack.c.l.b16 %v3552
    %v3851 = vunpack.c.h.b16 %v3552
    %v3852 = vunpack.c.l.b16 %v3553
    %v3853 = vunpack.c.h.b16 %v3553
    %v3854 = vunpack.c.l.b16 %v3554
    %v3855 = vunpack.c.h.b16 %v3554
    %v3856 = vunpack.c.l.b16 %v3555
    %v3857 = vunpack.c.h.b16 %v3555
    %v3858 = vunpack.c.l.b16 %v3556
    %v3859 = vunpack.c.h.b16 %v3556
    %v3860 = vunpack.c.l.b16 %v3557
    %v3861 = vunpack.c.h.b16 %v3557
    %v3862 = vunpack.c.l.b16 %v3558
    %v3863 = vunpack.c.h.b16 %v3558
    %v3864 = vunpack.c.l.b16 %v3559
    %v3865 = vunpack.c.h.b16 %v3559
    %v3866 = vunpack.c.l.b16 %v3560
    %v3867 = vunpack.c.h.b16 %v3560
    %v3868 = vunpack.c.l.b16 %v3561
    %v3869 = vunpack.c.h.b16 %v3561
    %v3870 = vunpack.c.l.b16 %v3562
    %v3871 = vunpack.c.h.b16 %v3562
    %v3872 = vunpack.c.l.b16 %v3563
    %v3873 = vunpack.c.h.b16 %v3563
    %v3874 = vunpack.c.l.b16 %v3564
    %v3875 = vunpack.c.h.b16 %v3564
    %v3876 = vunpack.c.l.b16 %v3565
    %v3877 = vunpack.c.h.b16 %v3565
    %v3878 = vunpack.c.l.b16 %v3566
    %v3879 = vunpack.c.h.b16 %v3566
    %v3880 = vunpack.c.l.b16 %v3567
    %v3881 = vunpack.c.h.b16 %v3567
    %v3882 = vunpack.c.l.b16 %v3568
    %v3883 = vunpack.c.h.b16 %v3568
    %v3884 = vunpack.c.l.b16 %v3569
    %v3885 = vunpack.c.h.b16 %v3569
    %v3886 = vunpack.c.l.b16 %v3570
    %v3887 = vunpack.c.h.b16 %v3570
    %v3888 = vunpack.c.l.b16 %v3571
    %v3889 = vunpack.c.h.b16 %v3571
    %v3890 = vunpack.c.l.b16 %v3572
    %v3891 = vunpack.c.h.b16 %v3572
    %v3892 = vunpack.c.l.b16 %v3573
    %v3893 = vunpack.c.h.b16 %v3573
    %v3894 = vunpack.c.l.b16 %v3574
    %v3895 = vunpack.c.h.b16 %v3574
    %v3896 = vunpack.c.l.b16 %v3575
    %v3897 = vunpack.c.h.b16 %v3575
    %v3898 = vunpack.c.l.b16 %v3576
    %v3899 = vunpack.c.h.b16 %v3576
    %v3900 = vunpack.c.l.b16 %v3577
    %v3901 = vunpack.c.h.b16 %v3577
    %v3902 = vunpack.c.l.b16 %v3578
    %v3903 = vunpack.c.h.b16 %v3578
    %v3904 = vunpack.c.l.b16 %v3579
    %v3905 = vunpack.c.h.b16 %v3579
    %v3906 = vunpack.c.l.b16 %v3580
    %v3907 = vunpack.c.h.b16 %v3580
    %v3908 = vunpack.c.l.b16 %v3581
    %v3909 = vunpack.c.h.b16 %v3581
    %v3910 = vunpack.c.l.b16 %v3582
    %v3911 = vunpack.c.h.b16 %v3582
    %v3912 = vunpack.c.l.b16 %v3583
    %v3913 = vunpack.c.h.b16 %v3583
    %v3914 = vunpack.c.l.b16 %v3584
    %v3915 = vunpack.c.h.b16 %v3584
    %v3916 = vunpack.c.l.b16 %v3585
    %v3917 = vunpack.c.h.b16 %v3585
    %v3918 = vunpack.c.l.b16 %v3586
    %v3919 = vunpack.c.h.b16 %v3586
    %v3920 = vunpack.c.l.b16 %v3587
    %v3921 = vunpack.c.h.b16 %v3587
    %v3922 = vunpack.c.l.b16 %v3588
    %v3923 = vunpack.c.h.b16 %v3588
    %v3924 = vunpack.c.l.b16 %v3589
    %v3925 = vunpack.c.h.b16 %v3589
    %v3926 = vunpack.c.l.b16 %v3590
    %v3927 = vunpack.c.h.b16 %v3590
    %v3928 = vunpack.c.l.b16 %v3591
    %v3929 = vunpack.c.h.b16 %v3591
    %v3930 = vunpack.c.l.b16 %v3592
    %v3931 = vunpack.c.h.b16 %v3592
    %v3932 = vunpack.c.l.b16 %v3593
    %v3933 = vunpack.c.h.b16 %v3593
    %v3934 = vunpack.c.l.b16 %v3594
    %v3935 = vunpack.c.h.b16 %v3594
    %v3936 = vunpack.c.l.b16 %v3595
    %v3937 = vunpack.c.h.b16 %v3595
    %v3938 = vunpack.c.l.b16 %v3596
    %v3939 = vunpack.c.h.b16 %v3596
    %v3940 = vunpack.c.l.b16 %v3597
    %v3941 = vunpack.c.h.b16 %v3597
    %v3942 = vunpack.c.l.b16 %v3598
    %v3943 = vunpack.c.h.b16 %v3598
    %v3944 = vunpack.c.l.b16 %v3599
    %v3945 = vunpack.c.h.b16 %v3599
    %v3946 = vunpack.c.l.b16 %v3600
    %v3947 = vunpack.c.h.b16 %v3600
    %v3948 = vunpack.c.l.b16 %v3601
    %v3949 = vunpack.c.h.b16 %v3601
    %v3950 = vunpack.c.l.b16 %v3602
    %v3951 = vunpack.c.h.b16 %v3602
    %v3952 = vunpack.c.l.b16 %v3603
    %v3953 = vunpack.c.h.b16 %v3603
    %v3954 = vunpack.c.l.b16 %v3604
    %v3955 = vunpack.c.h.b16 %v3604
    %v3956 = vunpack.c.l.b16 %v3605
    %v3957 = vunpack.c.h.b16 %v3605
    %v3958 = vunpack.c.l.b16 %v3606
    %v3959 = vunpack.c.h.b16 %v3606
    %v3960 = vunpack.c.l.b16 %v3607
    %v3961 = vunpack.c.h.b16 %v3607
    %v3962 = vunpack.c.l.b16 %v3608
    %v3963 = vunpack.c.h.b16 %v3608
    %v3964 = vunpack.c.l.b16 %v3609
    %v3965 = vunpack.c.h.b16 %v3609
    %v3966 = vunpack.c.l.b16 %v3610
    %v3967 = vunpack.c.h.b16 %v3610
    %v3968 = vunpack.c.l.b16 %v3611
    %v3969 = vunpack.c.h.b16 %v3611
    %v3970 = vunpack.c.l.b16 %v3612
    %v3971 = vunpack.c.h.b16 %v3612
    %v3972 = vunpack.c.l.b16 %v3613
    %v3973 = vunpack.c.h.b16 %v3613
    %v3974 = vunpack.c.l.b16 %v3614
    %v3975 = vunpack.c.h.b16 %v3614
    %v3976 = vunpack.c.l.b16 %v3615
    %v3977 = vunpack.c.h.b16 %v3615
    %v3978 = vunpack.c.l.b16 %v3616
    %v3979 = vunpack.c.h.b16 %v3616
    %v3980 = vunpack.c.l.b16 %v3617
    %v3981 = vunpack.c.h.b16 %v3617
    %v3982 = vunpack.c.l.b16 %v3618
    %v3983 = vunpack.c.h.b16 %v3618
    %v3984 = vunpack.c.l.b16 %v3619
    %v3985 = vunpack.c.h.b16 %v3619
    %v3986 = vunpack.c.l.b16 %v3620
    %v3987 = vunpack.c.h.b16 %v3620
    %v3988 = vunpack.c.l.b16 %v3621
    %v3989 = vunpack.c.h.b16 %v3621
    %v3990 = vunpack.c.l.b16 %v3622
    %v3991 = vunpack.c.h.b16 %v3622
    %v3992 = vunpack.c.l.b16 %v3623
    %v3993 = vunpack.c.h.b16 %v3623
    %v3994 = vunpack.c.l.b16 %v3624
    %v3995 = vunpack.c.h.b16 %v3624
    %v3996 = vunpack.c.l.b16 %v3625
    %v3997 = vunpack.c.h.b16 %v3625
    %v3998 = vunpack.c.l.b16 %v3626
    %v3999 = vunpack.c.h.b16 %v3626
    %v4000 = vunpack.c.l.b16 %v3627
    %v4001 = vunpack.c.h.b16 %v3627
    %v4002 = vunpack.c.l.b16 %v3628
    %v4003 = vunpack.c.h.b16 %v3628
    %v4004 = vunpack.c.l.b16 %v3629
    %v4005 = vunpack.c.h.b16 %v3629
    %v4006 = vunpack.c.l.b16 %v3630
    %v4007 = vunpack.c.h.b16 %v3630
    %v4008 = vunpack.c.l.b16 %v3631
    %v4009 = vunpack.c.h.b16 %v3631
    %v4010 = vunpack.c.l.b16 %v3632
    %v4011 = vunpack.c.h.b16 %v3632
    %v4012 = vunpack.c.l.b16 %v3633
    %v4013 = vunpack.c.h.b16 %v3633
    %v4014 = vunpack.c.l.b16 %v3634
    %v4015 = vunpack.c.h.b16 %v3634
    %v4016 = vunpack.c.l.b16 %v3635
    %v4017 = vunpack.c.h.b16 %v3635
    %v4018 = vunpack.c.l.b16 %v3636
    %v4019 = vunpack.c.h.b16 %v3636
    %v4020 = vunpack.c.l.b16 %v3637
    %v4021 = vunpack.c.h.b16 %v3637
    %v4022 = vunpack.c.l.b16 %v3638
    %v4023 = vunpack.c.h.b16 %v3638
    %v4024 = vunpack.c.l.b16 %v3639
    %v4025 = vunpack.c.h.b16 %v3639
    %v4026 = vunpack.c.l.b16 %v3640
    %v4027 = vunpack.c.h.b16 %v3640
    %v4028 = vunpack.c.l.b16 %v3641
    %v4029 = vunpack.c.h.b16 %v3641
    %v4030 = vunpack.c.l.b16 %v3642
    %v4031 = vunpack.c.h.b16 %v3642
    %v4032 = vunpack.c.l.b16 %v3643
    %v4033 = vunpack.c.h.b16 %v3643
    %v4034 = vunpack.c.l.b16 %v3644
    %v4035 = vunpack.c.h.b16 %v3644
    %v4036 = vunpack.c.l.b16 %v3645
    %v4037 = vunpack.c.h.b16 %v3645
    %v4038 = vunpack.c.l.b16 %v3646
    %v4039 = vunpack.c.h.b16 %v3646
    %v4040 = vunpack.c.l.b16 %v3647
    %v4041 = vunpack.c.h.b16 %v3647
    %v4042 = vunpack.c.l.b16 %v3648
    %v4043 = vunpack.c.h.b16 %v3648
    %v4044 = vunpack.c.l.b16 %v3649
    %v4045 = vunpack.c.h.b16 %v3649
    %v4046 = vpack.c.b16 %v3792, %v3790
    %v4047 = vpack.c.b16 %v3793, %v3791
    %v4048 = vpack.c.b16 %v3796, %v3794
    %v4049 = vpack.c.b16 %v3797, %v3795
    %v4050 = vpack.c.b16 %v3800, %v3798
    %v4051 = vpack.c.b16 %v3801, %v3799
    %v4052 = vpack.c.b16 %v3804, %v3802
    %v4053 = vpack.c.b16 %v3805, %v3803
    %v4054 = vpack.c.b16 %v3808, %v3806
    %v4055 = vpack.c.b16 %v3809, %v3807
    %v4056 = vpack.c.b16 %v3812, %v3810
    %v4057 = vpack.c.b16 %v3813, %v3811
    %v4058 = vpack.c.b16 %v3816, %v3814
    %v4059 = vpack.c.b16 %v3817, %v3815
    %v4060 = vpack.c.b16 %v3820, %v3818
    %v4061 = vpack.c.b16 %v3821, %v3819
    %v4062 = vpack.c.b16 %v3824, %v3822
    %v4063 = vpack.c.b16 %v3825, %v3823
    %v4064 = vpack.c.b16 %v3828, %v3826
    %v4065 = vpack.c.b16 %v3829, %v3827
    %v4066 = vpack.c.b16 %v3832, %v3830
    %v4067 = vpack.c.b16 %v3833, %v3831
    %v4068 = vpack.c.b16 %v3836, %v3834
    %v4069 = vpack.c.b16 %v3837, %v3835
    %v4070 = vpack.c.b16 %v3840, %v3838
    %v4071 = vpack.c.b16 %v3841, %v3839
    %v4072 = vpack.c.b16 %v3844, %v3842
    %v4073 = vpack.c.b16 %v3845, %v3843
    %v4074 = vpack.c.b16 %v3848, %v3846
    %v4075 = vpack.c.b16 %v3849, %v3847
    %v4076 = vpack.c.b16 %v3852, %v3850
    %v4077 = vpack.c.b16 %v3853, %v3851
    %v4078 = vpack.c.b16 %v3856, %v3854
    %v4079 = vpack.c.b16 %v3857, %v3855
    %v4080 = vpack.c.b16 %v3860, %v3858
    %v4081 = vpack.c.b16 %v3861, %v3859
    %v4082 = vpack.c.b16 %v3864, %v3862
    %v4083 = vpack.c.b16 %v3865, %v3863
    %v4084 = vpack.c.b16 %v3868, %v3866
    %v4085 = vpack.c.b16 %v3869, %v3867
    %v4086 = vpack.c.b16 %v3872, %v3870
    %v4087 = vpack.c.b16 %v3873, %v3871
    %v4088 = vpack.c.b16 %v3876, %v3874
    %v4089 = vpack.c.b16 %v3877, %v3875
    %v4090 = vpack.c.b16 %v3880, %v3878
    %v4091 = vpack.c.b16 %v3881, %v3879
    %v4092 = vpack.c.b16 %v3884, %v3882
    %v4093 = vpack.c.b16 %v3885, %v3883
    %v4094 = vpack.c.b16 %v3888, %v3886
    %v4095 = vpack.c.b16 %v3889, %v3887
    %v4096 = vpack.c.b16 %v3892, %v3890
    %v4097 = vpack.c.b16 %v3893, %v3891
    %v4098 = vpack.c.b16 %v3896, %v3894
    %v4099 = vpack.c.b16 %v3897, %v3895
    %v4100 = vpack.c.b16 %v3900, %v3898
    %v4101 = vpack.c.b16 %v3901, %v3899
    %v4102 = vpack.c.b16 %v3904, %v3902
    %v4103 = vpack.c.b16 %v3905, %v3903
    %v4104 = vpack.c.b16 %v3908, %v3906
    %v4105 = vpack.c.b16 %v3909, %v3907
    %v4106 = vpack.c.b16 %v3912, %v3910
    %v4107 = vpack.c.b16 %v3913, %v3911
    %v4108 = vpack.c.b16 %v3916, %v3914
    %v4109 = vpack.c.b16 %v3917, %v3915
    %v4110 = vpack.c.b16 %v3920, %v3918
    %v4111 = vpack.c.b16 %v3921, %v3919
    %v4112 = vpack.c.b16 %v3924, %v3922
    %v4113 = vpack.c.b16 %v3925, %v3923
    %v4114 = vpack.c.b16 %v3928, %v3926
    %v4115 = vpack.c.b16 %v3929, %v3927
    %v4116 = vpack.c.b16 %v3932, %v3930
    %v4117 = vpack.c.b16 %v3933, %v3931
    %v4118 = vpack.c.b16 %v3936, %v3934
    %v4119 = vpack.c.b16 %v3937, %v3935
    %v4120 = vpack.c.b16 %v3940, %v3938
    %v4121 = vpack.c.b16 %v3941, %v3939
    %v4122 = vpack.c.b16 %v3944, %v3942
    %v4123 = vpack.c.b16 %v3945, %v3943
    %v4124 = vpack.c.b16 %v3948, %v3946
    %v4125 = vpack.c.b16 %v3949, %v3947
    %v4126 = vpack.c.b16 %v3952, %v3950
    %v4127 = vpack.c.b16 %v3953, %v3951
    %v4128 = vpack.c.b16 %v3956, %v3954
    %v4129 = vpack.c.b16 %v3957, %v3955
    %v4130 = vpack.c.b16 %v3960, %v3958
    %v4131 = vpack.c.b16 %v3961, %v3959
    %v4132 = vpack.c.b16 %v3964, %v3962
    %v4133 = vpack.c.b16 %v3965, %v3963
    %v4134 = vpack.c.b16 %v3968, %v3966
    %v4135 = vpack.c.b16 %v3969, %v3967
    %v4136 = vpack.c.b16 %v3972, %v3970
    %v4137 = vpack.c.b16 %v3973, %v3971
    %v4138 = vpack.c.b16 %v3976, %v3974
    %v4139 = vpack.c.b16 %v3977, %v3975
    %v4140 = vpack.c.b16 %v3980, %v3978
    %v4141 = vpack.c.b16 %v3981, %v3979
    %v4142 = vpack.c.b16 %v3984, %v3982
    %v4143 = vpack.c.b16 %v3985, %v3983
    %v4144 = vpack.c.b16 %v3988, %v3986
    %v4145 = vpack.c.b16 %v3989, %v3987
    %v4146 = vpack.c.b16 %v3992, %v3990
    %v4147 = vpack.c.b16 %v3993, %v3991
    %v4148 = vpack.c.b16 %v3996, %v3994
    %v4149 = vpack.c.b16 %v3997, %v3995
    %v4150 = vpack.c.b16 %v4000, %v3998
    %v4151 = vpack.c.b16 %v4001, %v3999
    %v4152 = vpack.c.b16 %v4004, %v4002
    %v4153 = vpack.c.b16 %v4005, %v4003
    %v4154 = vpack.c.b16 %v4008, %v4006
    %v4155 = vpack.c.b16 %v4009, %v4007
    %v4156 = vpack.c.b16 %v4012, %v4010
    %v4157 = vpack.c.b16 %v4013, %v4011
    %v4158 = vpack.c.b16 %v4016, %v4014
    %v4159 = vpack.c.b16 %v4017, %v4015
    %v4160 = vpack.c.b16 %v4020, %v4018
    %v4161 = vpack.c.b16 %v4021, %v4019
    %v4162 = vpack.c.b16 %v4024, %v4022
    %v4163 = vpack.c.b16 %v4025, %v4023
    %v4164 = vpack.c.b16 %v4028, %v4026
    %v4165 = vpack.c.b16 %v4029, %v4027
    %v4166 = vpack.c.b16 %v4032, %v4030
    %v4167 = vpack.c.b16 %v4033, %v4031
    %v4168 = vpack.c.b16 %v4036, %v4034
    %v4169 = vpack.c.b16 %v4037, %v4035
    %v4170 = vpack.c.b16 %v4040, %v4038
    %v4171 = vpack.c.b16 %v4041, %v4039
    %v4172 = vpack.c.b16 %v4044, %v4042
    %v4173 = vpack.c.b16 %v4045, %v4043
    %4302 = vmatprep.subr.bf16.mxu0 %v4061
    %4303 = vmatpush1.bf16.msra.mxu0 %v4060
    %4304 = vmatprep.subr.bf16.mxu0 %v4059
    %4305 = vmatpush1.bf16.msra.mxu0 %v4058
    %4306 = vmatprep.subr.bf16.mxu0 %v4057
    %4307 = vmatpush1.bf16.msra.mxu0 %v4056
    %4308 = vmatprep.subr.bf16.mxu0 %v4055
    %4309 = vmatpush1.bf16.msra.mxu0 %v4054
    %4310 = vmatprep.subr.bf16.mxu0 %v4053
    %4311 = vmatpush1.bf16.msra.mxu0 %v4052
    %4312 = vmatprep.subr.bf16.mxu0 %v4051
    %4313 = vmatpush1.bf16.msra.mxu0 %v4050
    %4314 = vmatprep.subr.bf16.mxu0 %v4049
    %4315 = vmatpush1.bf16.msra.mxu0 %v4048
    %4316 = vmatprep.subr.bf16.mxu0 %v4047
    %4317 = vmatpush1.bf16.msra.mxu0 %v4046
    %4318 = vmatprep.subr.bf16.mxu0 %v4077
    %4319 = vmatpush2.bf16.msra.mxu0 %v4076
    %4320 = vmatprep.subr.bf16.mxu0 %v4075
    %4321 = vmatpush2.bf16.msra.mxu0 %v4074
    %4322 = vmatprep.subr.bf16.mxu0 %v4073
    %4323 = vmatpush2.bf16.msra.mxu0 %v4072
    %4324 = vmatprep.subr.bf16.mxu0 %v4071
    %4325 = vmatpush2.bf16.msra.mxu0 %v4070
    %4326 = vmatprep.subr.bf16.mxu0 %v4069
    %4327 = vmatpush2.bf16.msra.mxu0 %v4068
    %4328 = vmatprep.subr.bf16.mxu0 %v4067
    %4329 = vmatpush2.bf16.msra.mxu0 %v4066
    %4330 = vmatprep.subr.bf16.mxu0 %v4065
    %4331 = vmatpush2.bf16.msra.mxu0 %v4064
    %4332 = vmatprep.subr.bf16.mxu0 %v4063
    %4333 = vmatpush2.bf16.msra.mxu0 %v4062
    %4334 = vmatprep.mubr.bf16.mxu0 %v3515
    %4335 = vmatmul.mubr.bf16.gmra.mxu0 %v3514
    %v4336 = vpop.f32.mrf.mxu0
    %v4337 = vadd.f32 %v3655, %v4336
    %v4338 = vpop.f32.mrf.mxu0
    %v4339 = vadd.f32 %v3659, %v4338
    %v4340 = vpop.f32.mrf.mxu0
    %v4341 = vpop.f32.mrf.mxu0
    %4342 = vdwg.mxu0
    %4343 = vmatprep.subr.bf16.mxu0 %v4093
    %4344 = vmatpush1.bf16.msra.mxu0 %v4092
    %4345 = vmatprep.subr.bf16.mxu0 %v4091
    %4346 = vmatpush1.bf16.msra.mxu0 %v4090
    %4347 = vmatprep.subr.bf16.mxu0 %v4089
    %4348 = vmatpush1.bf16.msra.mxu0 %v4088
    %4349 = vmatprep.subr.bf16.mxu0 %v4087
    %4350 = vmatpush1.bf16.msra.mxu0 %v4086
    %4351 = vmatprep.subr.bf16.mxu0 %v4085
    %4352 = vmatpush1.bf16.msra.mxu0 %v4084
    %4353 = vmatprep.subr.bf16.mxu0 %v4083
    %4354 = vmatpush1.bf16.msra.mxu0 %v4082
    %4355 = vmatprep.subr.bf16.mxu0 %v4081
    %4356 = vmatpush1.bf16.msra.mxu0 %v4080
    %4357 = vmatprep.subr.bf16.mxu0 %v4079
    %4358 = vmatpush1.bf16.msra.mxu0 %v4078
    %4359 = vmatprep.subr.bf16.mxu0 %v4109
    %4360 = vmatpush2.bf16.msra.mxu0 %v4108
    %4361 = vmatprep.subr.bf16.mxu0 %v4107
    %4362 = vmatpush2.bf16.msra.mxu0 %v4106
    %4363 = vmatprep.subr.bf16.mxu0 %v4105
    %4364 = vmatpush2.bf16.msra.mxu0 %v4104
    %4365 = vmatprep.subr.bf16.mxu0 %v4103
    %4366 = vmatpush2.bf16.msra.mxu0 %v4102
    %4367 = vmatprep.subr.bf16.mxu0 %v4101
    %4368 = vmatpush2.bf16.msra.mxu0 %v4100
    %4369 = vmatprep.subr.bf16.mxu0 %v4099
    %4370 = vmatpush2.bf16.msra.mxu0 %v4098
    %4371 = vmatprep.subr.bf16.mxu0 %v4097
    %4372 = vmatpush2.bf16.msra.mxu0 %v4096
    %4373 = vmatprep.subr.bf16.mxu0 %v4095
    %4374 = vmatpush2.bf16.msra.mxu0 %v4094
    %4375 = vmatprep.mubr.bf16.mxu0 %v3517
    %4376 = vmatmul.mubr.bf16.gmra.mxu0 %v3516
    %v4377 = vpop.f32.mrf.mxu0
    %v4378 = vadd.f32 %v4337, %v4377
    %v4379 = vpop.f32.mrf.mxu0
    %v4380 = vadd.f32 %v4339, %v4379
    %v4381 = vpop.f32.mrf.mxu0
    %v4382 = vpop.f32.mrf.mxu0
    %4383 = vdwg.mxu0
    %4384 = vmatprep.subr.bf16.mxu0 %v4125
    %4385 = vmatpush1.bf16.msra.mxu0 %v4124
    %4386 = vmatprep.subr.bf16.mxu0 %v4123
    %4387 = vmatpush1.bf16.msra.mxu0 %v4122
    %4388 = vmatprep.subr.bf16.mxu0 %v4121
    %4389 = vmatpush1.bf16.msra.mxu0 %v4120
    %4390 = vmatprep.subr.bf16.mxu0 %v4119
    %4391 = vmatpush1.bf16.msra.mxu0 %v4118
    %4392 = vmatprep.subr.bf16.mxu0 %v4117
    %4393 = vmatpush1.bf16.msra.mxu0 %v4116
    %4394 = vmatprep.subr.bf16.mxu0 %v4115
    %4395 = vmatpush1.bf16.msra.mxu0 %v4114
    %4396 = vmatprep.subr.bf16.mxu0 %v4113
    %4397 = vmatpush1.bf16.msra.mxu0 %v4112
    %4398 = vmatprep.subr.bf16.mxu0 %v4111
    %4399 = vmatpush1.bf16.msra.mxu0 %v4110
    %4400 = vmatprep.subr.bf16.mxu0 %v4141
    %4401 = vmatpush2.bf16.msra.mxu0 %v4140
    %4402 = vmatprep.subr.bf16.mxu0 %v4139
    %4403 = vmatpush2.bf16.msra.mxu0 %v4138
    %4404 = vmatprep.subr.bf16.mxu0 %v4137
    %4405 = vmatpush2.bf16.msra.mxu0 %v4136
    %4406 = vmatprep.subr.bf16.mxu0 %v4135
    %4407 = vmatpush2.bf16.msra.mxu0 %v4134
    %4408 = vmatprep.subr.bf16.mxu0 %v4133
    %4409 = vmatpush2.bf16.msra.mxu0 %v4132
    %4410 = vmatprep.subr.bf16.mxu0 %v4131
    %4411 = vmatpush2.bf16.msra.mxu0 %v4130
    %4412 = vmatprep.subr.bf16.mxu0 %v4129
    %4413 = vmatpush2.bf16.msra.mxu0 %v4128
    %4414 = vmatprep.subr.bf16.mxu0 %v4127
    %4415 = vmatpush2.bf16.msra.mxu0 %v4126
    %4416 = vmatprep.mubr.bf16.mxu0 %v3519
    %4417 = vmatmul.mubr.bf16.gmra.mxu0 %v3518
    %v4418 = vpop.f32.mrf.mxu0
    %v4419 = vadd.f32 %v4378, %v4418
    %v4420 = vpop.f32.mrf.mxu0
    %v4421 = vadd.f32 %v4380, %v4420
    %v4422 = vpop.f32.mrf.mxu0
    %v4423 = vpop.f32.mrf.mxu0
    %4424 = vdwg.mxu0
    %4425 = vmatprep.subr.bf16.mxu0 %v4157
    %4426 = vmatpush1.bf16.msra.mxu0 %v4156
    %4427 = vmatprep.subr.bf16.mxu0 %v4155
    %4428 = vmatpush1.bf16.msra.mxu0 %v4154
    %4429 = vmatprep.subr.bf16.mxu0 %v4153
    %4430 = vmatpush1.bf16.msra.mxu0 %v4152
    %4431 = vmatprep.subr.bf16.mxu0 %v4151
    %4432 = vmatpush1.bf16.msra.mxu0 %v4150
    %4433 = vmatprep.subr.bf16.mxu0 %v4149
    %4434 = vmatpush1.bf16.msra.mxu0 %v4148
    %4435 = vmatprep.subr.bf16.mxu0 %v4147
    %4436 = vmatpush1.bf16.msra.mxu0 %v4146
    %4437 = vmatprep.subr.bf16.mxu0 %v4145
    %4438 = vmatpush1.bf16.msra.mxu0 %v4144
    %4439 = vmatprep.subr.bf16.mxu0 %v4143
    %4440 = vmatpush1.bf16.msra.mxu0 %v4142
    %4441 = vmatprep.subr.bf16.mxu0 %v4173
    %4442 = vmatpush2.bf16.msra.mxu0 %v4172
    %4443 = vmatprep.subr.bf16.mxu0 %v4171
    %4444 = vmatpush2.bf16.msra.mxu0 %v4170
    %4445 = vmatprep.subr.bf16.mxu0 %v4169
    %4446 = vmatpush2.bf16.msra.mxu0 %v4168
    %4447 = vmatprep.subr.bf16.mxu0 %v4167
    %4448 = vmatpush2.bf16.msra.mxu0 %v4166
    %4449 = vmatprep.subr.bf16.mxu0 %v4165
    %4450 = vmatpush2.bf16.msra.mxu0 %v4164
    %4451 = vmatprep.subr.bf16.mxu0 %v4163
    %4452 = vmatpush2.bf16.msra.mxu0 %v4162
    %4453 = vmatprep.subr.bf16.mxu0 %v4161
    %4454 = vmatpush2.bf16.msra.mxu0 %v4160
    %4455 = vmatprep.subr.bf16.mxu0 %v4159
    %4456 = vmatpush2.bf16.msra.mxu0 %v4158
    %4457 = vmatprep.mubr.bf16.mxu0 %v3521
    %4458 = vmatmul.mubr.bf16.gmra.mxu0 %v3520
    %v4459 = vpop.f32.mrf.mxu0
    %v4460 = vadd.f32 %v4419, %v4459
    %v4461 = vpop.f32.mrf.mxu0
    %v4462 = vadd.f32 %v4421, %v4461
    %v4463 = vpop.f32.mrf.mxu0
    %v4464 = vpop.f32.mrf.mxu0
    %4465 = vdwg.mxu0
    %v4466 = vmax.f32 %v4460, 0.0
    %v4467 = vmax.f32 %v4462, 0.0
    %v4468 = vld [vmem:[#allocation10] sm:$0x3]
    %v4470 = vlaneseq
    %v4471 = vshrl.u32 %v4470, 7
    %v4472 = vsub.s32 0, %v4471
    %v4473 = vrot.slane %v4468, %v4472
    %v4474 = vlaneseq
    %v4475 = vshrl.u32 %v4474, 7
    %v4476 = vsub.s32 1, %v4475
    %v4477 = vrot.slane %v4468, %v4476
    %v4480 = vmul.f32 %v4466, %v4473
    %v4481 = vmul.f32 %v4467, %v4477
    %v4482 = vadd.f32 %v4480, %v4481
    %4483 = vadd.xlane.f32.xlu0 %v4482
    %v4484 = vpop.xlane.xlu0 %4483
    %v4485 = vld [vmem:[#allocation2] sm:$0x1]
    %v4487 = vlaneseq
    %v4488 = vshrl.u32 %v4487, 7
    %v4489 = vsub.s32 0, %v4488
    %v4490 = vrot.slane %v4485, %v4489
    %v4492 = vadd.f32 %v4484, %v4490
    %v4493 = vsub.f32 0.0, %v4492
    %v4494 = vmul.f32 %v4493, 1.442695
    %v4495 = vpow.pop %v4494
    %v4496 = vadd.f32 %v4495, 1.0
    %v4497 = vrcp.pop %v4496
    %v4498 = vmul.f32 1.0, %v4497
    %vm4499 = vcmask 7168
    %4500 = vst.msk [vmem:[%s7] sm:$0xff] %vm4499, %v4498
    // Predicated region
    $region50: #{vae_forward.1} parent=1 // pred_check
      _
    $region51: #{vae_forward.1} parent=1 // pred_check_branch
      %4502 = sbr.rel (0) target = $region53
    $region52: #{vae_forward.1} parent=1 // pred_region
      _
    $region53: #{vae_forward.1} parent=1 // pred_fallthru
      _
    // Predicated region
    $region54: #{vae_forward.1} parent=1 // pred_check
      _
    $region55: #{vae_forward.1} parent=1 // pred_check_branch
      %4504 = sbr.rel (0) target = $region57
    $region56: #{vae_forward.1} parent=1 // pred_region
      _
    $region57: #{vae_forward.1} parent=1 // pred_fallthru
      _
    %4505 = vsyncpa [#allocation4], 1
    %4506 = vsyncpa [#allocation6], 1
    %4507 = vsyncpa [#allocation9], 1

</llo_original>
